<compile_context>
chip_gen: v5e
topology: v5e:2x2
jax: 0.10.0
libtpu: 0.0.40
codegen_flags: <defaults>
</compile_context>

<pallas_src>
import functools

import jax
import jax.numpy as jnp
from jax import lax
from jax.experimental import pallas as pl
from jax.experimental.pallas import tpu as pltpu

_LANES = 128          # TPU lane count
_NCLS = 3             # SeriesLoss hard-codes 3 classes (reshape(-1, 3))
_PACK = _NCLS * _LANES  # 384 packed lanes = 128 samples * 3 classes
_LN2 = 0.6931471805599453


def _round_up(a, b):
    return (a + b - 1) // b * b


def _gather_matrix():
    """[384, 384] 0/1 matrix: (x @ P)[:, c*128 + j] == x[:, 3*j + c]."""
    src = jnp.arange(_PACK)[:, None]          # packed input lane  (3*j + c)
    dst = jnp.arange(_PACK)[None, :]          # gathered output lane (c*128 + j)
    j = dst % _LANES
    c = dst // _LANES
    return (src == _NCLS * j + c).astype(jnp.float32)


# ---------------------------------------------------------------------------
# Kernels
# ---------------------------------------------------------------------------
def _series_ce_index_kernel(x_ref, t_ref, p_ref, o_ref, *, eps, weighted):
    """targets are class indices: t_ref is [tile, 128] int32 (-1 == ignore)."""
    x = x_ref[...].astype(jnp.float32)                       # [tile, 384]
    # Lane-dense gather of the 3 class columns via the MXU (exact: P is 0/1).
    g = jnp.dot(x, p_ref[...],
                precision=lax.Precision.HIGHEST,
                preferred_element_type=jnp.float32)          # [tile, 384]
    a0 = g[:, 0 * _LANES:1 * _LANES]
    a1 = g[:, 1 * _LANES:2 * _LANES]
    a2 = g[:, 2 * _LANES:3 * _LANES]                         # [tile, 128] each

    t = t_ref[...]                                           # [tile, 128] int32
    ignore = t == -1
    tc = jnp.maximum(t, 0)                                   # clamp(min=0)

    m = jnp.maximum(jnp.maximum(a0, a1), a2)
    z0 = a0 - m
    z1 = a1 - m
    z2 = a2 - m
    lse = jnp.log(jnp.exp(z0) + jnp.exp(z1) + jnp.exp(z2))   # log-sum-exp (shifted)

    z_t = jnp.where(tc == 0, z0, jnp.where(tc == 1, z1, z2))
    if eps > 0.0:
        # Smoothed one-hot sums to 1  =>  loss = lse - <tgt, z>.
        dot_tz = (1.0 - eps) * z_t + (eps / (_NCLS - 1)) * ((z0 + z1 + z2) - z_t)
    else:
        dot_tz = z_t

    loss = jnp.where(ignore, 0.0, lse - dot_tz)              # mask the reduced scalar
    if weighted:
        loss = loss * jnp.exp(t.astype(jnp.float32) * _LN2)  # w = 2**target
    o_ref[...] = loss                                        # lane-dense [tile, 128]


def _series_ce_soft_kernel(x_ref, t_ref, p_ref, o_ref, *, eps):
    """targets are dense [tile, 384] float soft labels (per-element -1 == ignore)."""
    p = p_ref[...]
    x = x_ref[...].astype(jnp.float32)
    t = t_ref[...].astype(jnp.float32)
    gx = jnp.dot(x, p, precision=lax.Precision.HIGHEST,
                 preferred_element_type=jnp.float32)
    gt = jnp.dot(t, p, precision=lax.Precision.HIGHEST,
                 preferred_element_type=jnp.float32)

    a = [gx[:, c * _LANES:(c + 1) * _LANES] for c in range(_NCLS)]
    tt = [gt[:, c * _LANES:(c + 1) * _LANES] for c in range(_NCLS)]

    m = jnp.maximum(jnp.maximum(a[0], a[1]), a[2])
    z = [ac - m for ac in a]
    lse = jnp.log(jnp.exp(z[0]) + jnp.exp(z[1]) + jnp.exp(z[2]))

    loss = jnp.zeros_like(lse)
    for c in range(_NCLS):
        ignore_c = tt[c] == -1.0
        tc = jnp.maximum(tt[c], 0.0)
        if eps > 0.0:
            tc = tc * (1.0 - eps) + (1.0 - tc) * (eps / (_NCLS - 1))
        loss = loss + jnp.where(ignore_c, 0.0, tc * (lse - z[c]))
    o_ref[...] = loss


# ---------------------------------------------------------------------------
# Wrapper (== SeriesLoss(eps, weighted).forward)
# ---------------------------------------------------------------------------
def series_loss(inputs, targets, eps=0.0, weighted=False, rows_per_tile=256):
    """Pallas equivalent of SeriesLoss(eps, weighted)(inputs, targets) -> [bs*seq] f32."""
    if rows_per_tile % 8 != 0:
        raise ValueError("rows_per_tile must be a multiple of 8")

    bs = inputs.shape[0]
    x = inputs.reshape(bs, -1, _NCLS).reshape(-1, _NCLS)     # [N, 3]  (free reshape)
    n = x.shape[0]

    index_targets = targets.ndim != 3                        # 2-D targets -> class ids
    if index_targets:
        t = targets.reshape(-1)
        if t.dtype != jnp.int32:
            t = t.astype(jnp.int32)
    else:
        if weighted:
            # TODO(synk): weighted + 3-D soft targets; the reference torch code
            # broadcasts a [N,3] weight against a [N] loss and errors anyway.
            raise NotImplementedError("weighted=True requires index targets")
        t = targets.reshape(-1, _NCLS)

    r = -(-n // _LANES)                                      # rows of 128 samples
    tile_r = min(rows_per_tile, _round_up(max(r, 1), 8))
    r_pad = _round_up(max(r, 1), tile_r)
    n_pad = r_pad * _LANES

    x_flat = x.reshape(-1)                                   # [N*3]
    if n_pad != n:                                           # pad only when needed
        x_flat = jnp.pad(x_flat, (0, (n_pad - n) * _NCLS))
        if index_targets:
            t = jnp.pad(t, (0, n_pad - n), constant_values=-1)
        else:
            t = jnp.pad(t.reshape(-1), (0, (n_pad - n) * _NCLS),
                        constant_values=-1.0).reshape(-1, _NCLS)

    x2 = x_flat.reshape(r_pad, _PACK)                        # [R, 384] packed logits
    if index_targets:
        t2 = t.reshape(r_pad, _LANES)                        # [R, 128]
        t_block = (tile_r, _LANES)
        kernel = functools.partial(_series_ce_index_kernel,
                                   eps=float(eps), weighted=bool(weighted))
        n_dots = 1
    else:
        t2 = t.reshape(r_pad, _PACK)                         # [R, 384]
        t_block = (tile_r, _PACK)
        kernel = functools.partial(_series_ce_soft_kernel, eps=float(eps))
        n_dots = 2

    p = _gather_matrix()                                     # [384, 384], fetched once

    cost = pl.CostEstimate(
        flops=int(n_dots * 2 * r_pad * _PACK * _PACK + 32 * r_pad * _LANES),
        transcendentals=int(4 * r_pad * _LANES),
        bytes_accessed=int(x2.size * x2.dtype.itemsize
                           + t2.size * t2.dtype.itemsize
                           + p.size * 4 + r_pad * _LANES * 4),
    )

    out = pl.pallas_call(
        kernel,
        out_shape=jax.ShapeDtypeStruct((r_pad, _LANES), jnp.float32),
        grid=(r_pad // tile_r,),
        in_specs=[
            pl.BlockSpec((tile_r, _PACK), lambda i: (i, 0)),
            pl.BlockSpec(t_block, lambda i: (i, 0)),
            pl.BlockSpec((_PACK, _PACK), lambda i: (0, 0)),  # constant block index
        ],
        out_specs=pl.BlockSpec((tile_r, _LANES), lambda i: (i, 0)),
        compiler_params=pltpu.CompilerParams(
            dimension_semantics=("parallel",)),
        cost_estimate=cost,
    )(x2, t2, p)

    return out.reshape(-1)[:n]


# ---------------------------------------------------------------------------
# Pure-JAX reference (mirrors the PyTorch SeriesLoss forward)
# ---------------------------------------------------------------------------
def _reference_series_loss(inputs, targets, eps=0.0, weighted=False):
    bs = inputs.shape[0]
    x = inputs.reshape(bs, -1, _NCLS).reshape(-1, _NCLS).astype(jnp.float32)
    if targets.ndim != 3:
        t = targets.reshape(-1)
    else:
        t = targets.reshape(-1, _NCLS)
    mask = t == -1
    tcl = jnp.maximum(t, 0)
    if t.ndim == 1:
        tgt = jax.nn.one_hot(tcl, _NCLS, dtype=jnp.float32)
    else:
        tgt = tcl.astype(jnp.float32)
    if eps > 0:
        tgt = tgt * (1 - eps) + (1 - tgt) * (eps / (_NCLS - 1))
    log_sm = jax.nn.log_softmax(x, axis=1)
    loss = -tgt * log_sm
    mask2 = jnp.repeat(mask[:, None], _NCLS, axis=1) if mask.ndim == 1 else mask
    loss = jnp.where(mask2, 0.0, loss).sum(-1)
    if weighted:
        loss = loss * jnp.power(2.0, t.astype(jnp.float32))
    return loss


if __name__ == "__main__":
    key = jax.random.PRNGKey(0)
    ks = jax.random.split(key, 6)
    eps = 0.1

    # --- case 1: index targets (2-D targets) with ignored (-1) entries -------
    bs, seq = 4, 512                                   # N = 2048 samples, R = 16
    logits = jax.random.normal(ks[0], (bs, seq, _NCLS), dtype=jnp.float32)
    tgt = jax.random.randint(ks[1], (bs, seq), 0, _NCLS, dtype=jnp.int32)
    tgt = tgt.at[0, 7].set(-1).at[2, 100].set(-1)

    out1 = jax.block_until_ready(series_loss(logits, tgt, eps=eps))
    ref1 = _reference_series_loss(logits, tgt, eps=eps)
    assert out1.shape == (bs * seq,)
    assert jnp.allclose(out1, ref1, atol=1e-5, rtol=1e-5)

    # same inputs with a tiny tile -> multi-step pipelined grid
    out1b = jax.block_until_ready(series_loss(logits, tgt, eps=eps, rows_per_tile=8))
    assert jnp.allclose(out1b, ref1, atol=1e-5, rtol=1e-5)

    # --- case 2: N not a multiple of 128 (padding path), eps = 0 -------------
    bs2, seq2 = 2, 100
    logits2 = jax.random.normal(ks[2], (bs2, seq2, _NCLS), dtype=jnp.float32)
    tgt2 = jax.random.randint(ks[3], (bs2, seq2), 0, _NCLS, dtype=jnp.int32)
    tgt2 = tgt2.at[1, 3].set(-1)
    out2 = jax.block_until_ready(series_loss(logits2, tgt2, eps=0.0))
    ref2 = _reference_series_loss(logits2, tgt2, eps=0.0)
    assert jnp.allclose(out2, ref2, atol=1e-5, rtol=1e-5)

    # --- case 3: soft targets (3-D targets) -----------------------------------
    tgt3 = jax.nn.softmax(jax.random.normal(ks[4], (bs2, seq2, _NCLS)), axis=-1)
    out3 = jax.block_until_ready(series_loss(logits2, tgt3, eps=eps))
    ref3 = _reference_series_loss(logits2, tgt3, eps=eps)
    assert jnp.allclose(out3, ref3, atol=1e-5, rtol=1e-5)

    # --- case 4: weighted index targets (w = 2**target) -----------------------
    tgt4 = jnp.maximum(tgt, 0)
    out4 = jax.block_until_ready(series_loss(logits, tgt4, eps=eps, weighted=True))
    ref4 = _reference_series_loss(logits, tgt4, eps=eps, weighted=True)
    assert jnp.allclose(out4, ref4, atol=1e-5, rtol=1e-5)

    # --- case 5: bf16 logits stay bf16 in HBM, cast to f32 inside the kernel --
    logits_bf16 = logits.astype(jnp.bfloat16)
    out5 = jax.block_until_ready(series_loss(logits_bf16, tgt, eps=eps))
    ref5 = _reference_series_loss(logits_bf16, tgt, eps=eps)
    assert jnp.allclose(out5, ref5, atol=1e-4, rtol=1e-4)

    print("KERNEL_OK")
</pallas_src>

<mosaic_0001>
module attributes {stable_mosaic.version = 11 : i64} {
  func.func @_series_ce_index_kernel(%arg0: i32, %arg1: memref<16x384xf32, #tpu.memory_space<vmem>>, %arg2: memref<16x128xi32, #tpu.memory_space<vmem>>, %arg3: memref<384x384xf32, #tpu.memory_space<vmem>>, %arg4: memref<16x128xf32, #tpu.memory_space<vmem>>) attributes {dimension_semantics = [#tpu.dimension_semantics<parallel>], iteration_bounds = array<i64: 1>, scalar_prefetch = 0 : i64, scratch_operands = 0 : i64, tpu.core_type = #tpu.core_type<tc>, window_params = [{transform_indices = @transform_0, window_bounds = array<i64: 16, 384>}, {transform_indices = @transform_1, window_bounds = array<i64: 16, 128>}, {pipeline_mode = #tpu.pipeline_mode<synchronous>, transform_indices = @transform_2, window_bounds = array<i64: 384, 384>}, {transform_indices = @transform_3, window_bounds = array<i64: 16, 128>}]} {
    %c0 = arith.constant 0 : index
    %c0_0 = arith.constant 0 : index
    %0 = vector.load %arg1[%c0, %c0_0] : memref<16x384xf32, #tpu.memory_space<vmem>>, vector<16x384xf32>
    %c0_1 = arith.constant 0 : index
    %c0_2 = arith.constant 0 : index
    %1 = vector.load %arg3[%c0_1, %c0_2] : memref<384x384xf32, #tpu.memory_space<vmem>>, vector<384x384xf32>
    %cst = arith.constant dense<0.000000e+00> : vector<16x384xf32>
    %2 = tpu.matmul %0, %1, %cst {dimension_numbers = #tpu.dot_dimension_numbers<[1], [0], [0], [1], [0, 0, 1, 1], [], []>, precision = #tpu.contract_precision<fp32>} : vector<16x384xf32>, vector<384x384xf32>, vector<16x384xf32> -> vector<16x384xf32>
    %3 = vector.extract_strided_slice %2 {offsets = [0, 0], sizes = [16, 128], strides = [1, 1]} : vector<16x384xf32> to vector<16x128xf32>
    %4 = vector.extract_strided_slice %2 {offsets = [0, 128], sizes = [16, 128], strides = [1, 1]} : vector<16x384xf32> to vector<16x128xf32>
    %5 = vector.extract_strided_slice %2 {offsets = [0, 256], sizes = [16, 128], strides = [1, 1]} : vector<16x384xf32> to vector<16x128xf32>
    %c0_3 = arith.constant 0 : index
    %c0_4 = arith.constant 0 : index
    %6 = vector.load %arg2[%c0_3, %c0_4] : memref<16x128xi32, #tpu.memory_space<vmem>>, vector<16x128xi32>
    %c-1_i32 = arith.constant -1 : i32
    %7 = vector.broadcast %c-1_i32 : i32 to vector<16x128xi32>
    %8 = arith.cmpi eq, %6, %7 : vector<16x128xi32>
    %c0_i32 = arith.constant 0 : i32
    %9 = vector.broadcast %c0_i32 : i32 to vector<16x128xi32>
    %10 = arith.maxsi %6, %9 : vector<16x128xi32>
    %11 = arith.maximumf %3, %4 : vector<16x128xf32>
    %12 = arith.maximumf %11, %5 : vector<16x128xf32>
    %13 = arith.subf %3, %12 : vector<16x128xf32>
    %14 = arith.subf %4, %12 : vector<16x128xf32>
    %15 = arith.subf %5, %12 : vector<16x128xf32>
    %16 = math.exp %13 : vector<16x128xf32>
    %17 = math.exp %14 : vector<16x128xf32>
    %18 = arith.addf %16, %17 : vector<16x128xf32>
    %19 = math.exp %15 : vector<16x128xf32>
    %20 = arith.addf %18, %19 : vector<16x128xf32>
    %21 = math.log %20 : vector<16x128xf32>
    %c0_i32_5 = arith.constant 0 : i32
    %22 = vector.broadcast %c0_i32_5 : i32 to vector<16x128xi32>
    %23 = arith.cmpi eq, %10, %22 : vector<16x128xi32>
    %c1_i32 = arith.constant 1 : i32
    %24 = vector.broadcast %c1_i32 : i32 to vector<16x128xi32>
    %25 = arith.cmpi eq, %10, %24 : vector<16x128xi32>
    %26 = arith.select %25, %14, %15 : vector<16x128xi1>, vector<16x128xf32>
    %27 = arith.select %23, %13, %26 : vector<16x128xi1>, vector<16x128xf32>
    %cst_6 = arith.constant 0.899999976 : f32
    %28 = vector.broadcast %cst_6 : f32 to vector<16x128xf32>
    %29 = arith.mulf %28, %27 : vector<16x128xf32>
    %30 = arith.addf %13, %14 : vector<16x128xf32>
    %31 = arith.addf %30, %15 : vector<16x128xf32>
    %32 = arith.subf %31, %27 : vector<16x128xf32>
    %cst_7 = arith.constant 5.000000e-02 : f32
    %33 = vector.broadcast %cst_7 : f32 to vector<16x128xf32>
    %34 = arith.mulf %33, %32 : vector<16x128xf32>
    %35 = arith.addf %29, %34 : vector<16x128xf32>
    %36 = arith.subf %21, %35 : vector<16x128xf32>
    %cst_8 = arith.constant 0.000000e+00 : f32
    %37 = vector.broadcast %cst_8 : f32 to vector<16x128xf32>
    %38 = arith.select %8, %37, %36 : vector<16x128xi1>, vector<16x128xf32>
    %c0_9 = arith.constant 0 : index
    %c0_10 = arith.constant 0 : index
    %39 = vector.load %arg4[%c0_9, %c0_10] : memref<16x128xf32, #tpu.memory_space<vmem>>, vector<16x128xf32>
    tpu.vector_store %arg4[%c0_9, %c0_10], %38 {strides = array<i32>} : memref<16x128xf32, #tpu.memory_space<vmem>>, vector<16x128xf32>,
    return
  }
  func.func @transform_0(%arg0: i32) -> (i32, i32) {
    %c0_i32 = arith.constant 0 : i32
    %c0_i32_0 = arith.constant 0 : i32
    return %arg0, %c0_i32 : i32, i32
  }
  func.func @transform_1(%arg0: i32) -> (i32, i32) {
    %c0_i32 = arith.constant 0 : i32
    %c0_i32_0 = arith.constant 0 : i32
    return %arg0, %c0_i32 : i32, i32
  }
  func.func @transform_2(%arg0: i32) -> (i32, i32) {
    %c0_i32 = arith.constant 0 : i32
    %c0_i32_0 = arith.constant 0 : i32
    %c0_i32_1 = arith.constant 0 : i32
    return %c0_i32, %c0_i32_0 : i32, i32
  }
  func.func @transform_3(%arg0: i32) -> (i32, i32) {
    %c0_i32 = arith.constant 0 : i32
    %c0_i32_0 = arith.constant 0 : i32
    return %arg0, %c0_i32 : i32, i32
  }
}

</mosaic_0001>

<llo_original>
// kernel: tpu_custom_call.1
$region0: #{tpu_custom_call.1}
  #allocation0 [shape = 'u32[]', space=smem, size = 0x4, offset = 0x4, fixed_abs, tag = 'smem constant byte address 0x4 - core index']
  #allocation1 [shape = 'u32[72,128]{1,0:T(1,128)}', space=vmem, size = 0x9000, scoped, tag = 'internal scratch']
  %s0 = inlined_call_operand.hbm [shape: f32[16,384], index: 0, kind: input, shape index: {}]
  %s1 = inlined_call_operand.hbm [shape: s32[16,128], index: 1, kind: input, shape index: {}]
  %s2 = inlined_call_operand.hbm [shape: f32[384,384], index: 2, kind: input, shape index: {}]
  %s3 = inlined_call_operand.hbm [shape: f32[16,128], index: 3, kind: output, shape index: {}]
  %s4 = sld [smem:[#allocation0]]
  $region34: #{tpu_custom_call.1} parent=0
    _
  %s6 = ssub.s32 1, %s4
  %s7 = scalar_select 0, %s6, %s4
  $region1: #{tpu_custom_call.1} parent=0
    #allocation2 [shape = 'u8[24576]{0}', space=vmem, size = 0x6000, scoped, tag = 'input window, operand 0, single buffered']
    #allocation3 [shape = 's32[1]{0}', space=sflag, size = 0x4, scoped, tag = 'scoped memory for tpu_custom_call.1']
    #allocation4 [shape = 's32[1]{0}', space=sflag, size = 0x4, scoped, tag = 'scoped memory for tpu_custom_call.1']
    #allocation5 [shape = 'u8[8192]{0}', space=vmem, size = 0x2000, scoped, tag = 'input window, operand 1, single buffered']
    #allocation6 [shape = 's32[1]{0}', space=sflag, size = 0x4, scoped, tag = 'scoped memory for tpu_custom_call.1']
    #allocation7 [shape = 'u8[589824]{0}', space=vmem, size = 0x90000, scoped, tag = 'input window, operand 2, single buffered']
    #allocation8 [shape = 'u8[8192]{0}', space=vmem, size = 0x2000, scoped, tag = 'output window, operand 0, single buffered']
    %8 = vsyncpa [#allocation3], 0
    %9 = vsyncpa [#allocation6], 0
    %10 = vsyncpa [#allocation4], 0
    // Predicated region
    $region2: #{tpu_custom_call.1} parent=1 // pred_check
      _
    $region3: #{tpu_custom_call.1} parent=1 // pred_check_branch
      %12 = sbr.rel (0) target = $region5
    $region4: #{tpu_custom_call.1} parent=1 // pred_region
      %14 = vsyncadd [#allocation3], 0
      %s15 = sshll.u32 %s0, 4
      %s16 = int_to_ptr.hbm [resolvable:$true] %s15
      %s17 = sshll.u32 [#allocation2], 4
      %s18 = int_to_ptr.vmem [resolvable:$true] %s17
      %23 = dma.hbm_to_vmem [thread:$0]  %s16, 768, %s18, [#allocation3], 384, 384, 24
    $region5: #{tpu_custom_call.1} parent=1 // pred_fallthru
      _
    // Predicated region
    $region6: #{tpu_custom_call.1} parent=1 // pred_check
      _
    $region7: #{tpu_custom_call.1} parent=1 // pred_check_branch
      %25 = sbr.rel (0) target = $region9
    $region8: #{tpu_custom_call.1} parent=1 // pred_region
      %27 = vsyncadd [#allocation6], 0
      %s28 = sshll.u32 %s1, 4
      %s29 = int_to_ptr.hbm [resolvable:$true] %s28
      %s30 = sshll.u32 [#allocation5], 4
      %s31 = int_to_ptr.vmem [resolvable:$true] %s30
      %36 = dma.hbm_to_vmem [thread:$0]  %s29, 256, %s31, [#allocation6], 128, 128, 8
    $region9: #{tpu_custom_call.1} parent=1 // pred_fallthru
      _
    // Predicated region
    $region10: #{tpu_custom_call.1} parent=1 // pred_check
      _
    $region11: #{tpu_custom_call.1} parent=1 // pred_check_branch
      %38 = sbr.rel (0) target = $region13
    $region12: #{tpu_custom_call.1} parent=1 // pred_region
      %40 = vsyncadd [#allocation6], 0
      %s41 = sshll.u32 %s2, 4
      %s42 = int_to_ptr.hbm [resolvable:$true] %s41
      %s43 = sshll.u32 [#allocation7], 4
      %s44 = int_to_ptr.vmem [resolvable:$true] %s43
      %49 = dma.hbm_to_vmem [thread:$0]  %s42, 18432, %s44, [#allocation6], 384, 384, 24
    $region13: #{tpu_custom_call.1} parent=1 // pred_fallthru
      _
    // Predicated region
    $region14: #{tpu_custom_call.1} parent=1 // pred_check
      _
    $region15: #{tpu_custom_call.1} parent=1 // pred_check_branch
      %51 = sbr.rel (0) target = $region17
    $region16: #{tpu_custom_call.1} parent=1 // pred_region
      %53 = dma.done [#allocation3], 768
    $region17: #{tpu_custom_call.1} parent=1 // pred_fallthru
      _
    // Predicated region
    $region18: #{tpu_custom_call.1} parent=1 // pred_check
      _
    $region19: #{tpu_custom_call.1} parent=1 // pred_check_branch
      %55 = sbr.rel (0) target = $region21
    $region20: #{tpu_custom_call.1} parent=1 // pred_region
      %57 = dma.done [#allocation6], 256
    $region21: #{tpu_custom_call.1} parent=1 // pred_fallthru
      _
    // Predicated region
    $region22: #{tpu_custom_call.1} parent=1 // pred_check
      _
    $region23: #{tpu_custom_call.1} parent=1 // pred_check_branch
      %59 = sbr.rel (0) target = $region25
    $region24: #{tpu_custom_call.1} parent=1 // pred_region
      %61 = dma.done [#allocation6], 18432
    $region25: #{tpu_custom_call.1} parent=1 // pred_fallthru
      _
    %v62 = vld [vmem:[#allocation2] sm:$0xff]
    %v63 = vld [vmem:[#allocation2 + $0x8] sm:$0xff]
    %v64 = vld [vmem:[#allocation2 + $0x10] sm:$0xff]
    %v65 = vld [vmem:[#allocation2 + $0x18] sm:$0xff]
    %v66 = vld [vmem:[#allocation2 + $0x20] sm:$0xff]
    %v67 = vld [vmem:[#allocation2 + $0x28] sm:$0xff]
    %v68 = vld [vmem:[#allocation7] sm:$0xff]
    %v69 = vld [vmem:[#allocation7 + $0x8] sm:$0xff]
    %v70 = vld [vmem:[#allocation7 + $0x10] sm:$0xff]
    %v71 = vld [vmem:[#allocation7 + $0x18] sm:$0xff]
    %v72 = vld [vmem:[#allocation7 + $0x20] sm:$0xff]
    %v73 = vld [vmem:[#allocation7 + $0x28] sm:$0xff]
    %v74 = vld [vmem:[#allocation7 + $0x30] sm:$0xff]
    %v75 = vld [vmem:[#allocation7 + $0x38] sm:$0xff]
    %v76 = vld [vmem:[#allocation7 + $0x40] sm:$0xff]
    %v77 = vld [vmem:[#allocation7 + $0x48] sm:$0xff]
    %v78 = vld [vmem:[#allocation7 + $0x50] sm:$0xff]
    %v79 = vld [vmem:[#allocation7 + $0x58] sm:$0xff]
    %v80 = vld [vmem:[#allocation7 + $0x60] sm:$0xff]
    %v81 = vld [vmem:[#allocation7 + $0x68] sm:$0xff]
    %v82 = vld [vmem:[#allocation7 + $0x70] sm:$0xff]
    %v83 = vld [vmem:[#allocation7 + $0x78] sm:$0xff]
    %v84 = vld [vmem:[#allocation7 + $0x80] sm:$0xff]
    %v85 = vld [vmem:[#allocation7 + $0x88] sm:$0xff]
    %v86 = vld [vmem:[#allocation7 + $0x90] sm:$0xff]
    %v87 = vld [vmem:[#allocation7 + $0x98] sm:$0xff]
    %v88 = vld [vmem:[#allocation7 + $0xa0] sm:$0xff]
    %v89 = vld [vmem:[#allocation7 + $0xa8] sm:$0xff]
    %v90 = vld [vmem:[#allocation7 + $0xb0] sm:$0xff]
    %v91 = vld [vmem:[#allocation7 + $0xb8] sm:$0xff]
    %v92 = vld [vmem:[#allocation7 + $0xc0] sm:$0xff]
    %v93 = vld [vmem:[#allocation7 + $0xc8] sm:$0xff]
    %v94 = vld [vmem:[#allocation7 + $0xd0] sm:$0xff]
    %v95 = vld [vmem:[#allocation7 + $0xd8] sm:$0xff]
    %v96 = vld [vmem:[#allocation7 + $0xe0] sm:$0xff]
    %v97 = vld [vmem:[#allocation7 + $0xe8] sm:$0xff]
    %v98 = vld [vmem:[#allocation7 + $0xf0] sm:$0xff]
    %v99 = vld [vmem:[#allocation7 + $0xf8] sm:$0xff]
    %v100 = vld [vmem:[#allocation7 + $0x100] sm:$0xff]
    %v101 = vld [vmem:[#allocation7 + $0x108] sm:$0xff]
    %v102 = vld [vmem:[#allocation7 + $0x110] sm:$0xff]
    %v103 = vld [vmem:[#allocation7 + $0x118] sm:$0xff]
    %v104 = vld [vmem:[#allocation7 + $0x120] sm:$0xff]
    %v105 = vld [vmem:[#allocation7 + $0x128] sm:$0xff]
    %v106 = vld [vmem:[#allocation7 + $0x130] sm:$0xff]
    %v107 = vld [vmem:[#allocation7 + $0x138] sm:$0xff]
    %v108 = vld [vmem:[#allocation7 + $0x140] sm:$0xff]
    %v109 = vld [vmem:[#allocation7 + $0x148] sm:$0xff]
    %v110 = vld [vmem:[#allocation7 + $0x150] sm:$0xff]
    %v111 = vld [vmem:[#allocation7 + $0x158] sm:$0xff]
    %v112 = vld [vmem:[#allocation7 + $0x160] sm:$0xff]
    %v113 = vld [vmem:[#allocation7 + $0x168] sm:$0xff]
    %v114 = vld [vmem:[#allocation7 + $0x170] sm:$0xff]
    %v115 = vld [vmem:[#allocation7 + $0x178] sm:$0xff]
    %v116 = vld [vmem:[#allocation7 + $0x180] sm:$0xff]
    %v117 = vld [vmem:[#allocation7 + $0x188] sm:$0xff]
    %v118 = vld [vmem:[#allocation7 + $0x190] sm:$0xff]
    %v119 = vld [vmem:[#allocation7 + $0x198] sm:$0xff]
    %v120 = vld [vmem:[#allocation7 + $0x1a0] sm:$0xff]
    %v121 = vld [vmem:[#allocation7 + $0x1a8] sm:$0xff]
    %v122 = vld [vmem:[#allocation7 + $0x1b0] sm:$0xff]
    %v123 = vld [vmem:[#allocation7 + $0x1b8] sm:$0xff]
    %v124 = vld [vmem:[#allocation7 + $0x1c0] sm:$0xff]
    %v125 = vld [vmem:[#allocation7 + $0x1c8] sm:$0xff]
    %v126 = vld [vmem:[#allocation7 + $0x1d0] sm:$0xff]
    %v127 = vld [vmem:[#allocation7 + $0x1d8] sm:$0xff]
    %v128 = vld [vmem:[#allocation7 + $0x1e0] sm:$0xff]
    %v129 = vld [vmem:[#allocation7 + $0x1e8] sm:$0xff]
    %v130 = vld [vmem:[#allocation7 + $0x1f0] sm:$0xff]
    %v131 = vld [vmem:[#allocation7 + $0x1f8] sm:$0xff]
    %v132 = vld [vmem:[#allocation7 + $0x200] sm:$0xff]
    %v133 = vld [vmem:[#allocation7 + $0x208] sm:$0xff]
    %v134 = vld [vmem:[#allocation7 + $0x210] sm:$0xff]
    %v135 = vld [vmem:[#allocation7 + $0x218] sm:$0xff]
    %v136 = vld [vmem:[#allocation7 + $0x220] sm:$0xff]
    %v137 = vld [vmem:[#allocation7 + $0x228] sm:$0xff]
    %v138 = vld [vmem:[#allocation7 + $0x230] sm:$0xff]
    %v139 = vld [vmem:[#allocation7 + $0x238] sm:$0xff]
    %v140 = vld [vmem:[#allocation7 + $0x240] sm:$0xff]
    %v141 = vld [vmem:[#allocation7 + $0x248] sm:$0xff]
    %v142 = vld [vmem:[#allocation7 + $0x250] sm:$0xff]
    %v143 = vld [vmem:[#allocation7 + $0x258] sm:$0xff]
    %v144 = vld [vmem:[#allocation7 + $0x260] sm:$0xff]
    %v145 = vld [vmem:[#allocation7 + $0x268] sm:$0xff]
    %v146 = vld [vmem:[#allocation7 + $0x270] sm:$0xff]
    %v147 = vld [vmem:[#allocation7 + $0x278] sm:$0xff]
    %v148 = vld [vmem:[#allocation7 + $0x280] sm:$0xff]
    %v149 = vld [vmem:[#allocation7 + $0x288] sm:$0xff]
    %v150 = vld [vmem:[#allocation7 + $0x290] sm:$0xff]
    %v151 = vld [vmem:[#allocation7 + $0x298] sm:$0xff]
    %v152 = vld [vmem:[#allocation7 + $0x2a0] sm:$0xff]
    %v153 = vld [vmem:[#allocation7 + $0x2a8] sm:$0xff]
    %v154 = vld [vmem:[#allocation7 + $0x2b0] sm:$0xff]
    %v155 = vld [vmem:[#allocation7 + $0x2b8] sm:$0xff]
    %v156 = vld [vmem:[#allocation7 + $0x2c0] sm:$0xff]
    %v157 = vld [vmem:[#allocation7 + $0x2c8] sm:$0xff]
    %v158 = vld [vmem:[#allocation7 + $0x2d0] sm:$0xff]
    %v159 = vld [vmem:[#allocation7 + $0x2d8] sm:$0xff]
    %v160 = vld [vmem:[#allocation7 + $0x2e0] sm:$0xff]
    %v161 = vld [vmem:[#allocation7 + $0x2e8] sm:$0xff]
    %v162 = vld [vmem:[#allocation7 + $0x2f0] sm:$0xff]
    %v163 = vld [vmem:[#allocation7 + $0x2f8] sm:$0xff]
    %v164 = vld [vmem:[#allocation7 + $0x300] sm:$0xff]
    %v165 = vld [vmem:[#allocation7 + $0x308] sm:$0xff]
    %v166 = vld [vmem:[#allocation7 + $0x310] sm:$0xff]
    %v167 = vld [vmem:[#allocation7 + $0x318] sm:$0xff]
    %v168 = vld [vmem:[#allocation7 + $0x320] sm:$0xff]
    %v169 = vld [vmem:[#allocation7 + $0x328] sm:$0xff]
    %v170 = vld [vmem:[#allocation7 + $0x330] sm:$0xff]
    %v171 = vld [vmem:[#allocation7 + $0x338] sm:$0xff]
    %v172 = vld [vmem:[#allocation7 + $0x340] sm:$0xff]
    %v173 = vld [vmem:[#allocation7 + $0x348] sm:$0xff]
    %v174 = vld [vmem:[#allocation7 + $0x350] sm:$0xff]
    %v175 = vld [vmem:[#allocation7 + $0x358] sm:$0xff]
    %v176 = vld [vmem:[#allocation7 + $0x360] sm:$0xff]
    %v177 = vld [vmem:[#allocation7 + $0x368] sm:$0xff]
    %v178 = vld [vmem:[#allocation7 + $0x370] sm:$0xff]
    %v179 = vld [vmem:[#allocation7 + $0x378] sm:$0xff]
    %v180 = vld [vmem:[#allocation7 + $0x380] sm:$0xff]
    %v181 = vld [vmem:[#allocation7 + $0x388] sm:$0xff]
    %v182 = vld [vmem:[#allocation7 + $0x390] sm:$0xff]
    %v183 = vld [vmem:[#allocation7 + $0x398] sm:$0xff]
    %v184 = vld [vmem:[#allocation7 + $0x3a0] sm:$0xff]
    %v185 = vld [vmem:[#allocation7 + $0x3a8] sm:$0xff]
    %v186 = vld [vmem:[#allocation7 + $0x3b0] sm:$0xff]
    %v187 = vld [vmem:[#allocation7 + $0x3b8] sm:$0xff]
    %v188 = vld [vmem:[#allocation7 + $0x3c0] sm:$0xff]
    %v189 = vld [vmem:[#allocation7 + $0x3c8] sm:$0xff]
    %v190 = vld [vmem:[#allocation7 + $0x3d0] sm:$0xff]
    %v191 = vld [vmem:[#allocation7 + $0x3d8] sm:$0xff]
    %v192 = vld [vmem:[#allocation7 + $0x3e0] sm:$0xff]
    %v193 = vld [vmem:[#allocation7 + $0x3e8] sm:$0xff]
    %v194 = vld [vmem:[#allocation7 + $0x3f0] sm:$0xff]
    %v195 = vld [vmem:[#allocation7 + $0x3f8] sm:$0xff]
    %v196 = vld [vmem:[#allocation7 + $0x400] sm:$0xff]
    %v197 = vld [vmem:[#allocation7 + $0x408] sm:$0xff]
    %v198 = vld [vmem:[#allocation7 + $0x410] sm:$0xff]
    %v199 = vld [vmem:[#allocation7 + $0x418] sm:$0xff]
    %v200 = vld [vmem:[#allocation7 + $0x420] sm:$0xff]
    %v201 = vld [vmem:[#allocation7 + $0x428] sm:$0xff]
    %v202 = vld [vmem:[#allocation7 + $0x430] sm:$0xff]
    %v203 = vld [vmem:[#allocation7 + $0x438] sm:$0xff]
    %v204 = vld [vmem:[#allocation7 + $0x440] sm:$0xff]
    %v205 = vld [vmem:[#allocation7 + $0x448] sm:$0xff]
    %v206 = vld [vmem:[#allocation7 + $0x450] sm:$0xff]
    %v207 = vld [vmem:[#allocation7 + $0x458] sm:$0xff]
    %v208 = vld [vmem:[#allocation7 + $0x460] sm:$0xff]
    %v209 = vld [vmem:[#allocation7 + $0x468] sm:$0xff]
    %v210 = vld [vmem:[#allocation7 + $0x470] sm:$0xff]
    %v211 = vld [vmem:[#allocation7 + $0x478] sm:$0xff]
    %v212 = vand.u32 %v113, 4294901760
    %213 = vmatpush.msra.mxu0 %v212
    %v214 = vand.u32 %v110, 4294901760
    %215 = vmatpush.msra.mxu0 %v214
    %v216 = vand.u32 %v107, 4294901760
    %217 = vmatpush.msra.mxu0 %v216
    %v218 = vand.u32 %v104, 4294901760
    %219 = vmatpush.msra.mxu0 %v218
    %v220 = vand.u32 %v101, 4294901760
    %221 = vmatpush.msra.mxu0 %v220
    %v222 = vand.u32 %v98, 4294901760
    %223 = vmatpush.msra.mxu0 %v222
    %v224 = vand.u32 %v95, 4294901760
    %225 = vmatpush.msra.mxu0 %v224
    %v226 = vand.u32 %v92, 4294901760
    %227 = vmatpush.msra.mxu0 %v226
    %v228 = vand.u32 %v89, 4294901760
    %229 = vmatpush.msra.mxu0 %v228
    %v230 = vand.u32 %v86, 4294901760
    %231 = vmatpush.msra.mxu0 %v230
    %v232 = vand.u32 %v83, 4294901760
    %233 = vmatpush.msra.mxu0 %v232
    %v234 = vand.u32 %v80, 4294901760
    %235 = vmatpush.msra.mxu0 %v234
    %v236 = vand.u32 %v77, 4294901760
    %237 = vmatpush.msra.mxu0 %v236
    %v238 = vand.u32 %v74, 4294901760
    %239 = vmatpush.msra.mxu0 %v238
    %v240 = vand.u32 %v71, 4294901760
    %241 = vmatpush.msra.mxu0 %v240
    %v242 = vand.u32 %v68, 4294901760
    %243 = vmatpush.msra.mxu0 %v242
    %v244 = vand.u32 %v62, 4294901760
    %v245 = vsub.f32 %v62, %v244
    %v246 = vand.u32 %v245, 4294901760
    %v247 = vsub.f32 %v245, %v246
    %v248 = vand.u32 %v247, 4294901760
    %249 = vmatmul.f32.gmra.mxu0 %v248
    %v250 = vpop.f32.mrf.mxu0
    %v251 = vadd.f32 0.0, %v250
    %v252 = vand.u32 %v65, 4294901760
    %v253 = vsub.f32 %v65, %v252
    %v254 = vand.u32 %v253, 4294901760
    %v255 = vsub.f32 %v253, %v254
    %v256 = vand.u32 %v255, 4294901760
    %257 = vmatmul.f32.gmra.mxu0 %v256
    %v258 = vpop.f32.mrf.mxu0
    %v259 = vadd.f32 0.0, %v258
    %260 = vdwg.mxu0
    %v261 = vand.u32 %v113, 4294901760
    %v262 = vsub.f32 %v113, %v261
    %v263 = vand.u32 %v262, 4294901760
    %v264 = vsub.f32 %v262, %v263
    %v265 = vand.u32 %v264, 4294901760
    %266 = vmatpush.msra.mxu0 %v265
    %v267 = vand.u32 %v110, 4294901760
    %v268 = vsub.f32 %v110, %v267
    %v269 = vand.u32 %v268, 4294901760
    %v270 = vsub.f32 %v268, %v269
    %v271 = vand.u32 %v270, 4294901760
    %272 = vmatpush.msra.mxu0 %v271
    %v273 = vand.u32 %v107, 4294901760
    %v274 = vsub.f32 %v107, %v273
    %v275 = vand.u32 %v274, 4294901760
    %v276 = vsub.f32 %v274, %v275
    %v277 = vand.u32 %v276, 4294901760
    %278 = vmatpush.msra.mxu0 %v277
    %v279 = vand.u32 %v104, 4294901760
    %v280 = vsub.f32 %v104, %v279
    %v281 = vand.u32 %v280, 4294901760
    %v282 = vsub.f32 %v280, %v281
    %v283 = vand.u32 %v282, 4294901760
    %284 = vmatpush.msra.mxu0 %v283
    %v285 = vand.u32 %v101, 4294901760
    %v286 = vsub.f32 %v101, %v285
    %v287 = vand.u32 %v286, 4294901760
    %v288 = vsub.f32 %v286, %v287
    %v289 = vand.u32 %v288, 4294901760
    %290 = vmatpush.msra.mxu0 %v289
    %v291 = vand.u32 %v98, 4294901760
    %v292 = vsub.f32 %v98, %v291
    %v293 = vand.u32 %v292, 4294901760
    %v294 = vsub.f32 %v292, %v293
    %v295 = vand.u32 %v294, 4294901760
    %296 = vmatpush.msra.mxu0 %v295
    %v297 = vand.u32 %v95, 4294901760
    %v298 = vsub.f32 %v95, %v297
    %v299 = vand.u32 %v298, 4294901760
    %v300 = vsub.f32 %v298, %v299
    %v301 = vand.u32 %v300, 4294901760
    %302 = vmatpush.msra.mxu0 %v301
    %v303 = vand.u32 %v92, 4294901760
    %v304 = vsub.f32 %v92, %v303
    %v305 = vand.u32 %v304, 4294901760
    %v306 = vsub.f32 %v304, %v305
    %v307 = vand.u32 %v306, 4294901760
    %308 = vmatpush.msra.mxu0 %v307
    %v309 = vand.u32 %v89, 4294901760
    %v310 = vsub.f32 %v89, %v309
    %v311 = vand.u32 %v310, 4294901760
    %v312 = vsub.f32 %v310, %v311
    %v313 = vand.u32 %v312, 4294901760
    %314 = vmatpush.msra.mxu0 %v313
    %v315 = vand.u32 %v86, 4294901760
    %v316 = vsub.f32 %v86, %v315
    %v317 = vand.u32 %v316, 4294901760
    %v318 = vsub.f32 %v316, %v317
    %v319 = vand.u32 %v318, 4294901760
    %320 = vmatpush.msra.mxu0 %v319
    %v321 = vand.u32 %v83, 4294901760
    %v322 = vsub.f32 %v83, %v321
    %v323 = vand.u32 %v322, 4294901760
    %v324 = vsub.f32 %v322, %v323
    %v325 = vand.u32 %v324, 4294901760
    %326 = vmatpush.msra.mxu0 %v325
    %v327 = vand.u32 %v80, 4294901760
    %v328 = vsub.f32 %v80, %v327
    %v329 = vand.u32 %v328, 4294901760
    %v330 = vsub.f32 %v328, %v329
    %v331 = vand.u32 %v330, 4294901760
    %332 = vmatpush.msra.mxu0 %v331
    %v333 = vand.u32 %v77, 4294901760
    %v334 = vsub.f32 %v77, %v333
    %v335 = vand.u32 %v334, 4294901760
    %v336 = vsub.f32 %v334, %v335
    %v337 = vand.u32 %v336, 4294901760
    %338 = vmatpush.msra.mxu0 %v337
    %v339 = vand.u32 %v74, 4294901760
    %v340 = vsub.f32 %v74, %v339
    %v341 = vand.u32 %v340, 4294901760
    %v342 = vsub.f32 %v340, %v341
    %v343 = vand.u32 %v342, 4294901760
    %344 = vmatpush.msra.mxu0 %v343
    %v345 = vand.u32 %v71, 4294901760
    %v346 = vsub.f32 %v71, %v345
    %v347 = vand.u32 %v346, 4294901760
    %v348 = vsub.f32 %v346, %v347
    %v349 = vand.u32 %v348, 4294901760
    %350 = vmatpush.msra.mxu0 %v349
    %v351 = vand.u32 %v68, 4294901760
    %v352 = vsub.f32 %v68, %v351
    %v353 = vand.u32 %v352, 4294901760
    %v354 = vsub.f32 %v352, %v353
    %v355 = vand.u32 %v354, 4294901760
    %356 = vmatpush.msra.mxu0 %v355
    %v357 = vand.u32 %v62, 4294901760
    %358 = vmatmul.f32.gmra.mxu0 %v357
    %v359 = vpop.f32.mrf.mxu0
    %v360 = vadd.f32 %v251, %v359
    %v361 = vand.u32 %v65, 4294901760
    %362 = vmatmul.f32.gmra.mxu0 %v361
    %v363 = vpop.f32.mrf.mxu0
    %v364 = vadd.f32 %v259, %v363
    %365 = vdwg.mxu0
    %v366 = vand.u32 %v113, 4294901760
    %v367 = vsub.f32 %v113, %v366
    %368 = vmatpush.msra.mxu0 %v367
    %v369 = vand.u32 %v110, 4294901760
    %v370 = vsub.f32 %v110, %v369
    %371 = vmatpush.msra.mxu0 %v370
    %v372 = vand.u32 %v107, 4294901760
    %v373 = vsub.f32 %v107, %v372
    %374 = vmatpush.msra.mxu0 %v373
    %v375 = vand.u32 %v104, 4294901760
    %v376 = vsub.f32 %v104, %v375
    %377 = vmatpush.msra.mxu0 %v376
    %v378 = vand.u32 %v101, 4294901760
    %v379 = vsub.f32 %v101, %v378
    %380 = vmatpush.msra.mxu0 %v379
    %v381 = vand.u32 %v98, 4294901760
    %v382 = vsub.f32 %v98, %v381
    %383 = vmatpush.msra.mxu0 %v382
    %v384 = vand.u32 %v95, 4294901760
    %v385 = vsub.f32 %v95, %v384
    %386 = vmatpush.msra.mxu0 %v385
    %v387 = vand.u32 %v92, 4294901760
    %v388 = vsub.f32 %v92, %v387
    %389 = vmatpush.msra.mxu0 %v388
    %v390 = vand.u32 %v89, 4294901760
    %v391 = vsub.f32 %v89, %v390
    %392 = vmatpush.msra.mxu0 %v391
    %v393 = vand.u32 %v86, 4294901760
    %v394 = vsub.f32 %v86, %v393
    %395 = vmatpush.msra.mxu0 %v394
    %v396 = vand.u32 %v83, 4294901760
    %v397 = vsub.f32 %v83, %v396
    %398 = vmatpush.msra.mxu0 %v397
    %v399 = vand.u32 %v80, 4294901760
    %v400 = vsub.f32 %v80, %v399
    %401 = vmatpush.msra.mxu0 %v400
    %v402 = vand.u32 %v77, 4294901760
    %v403 = vsub.f32 %v77, %v402
    %404 = vmatpush.msra.mxu0 %v403
    %v405 = vand.u32 %v74, 4294901760
    %v406 = vsub.f32 %v74, %v405
    %407 = vmatpush.msra.mxu0 %v406
    %v408 = vand.u32 %v71, 4294901760
    %v409 = vsub.f32 %v71, %v408
    %410 = vmatpush.msra.mxu0 %v409
    %v411 = vand.u32 %v68, 4294901760
    %v412 = vsub.f32 %v68, %v411
    %413 = vmatpush.msra.mxu0 %v412
    %v414 = vand.u32 %v62, 4294901760
    %v415 = vsub.f32 %v62, %v414
    %416 = vmatmul.f32.gmra.mxu0 %v415
    %v417 = vpop.f32.mrf.mxu0
    %v418 = vadd.f32 %v360, %v417
    %v419 = vand.u32 %v65, 4294901760
    %v420 = vsub.f32 %v65, %v419
    %421 = vmatmul.f32.gmra.mxu0 %v420
    %v422 = vpop.f32.mrf.mxu0
    %v423 = vadd.f32 %v364, %v422
    %424 = vdwg.mxu0
    %v425 = vand.u32 %v113, 4294901760
    %426 = vmatpush.msra.mxu0 %v425
    %v427 = vand.u32 %v110, 4294901760
    %428 = vmatpush.msra.mxu0 %v427
    %v429 = vand.u32 %v107, 4294901760
    %430 = vmatpush.msra.mxu0 %v429
    %v431 = vand.u32 %v104, 4294901760
    %432 = vmatpush.msra.mxu0 %v431
    %v433 = vand.u32 %v101, 4294901760
    %434 = vmatpush.msra.mxu0 %v433
    %v435 = vand.u32 %v98, 4294901760
    %436 = vmatpush.msra.mxu0 %v435
    %v437 = vand.u32 %v95, 4294901760
    %438 = vmatpush.msra.mxu0 %v437
    %v439 = vand.u32 %v92, 4294901760
    %440 = vmatpush.msra.mxu0 %v439
    %v441 = vand.u32 %v89, 4294901760
    %442 = vmatpush.msra.mxu0 %v441
    %v443 = vand.u32 %v86, 4294901760
    %444 = vmatpush.msra.mxu0 %v443
    %v445 = vand.u32 %v83, 4294901760
    %446 = vmatpush.msra.mxu0 %v445
    %v447 = vand.u32 %v80, 4294901760
    %448 = vmatpush.msra.mxu0 %v447
    %v449 = vand.u32 %v77, 4294901760
    %450 = vmatpush.msra.mxu0 %v449
    %v451 = vand.u32 %v74, 4294901760
    %452 = vmatpush.msra.mxu0 %v451
    %v453 = vand.u32 %v71, 4294901760
    %454 = vmatpush.msra.mxu0 %v453
    %v455 = vand.u32 %v68, 4294901760
    %456 = vmatpush.msra.mxu0 %v455
    %v457 = vand.u32 %v62, 4294901760
    %v458 = vsub.f32 %v62, %v457
    %v459 = vand.u32 %v458, 4294901760
    %460 = vmatmul.f32.gmra.mxu0 %v459
    %v461 = vpop.f32.mrf.mxu0
    %v462 = vadd.f32 %v418, %v461
    %v463 = vand.u32 %v65, 4294901760
    %v464 = vsub.f32 %v65, %v463
    %v465 = vand.u32 %v464, 4294901760
    %466 = vmatmul.f32.gmra.mxu0 %v465
    %v467 = vpop.f32.mrf.mxu0
    %v468 = vadd.f32 %v423, %v467
    %469 = vdwg.mxu0
    %v470 = vand.u32 %v113, 4294901760
    %v471 = vsub.f32 %v113, %v470
    %v472 = vand.u32 %v471, 4294901760
    %473 = vmatpush.msra.mxu0 %v472
    %v474 = vand.u32 %v110, 4294901760
    %v475 = vsub.f32 %v110, %v474
    %v476 = vand.u32 %v475, 4294901760
    %477 = vmatpush.msra.mxu0 %v476
    %v478 = vand.u32 %v107, 4294901760
    %v479 = vsub.f32 %v107, %v478
    %v480 = vand.u32 %v479, 4294901760
    %481 = vmatpush.msra.mxu0 %v480
    %v482 = vand.u32 %v104, 4294901760
    %v483 = vsub.f32 %v104, %v482
    %v484 = vand.u32 %v483, 4294901760
    %485 = vmatpush.msra.mxu0 %v484
    %v486 = vand.u32 %v101, 4294901760
    %v487 = vsub.f32 %v101, %v486
    %v488 = vand.u32 %v487, 4294901760
    %489 = vmatpush.msra.mxu0 %v488
    %v490 = vand.u32 %v98, 4294901760
    %v491 = vsub.f32 %v98, %v490
    %v492 = vand.u32 %v491, 4294901760
    %493 = vmatpush.msra.mxu0 %v492
    %v494 = vand.u32 %v95, 4294901760
    %v495 = vsub.f32 %v95, %v494
    %v496 = vand.u32 %v495, 4294901760
    %497 = vmatpush.msra.mxu0 %v496
    %v498 = vand.u32 %v92, 4294901760
    %v499 = vsub.f32 %v92, %v498
    %v500 = vand.u32 %v499, 4294901760
    %501 = vmatpush.msra.mxu0 %v500
    %v502 = vand.u32 %v89, 4294901760
    %v503 = vsub.f32 %v89, %v502
    %v504 = vand.u32 %v503, 4294901760
    %505 = vmatpush.msra.mxu0 %v504
    %v506 = vand.u32 %v86, 4294901760
    %v507 = vsub.f32 %v86, %v506
    %v508 = vand.u32 %v507, 4294901760
    %509 = vmatpush.msra.mxu0 %v508
    %v510 = vand.u32 %v83, 4294901760
    %v511 = vsub.f32 %v83, %v510
    %v512 = vand.u32 %v511, 4294901760
    %513 = vmatpush.msra.mxu0 %v512
    %v514 = vand.u32 %v80, 4294901760
    %v515 = vsub.f32 %v80, %v514
    %v516 = vand.u32 %v515, 4294901760
    %517 = vmatpush.msra.mxu0 %v516
    %v518 = vand.u32 %v77, 4294901760
    %v519 = vsub.f32 %v77, %v518
    %v520 = vand.u32 %v519, 4294901760
    %521 = vmatpush.msra.mxu0 %v520
    %v522 = vand.u32 %v74, 4294901760
    %v523 = vsub.f32 %v74, %v522
    %v524 = vand.u32 %v523, 4294901760
    %525 = vmatpush.msra.mxu0 %v524
    %v526 = vand.u32 %v71, 4294901760
    %v527 = vsub.f32 %v71, %v526
    %v528 = vand.u32 %v527, 4294901760
    %529 = vmatpush.msra.mxu0 %v528
    %v530 = vand.u32 %v68, 4294901760
    %v531 = vsub.f32 %v68, %v530
    %v532 = vand.u32 %v531, 4294901760
    %533 = vmatpush.msra.mxu0 %v532
    %v534 = vand.u32 %v62, 4294901760
    %535 = vmatmul.f32.gmra.mxu0 %v534
    %v536 = vpop.f32.mrf.mxu0
    %v537 = vadd.f32 %v462, %v536
    %v538 = vand.u32 %v65, 4294901760
    %539 = vmatmul.f32.gmra.mxu0 %v538
    %v540 = vpop.f32.mrf.mxu0
    %v541 = vadd.f32 %v468, %v540
    %542 = vdwg.mxu0
    %v543 = vand.u32 %v113, 4294901760
    %544 = vmatpush.msra.mxu0 %v543
    %v545 = vand.u32 %v110, 4294901760
    %546 = vmatpush.msra.mxu0 %v545
    %v547 = vand.u32 %v107, 4294901760
    %548 = vmatpush.msra.mxu0 %v547
    %v549 = vand.u32 %v104, 4294901760
    %550 = vmatpush.msra.mxu0 %v549
    %v551 = vand.u32 %v101, 4294901760
    %552 = vmatpush.msra.mxu0 %v551
    %v553 = vand.u32 %v98, 4294901760
    %554 = vmatpush.msra.mxu0 %v553
    %v555 = vand.u32 %v95, 4294901760
    %556 = vmatpush.msra.mxu0 %v555
    %v557 = vand.u32 %v92, 4294901760
    %558 = vmatpush.msra.mxu0 %v557
    %v559 = vand.u32 %v89, 4294901760
    %560 = vmatpush.msra.mxu0 %v559
    %v561 = vand.u32 %v86, 4294901760
    %562 = vmatpush.msra.mxu0 %v561
    %v563 = vand.u32 %v83, 4294901760
    %564 = vmatpush.msra.mxu0 %v563
    %v565 = vand.u32 %v80, 4294901760
    %566 = vmatpush.msra.mxu0 %v565
    %v567 = vand.u32 %v77, 4294901760
    %568 = vmatpush.msra.mxu0 %v567
    %v569 = vand.u32 %v74, 4294901760
    %570 = vmatpush.msra.mxu0 %v569
    %v571 = vand.u32 %v71, 4294901760
    %572 = vmatpush.msra.mxu0 %v571
    %v573 = vand.u32 %v68, 4294901760
    %574 = vmatpush.msra.mxu0 %v573
    %v575 = vand.u32 %v62, 4294901760
    %576 = vmatmul.f32.gmra.mxu0 %v575
    %v577 = vpop.f32.mrf.mxu0
    %v578 = vadd.f32 %v537, %v577
    %v579 = vand.u32 %v65, 4294901760
    %580 = vmatmul.f32.gmra.mxu0 %v579
    %v581 = vpop.f32.mrf.mxu0
    %v582 = vadd.f32 %v541, %v581
    %583 = vdwg.mxu0
    %v584 = vand.u32 %v161, 4294901760
    %585 = vmatpush.msra.mxu0 %v584
    %v586 = vand.u32 %v158, 4294901760
    %587 = vmatpush.msra.mxu0 %v586
    %v588 = vand.u32 %v155, 4294901760
    %589 = vmatpush.msra.mxu0 %v588
    %v590 = vand.u32 %v152, 4294901760
    %591 = vmatpush.msra.mxu0 %v590
    %v592 = vand.u32 %v149, 4294901760
    %593 = vmatpush.msra.mxu0 %v592
    %v594 = vand.u32 %v146, 4294901760
    %595 = vmatpush.msra.mxu0 %v594
    %v596 = vand.u32 %v143, 4294901760
    %597 = vmatpush.msra.mxu0 %v596
    %v598 = vand.u32 %v140, 4294901760
    %599 = vmatpush.msra.mxu0 %v598
    %v600 = vand.u32 %v137, 4294901760
    %601 = vmatpush.msra.mxu0 %v600
    %v602 = vand.u32 %v134, 4294901760
    %603 = vmatpush.msra.mxu0 %v602
    %v604 = vand.u32 %v131, 4294901760
    %605 = vmatpush.msra.mxu0 %v604
    %v606 = vand.u32 %v128, 4294901760
    %607 = vmatpush.msra.mxu0 %v606
    %v608 = vand.u32 %v125, 4294901760
    %609 = vmatpush.msra.mxu0 %v608
    %v610 = vand.u32 %v122, 4294901760
    %611 = vmatpush.msra.mxu0 %v610
    %v612 = vand.u32 %v119, 4294901760
    %613 = vmatpush.msra.mxu0 %v612
    %v614 = vand.u32 %v116, 4294901760
    %615 = vmatpush.msra.mxu0 %v614
    %v616 = vand.u32 %v63, 4294901760
    %v617 = vsub.f32 %v63, %v616
    %v618 = vand.u32 %v617, 4294901760
    %v619 = vsub.f32 %v617, %v618
    %v620 = vand.u32 %v619, 4294901760
    %621 = vmatmul.f32.gmra.mxu0 %v620
    %v622 = vpop.f32.mrf.mxu0
    %v623 = vadd.f32 %v578, %v622
    %v624 = vand.u32 %v66, 4294901760
    %v625 = vsub.f32 %v66, %v624
    %v626 = vand.u32 %v625, 4294901760
    %v627 = vsub.f32 %v625, %v626
    %v628 = vand.u32 %v627, 4294901760
    %629 = vmatmul.f32.gmra.mxu0 %v628
    %v630 = vpop.f32.mrf.mxu0
    %v631 = vadd.f32 %v582, %v630
    %632 = vdwg.mxu0
    %v633 = vand.u32 %v161, 4294901760
    %v634 = vsub.f32 %v161, %v633
    %v635 = vand.u32 %v634, 4294901760
    %v636 = vsub.f32 %v634, %v635
    %v637 = vand.u32 %v636, 4294901760
    %638 = vmatpush.msra.mxu0 %v637
    %v639 = vand.u32 %v158, 4294901760
    %v640 = vsub.f32 %v158, %v639
    %v641 = vand.u32 %v640, 4294901760
    %v642 = vsub.f32 %v640, %v641
    %v643 = vand.u32 %v642, 4294901760
    %644 = vmatpush.msra.mxu0 %v643
    %v645 = vand.u32 %v155, 4294901760
    %v646 = vsub.f32 %v155, %v645
    %v647 = vand.u32 %v646, 4294901760
    %v648 = vsub.f32 %v646, %v647
    %v649 = vand.u32 %v648, 4294901760
    %650 = vmatpush.msra.mxu0 %v649
    %v651 = vand.u32 %v152, 4294901760
    %v652 = vsub.f32 %v152, %v651
    %v653 = vand.u32 %v652, 4294901760
    %v654 = vsub.f32 %v652, %v653
    %v655 = vand.u32 %v654, 4294901760
    %656 = vmatpush.msra.mxu0 %v655
    %v657 = vand.u32 %v149, 4294901760
    %v658 = vsub.f32 %v149, %v657
    %v659 = vand.u32 %v658, 4294901760
    %v660 = vsub.f32 %v658, %v659
    %v661 = vand.u32 %v660, 4294901760
    %662 = vmatpush.msra.mxu0 %v661
    %v663 = vand.u32 %v146, 4294901760
    %v664 = vsub.f32 %v146, %v663
    %v665 = vand.u32 %v664, 4294901760
    %v666 = vsub.f32 %v664, %v665
    %v667 = vand.u32 %v666, 4294901760
    %668 = vmatpush.msra.mxu0 %v667
    %v669 = vand.u32 %v143, 4294901760
    %v670 = vsub.f32 %v143, %v669
    %v671 = vand.u32 %v670, 4294901760
    %v672 = vsub.f32 %v670, %v671
    %v673 = vand.u32 %v672, 4294901760
    %674 = vmatpush.msra.mxu0 %v673
    %v675 = vand.u32 %v140, 4294901760
    %v676 = vsub.f32 %v140, %v675
    %v677 = vand.u32 %v676, 4294901760
    %v678 = vsub.f32 %v676, %v677
    %v679 = vand.u32 %v678, 4294901760
    %680 = vmatpush.msra.mxu0 %v679
    %v681 = vand.u32 %v137, 4294901760
    %v682 = vsub.f32 %v137, %v681
    %v683 = vand.u32 %v682, 4294901760
    %v684 = vsub.f32 %v682, %v683
    %v685 = vand.u32 %v684, 4294901760
    %686 = vmatpush.msra.mxu0 %v685
    %v687 = vand.u32 %v134, 4294901760
    %v688 = vsub.f32 %v134, %v687
    %v689 = vand.u32 %v688, 4294901760
    %v690 = vsub.f32 %v688, %v689
    %v691 = vand.u32 %v690, 4294901760
    %692 = vmatpush.msra.mxu0 %v691
    %v693 = vand.u32 %v131, 4294901760
    %v694 = vsub.f32 %v131, %v693
    %v695 = vand.u32 %v694, 4294901760
    %v696 = vsub.f32 %v694, %v695
    %v697 = vand.u32 %v696, 4294901760
    %698 = vmatpush.msra.mxu0 %v697
    %v699 = vand.u32 %v128, 4294901760
    %v700 = vsub.f32 %v128, %v699
    %v701 = vand.u32 %v700, 4294901760
    %v702 = vsub.f32 %v700, %v701
    %v703 = vand.u32 %v702, 4294901760
    %704 = vmatpush.msra.mxu0 %v703
    %v705 = vand.u32 %v125, 4294901760
    %v706 = vsub.f32 %v125, %v705
    %v707 = vand.u32 %v706, 4294901760
    %v708 = vsub.f32 %v706, %v707
    %v709 = vand.u32 %v708, 4294901760
    %710 = vmatpush.msra.mxu0 %v709
    %v711 = vand.u32 %v122, 4294901760
    %v712 = vsub.f32 %v122, %v711
    %v713 = vand.u32 %v712, 4294901760
    %v714 = vsub.f32 %v712, %v713
    %v715 = vand.u32 %v714, 4294901760
    %716 = vmatpush.msra.mxu0 %v715
    %v717 = vand.u32 %v119, 4294901760
    %v718 = vsub.f32 %v119, %v717
    %v719 = vand.u32 %v718, 4294901760
    %v720 = vsub.f32 %v718, %v719
    %v721 = vand.u32 %v720, 4294901760
    %722 = vmatpush.msra.mxu0 %v721
    %v723 = vand.u32 %v116, 4294901760
    %v724 = vsub.f32 %v116, %v723
    %v725 = vand.u32 %v724, 4294901760
    %v726 = vsub.f32 %v724, %v725
    %v727 = vand.u32 %v726, 4294901760
    %728 = vmatpush.msra.mxu0 %v727
    %v729 = vand.u32 %v63, 4294901760
    %730 = vmatmul.f32.gmra.mxu0 %v729
    %v731 = vpop.f32.mrf.mxu0
    %v732 = vadd.f32 %v623, %v731
    %v733 = vand.u32 %v66, 4294901760
    %734 = vmatmul.f32.gmra.mxu0 %v733
    %v735 = vpop.f32.mrf.mxu0
    %v736 = vadd.f32 %v631, %v735
    %737 = vdwg.mxu0
    %v738 = vand.u32 %v161, 4294901760
    %v739 = vsub.f32 %v161, %v738
    %740 = vmatpush.msra.mxu0 %v739
    %v741 = vand.u32 %v158, 4294901760
    %v742 = vsub.f32 %v158, %v741
    %743 = vmatpush.msra.mxu0 %v742
    %v744 = vand.u32 %v155, 4294901760
    %v745 = vsub.f32 %v155, %v744
    %746 = vmatpush.msra.mxu0 %v745
    %v747 = vand.u32 %v152, 4294901760
    %v748 = vsub.f32 %v152, %v747
    %749 = vmatpush.msra.mxu0 %v748
    %v750 = vand.u32 %v149, 4294901760
    %v751 = vsub.f32 %v149, %v750
    %752 = vmatpush.msra.mxu0 %v751
    %v753 = vand.u32 %v146, 4294901760
    %v754 = vsub.f32 %v146, %v753
    %755 = vmatpush.msra.mxu0 %v754
    %v756 = vand.u32 %v143, 4294901760
    %v757 = vsub.f32 %v143, %v756
    %758 = vmatpush.msra.mxu0 %v757
    %v759 = vand.u32 %v140, 4294901760
    %v760 = vsub.f32 %v140, %v759
    %761 = vmatpush.msra.mxu0 %v760
    %v762 = vand.u32 %v137, 4294901760
    %v763 = vsub.f32 %v137, %v762
    %764 = vmatpush.msra.mxu0 %v763
    %v765 = vand.u32 %v134, 4294901760
    %v766 = vsub.f32 %v134, %v765
    %767 = vmatpush.msra.mxu0 %v766
    %v768 = vand.u32 %v131, 4294901760
    %v769 = vsub.f32 %v131, %v768
    %770 = vmatpush.msra.mxu0 %v769
    %v771 = vand.u32 %v128, 4294901760
    %v772 = vsub.f32 %v128, %v771
    %773 = vmatpush.msra.mxu0 %v772
    %v774 = vand.u32 %v125, 4294901760
    %v775 = vsub.f32 %v125, %v774
    %776 = vmatpush.msra.mxu0 %v775
    %v777 = vand.u32 %v122, 4294901760
    %v778 = vsub.f32 %v122, %v777
    %779 = vmatpush.msra.mxu0 %v778
    %v780 = vand.u32 %v119, 4294901760
    %v781 = vsub.f32 %v119, %v780
    %782 = vmatpush.msra.mxu0 %v781
    %v783 = vand.u32 %v116, 4294901760
    %v784 = vsub.f32 %v116, %v783
    %785 = vmatpush.msra.mxu0 %v784
    %v786 = vand.u32 %v63, 4294901760
    %v787 = vsub.f32 %v63, %v786
    %788 = vmatmul.f32.gmra.mxu0 %v787
    %v789 = vpop.f32.mrf.mxu0
    %v790 = vadd.f32 %v732, %v789
    %v791 = vand.u32 %v66, 4294901760
    %v792 = vsub.f32 %v66, %v791
    %793 = vmatmul.f32.gmra.mxu0 %v792
    %v794 = vpop.f32.mrf.mxu0
    %v795 = vadd.f32 %v736, %v794
    %796 = vdwg.mxu0
    %v797 = vand.u32 %v161, 4294901760
    %798 = vmatpush.msra.mxu0 %v797
    %v799 = vand.u32 %v158, 4294901760
    %800 = vmatpush.msra.mxu0 %v799
    %v801 = vand.u32 %v155, 4294901760
    %802 = vmatpush.msra.mxu0 %v801
    %v803 = vand.u32 %v152, 4294901760
    %804 = vmatpush.msra.mxu0 %v803
    %v805 = vand.u32 %v149, 4294901760
    %806 = vmatpush.msra.mxu0 %v805
    %v807 = vand.u32 %v146, 4294901760
    %808 = vmatpush.msra.mxu0 %v807
    %v809 = vand.u32 %v143, 4294901760
    %810 = vmatpush.msra.mxu0 %v809
    %v811 = vand.u32 %v140, 4294901760
    %812 = vmatpush.msra.mxu0 %v811
    %v813 = vand.u32 %v137, 4294901760
    %814 = vmatpush.msra.mxu0 %v813
    %v815 = vand.u32 %v134, 4294901760
    %816 = vmatpush.msra.mxu0 %v815
    %v817 = vand.u32 %v131, 4294901760
    %818 = vmatpush.msra.mxu0 %v817
    %v819 = vand.u32 %v128, 4294901760
    %820 = vmatpush.msra.mxu0 %v819
    %v821 = vand.u32 %v125, 4294901760
    %822 = vmatpush.msra.mxu0 %v821
    %v823 = vand.u32 %v122, 4294901760
    %824 = vmatpush.msra.mxu0 %v823
    %v825 = vand.u32 %v119, 4294901760
    %826 = vmatpush.msra.mxu0 %v825
    %v827 = vand.u32 %v116, 4294901760
    %828 = vmatpush.msra.mxu0 %v827
    %v829 = vand.u32 %v63, 4294901760
    %v830 = vsub.f32 %v63, %v829
    %v831 = vand.u32 %v830, 4294901760
    %832 = vmatmul.f32.gmra.mxu0 %v831
    %v833 = vpop.f32.mrf.mxu0
    %v834 = vadd.f32 %v790, %v833
    %v835 = vand.u32 %v66, 4294901760
    %v836 = vsub.f32 %v66, %v835
    %v837 = vand.u32 %v836, 4294901760
    %838 = vmatmul.f32.gmra.mxu0 %v837
    %v839 = vpop.f32.mrf.mxu0
    %v840 = vadd.f32 %v795, %v839
    %841 = vdwg.mxu0
    %v842 = vand.u32 %v161, 4294901760
    %v843 = vsub.f32 %v161, %v842
    %v844 = vand.u32 %v843, 4294901760
    %845 = vmatpush.msra.mxu0 %v844
    %v846 = vand.u32 %v158, 4294901760
    %v847 = vsub.f32 %v158, %v846
    %v848 = vand.u32 %v847, 4294901760
    %849 = vmatpush.msra.mxu0 %v848
    %v850 = vand.u32 %v155, 4294901760
    %v851 = vsub.f32 %v155, %v850
    %v852 = vand.u32 %v851, 4294901760
    %853 = vmatpush.msra.mxu0 %v852
    %v854 = vand.u32 %v152, 4294901760
    %v855 = vsub.f32 %v152, %v854
    %v856 = vand.u32 %v855, 4294901760
    %857 = vmatpush.msra.mxu0 %v856
    %v858 = vand.u32 %v149, 4294901760
    %v859 = vsub.f32 %v149, %v858
    %v860 = vand.u32 %v859, 4294901760
    %861 = vmatpush.msra.mxu0 %v860
    %v862 = vand.u32 %v146, 4294901760
    %v863 = vsub.f32 %v146, %v862
    %v864 = vand.u32 %v863, 4294901760
    %865 = vmatpush.msra.mxu0 %v864
    %v866 = vand.u32 %v143, 4294901760
    %v867 = vsub.f32 %v143, %v866
    %v868 = vand.u32 %v867, 4294901760
    %869 = vmatpush.msra.mxu0 %v868
    %v870 = vand.u32 %v140, 4294901760
    %v871 = vsub.f32 %v140, %v870
    %v872 = vand.u32 %v871, 4294901760
    %873 = vmatpush.msra.mxu0 %v872
    %v874 = vand.u32 %v137, 4294901760
    %v875 = vsub.f32 %v137, %v874
    %v876 = vand.u32 %v875, 4294901760
    %877 = vmatpush.msra.mxu0 %v876
    %v878 = vand.u32 %v134, 4294901760
    %v879 = vsub.f32 %v134, %v878
    %v880 = vand.u32 %v879, 4294901760
    %881 = vmatpush.msra.mxu0 %v880
    %v882 = vand.u32 %v131, 4294901760
    %v883 = vsub.f32 %v131, %v882
    %v884 = vand.u32 %v883, 4294901760
    %885 = vmatpush.msra.mxu0 %v884
    %v886 = vand.u32 %v128, 4294901760
    %v887 = vsub.f32 %v128, %v886
    %v888 = vand.u32 %v887, 4294901760
    %889 = vmatpush.msra.mxu0 %v888
    %v890 = vand.u32 %v125, 4294901760
    %v891 = vsub.f32 %v125, %v890
    %v892 = vand.u32 %v891, 4294901760
    %893 = vmatpush.msra.mxu0 %v892
    %v894 = vand.u32 %v122, 4294901760
    %v895 = vsub.f32 %v122, %v894
    %v896 = vand.u32 %v895, 4294901760
    %897 = vmatpush.msra.mxu0 %v896
    %v898 = vand.u32 %v119, 4294901760
    %v899 = vsub.f32 %v119, %v898
    %v900 = vand.u32 %v899, 4294901760
    %901 = vmatpush.msra.mxu0 %v900
    %v902 = vand.u32 %v116, 4294901760
    %v903 = vsub.f32 %v116, %v902
    %v904 = vand.u32 %v903, 4294901760
    %905 = vmatpush.msra.mxu0 %v904
    %v906 = vand.u32 %v63, 4294901760
    %907 = vmatmul.f32.gmra.mxu0 %v906
    %v908 = vpop.f32.mrf.mxu0
    %v909 = vadd.f32 %v834, %v908
    %v910 = vand.u32 %v66, 4294901760
    %911 = vmatmul.f32.gmra.mxu0 %v910
    %v912 = vpop.f32.mrf.mxu0
    %v913 = vadd.f32 %v840, %v912
    %914 = vdwg.mxu0
    %v915 = vand.u32 %v161, 4294901760
    %916 = vmatpush.msra.mxu0 %v915
    %v917 = vand.u32 %v158, 4294901760
    %918 = vmatpush.msra.mxu0 %v917
    %v919 = vand.u32 %v155, 4294901760
    %920 = vmatpush.msra.mxu0 %v919
    %v921 = vand.u32 %v152, 4294901760
    %922 = vmatpush.msra.mxu0 %v921
    %v923 = vand.u32 %v149, 4294901760
    %924 = vmatpush.msra.mxu0 %v923
    %v925 = vand.u32 %v146, 4294901760
    %926 = vmatpush.msra.mxu0 %v925
    %v927 = vand.u32 %v143, 4294901760
    %928 = vmatpush.msra.mxu0 %v927
    %v929 = vand.u32 %v140, 4294901760
    %930 = vmatpush.msra.mxu0 %v929
    %v931 = vand.u32 %v137, 4294901760
    %932 = vmatpush.msra.mxu0 %v931
    %v933 = vand.u32 %v134, 4294901760
    %934 = vmatpush.msra.mxu0 %v933
    %v935 = vand.u32 %v131, 4294901760
    %936 = vmatpush.msra.mxu0 %v935
    %v937 = vand.u32 %v128, 4294901760
    %938 = vmatpush.msra.mxu0 %v937
    %v939 = vand.u32 %v125, 4294901760
    %940 = vmatpush.msra.mxu0 %v939
    %v941 = vand.u32 %v122, 4294901760
    %942 = vmatpush.msra.mxu0 %v941
    %v943 = vand.u32 %v119, 4294901760
    %944 = vmatpush.msra.mxu0 %v943
    %v945 = vand.u32 %v116, 4294901760
    %946 = vmatpush.msra.mxu0 %v945
    %v947 = vand.u32 %v63, 4294901760
    %948 = vmatmul.f32.gmra.mxu0 %v947
    %v949 = vpop.f32.mrf.mxu0
    %v950 = vadd.f32 %v909, %v949
    %v951 = vand.u32 %v66, 4294901760
    %952 = vmatmul.f32.gmra.mxu0 %v951
    %v953 = vpop.f32.mrf.mxu0
    %v954 = vadd.f32 %v913, %v953
    %955 = vdwg.mxu0
    %v956 = vand.u32 %v209, 4294901760
    %957 = vmatpush.msra.mxu0 %v956
    %v958 = vand.u32 %v206, 4294901760
    %959 = vmatpush.msra.mxu0 %v958
    %v960 = vand.u32 %v203, 4294901760
    %961 = vmatpush.msra.mxu0 %v960
    %v962 = vand.u32 %v200, 4294901760
    %963 = vmatpush.msra.mxu0 %v962
    %v964 = vand.u32 %v197, 4294901760
    %965 = vmatpush.msra.mxu0 %v964
    %v966 = vand.u32 %v194, 4294901760
    %967 = vmatpush.msra.mxu0 %v966
    %v968 = vand.u32 %v191, 4294901760
    %969 = vmatpush.msra.mxu0 %v968
    %v970 = vand.u32 %v188, 4294901760
    %971 = vmatpush.msra.mxu0 %v970
    %v972 = vand.u32 %v185, 4294901760
    %973 = vmatpush.msra.mxu0 %v972
    %v974 = vand.u32 %v182, 4294901760
    %975 = vmatpush.msra.mxu0 %v974
    %v976 = vand.u32 %v179, 4294901760
    %977 = vmatpush.msra.mxu0 %v976
    %v978 = vand.u32 %v176, 4294901760
    %979 = vmatpush.msra.mxu0 %v978
    %v980 = vand.u32 %v173, 4294901760
    %981 = vmatpush.msra.mxu0 %v980
    %v982 = vand.u32 %v170, 4294901760
    %983 = vmatpush.msra.mxu0 %v982
    %v984 = vand.u32 %v167, 4294901760
    %985 = vmatpush.msra.mxu0 %v984
    %v986 = vand.u32 %v164, 4294901760
    %987 = vmatpush.msra.mxu0 %v986
    %v988 = vand.u32 %v64, 4294901760
    %v989 = vsub.f32 %v64, %v988
    %v990 = vand.u32 %v989, 4294901760
    %v991 = vsub.f32 %v989, %v990
    %v992 = vand.u32 %v991, 4294901760
    %993 = vmatmul.f32.gmra.mxu0 %v992
    %v994 = vpop.f32.mrf.mxu0
    %v995 = vadd.f32 %v950, %v994
    %v996 = vand.u32 %v67, 4294901760
    %v997 = vsub.f32 %v67, %v996
    %v998 = vand.u32 %v997, 4294901760
    %v999 = vsub.f32 %v997, %v998
    %v1000 = vand.u32 %v999, 4294901760
    %1001 = vmatmul.f32.gmra.mxu0 %v1000
    %v1002 = vpop.f32.mrf.mxu0
    %v1003 = vadd.f32 %v954, %v1002
    %1004 = vdwg.mxu0
    %v1005 = vand.u32 %v209, 4294901760
    %v1006 = vsub.f32 %v209, %v1005
    %v1007 = vand.u32 %v1006, 4294901760
    %v1008 = vsub.f32 %v1006, %v1007
    %v1009 = vand.u32 %v1008, 4294901760
    %1010 = vmatpush.msra.mxu0 %v1009
    %v1011 = vand.u32 %v206, 4294901760
    %v1012 = vsub.f32 %v206, %v1011
    %v1013 = vand.u32 %v1012, 4294901760
    %v1014 = vsub.f32 %v1012, %v1013
    %v1015 = vand.u32 %v1014, 4294901760
    %1016 = vmatpush.msra.mxu0 %v1015
    %v1017 = vand.u32 %v203, 4294901760
    %v1018 = vsub.f32 %v203, %v1017
    %v1019 = vand.u32 %v1018, 4294901760
    %v1020 = vsub.f32 %v1018, %v1019
    %v1021 = vand.u32 %v1020, 4294901760
    %1022 = vmatpush.msra.mxu0 %v1021
    %v1023 = vand.u32 %v200, 4294901760
    %v1024 = vsub.f32 %v200, %v1023
    %v1025 = vand.u32 %v1024, 4294901760
    %v1026 = vsub.f32 %v1024, %v1025
    %v1027 = vand.u32 %v1026, 4294901760
    %1028 = vmatpush.msra.mxu0 %v1027
    %v1029 = vand.u32 %v197, 4294901760
    %v1030 = vsub.f32 %v197, %v1029
    %v1031 = vand.u32 %v1030, 4294901760
    %v1032 = vsub.f32 %v1030, %v1031
    %v1033 = vand.u32 %v1032, 4294901760
    %1034 = vmatpush.msra.mxu0 %v1033
    %v1035 = vand.u32 %v194, 4294901760
    %v1036 = vsub.f32 %v194, %v1035
    %v1037 = vand.u32 %v1036, 4294901760
    %v1038 = vsub.f32 %v1036, %v1037
    %v1039 = vand.u32 %v1038, 4294901760
    %1040 = vmatpush.msra.mxu0 %v1039
    %v1041 = vand.u32 %v191, 4294901760
    %v1042 = vsub.f32 %v191, %v1041
    %v1043 = vand.u32 %v1042, 4294901760
    %v1044 = vsub.f32 %v1042, %v1043
    %v1045 = vand.u32 %v1044, 4294901760
    %1046 = vmatpush.msra.mxu0 %v1045
    %v1047 = vand.u32 %v188, 4294901760
    %v1048 = vsub.f32 %v188, %v1047
    %v1049 = vand.u32 %v1048, 4294901760
    %v1050 = vsub.f32 %v1048, %v1049
    %v1051 = vand.u32 %v1050, 4294901760
    %1052 = vmatpush.msra.mxu0 %v1051
    %v1053 = vand.u32 %v185, 4294901760
    %v1054 = vsub.f32 %v185, %v1053
    %v1055 = vand.u32 %v1054, 4294901760
    %v1056 = vsub.f32 %v1054, %v1055
    %v1057 = vand.u32 %v1056, 4294901760
    %1058 = vmatpush.msra.mxu0 %v1057
    %v1059 = vand.u32 %v182, 4294901760
    %v1060 = vsub.f32 %v182, %v1059
    %v1061 = vand.u32 %v1060, 4294901760
    %v1062 = vsub.f32 %v1060, %v1061
    %v1063 = vand.u32 %v1062, 4294901760
    %1064 = vmatpush.msra.mxu0 %v1063
    %v1065 = vand.u32 %v179, 4294901760
    %v1066 = vsub.f32 %v179, %v1065
    %v1067 = vand.u32 %v1066, 4294901760
    %v1068 = vsub.f32 %v1066, %v1067
    %v1069 = vand.u32 %v1068, 4294901760
    %1070 = vmatpush.msra.mxu0 %v1069
    %v1071 = vand.u32 %v176, 4294901760
    %v1072 = vsub.f32 %v176, %v1071
    %v1073 = vand.u32 %v1072, 4294901760
    %v1074 = vsub.f32 %v1072, %v1073
    %v1075 = vand.u32 %v1074, 4294901760
    %1076 = vmatpush.msra.mxu0 %v1075
    %v1077 = vand.u32 %v173, 4294901760
    %v1078 = vsub.f32 %v173, %v1077
    %v1079 = vand.u32 %v1078, 4294901760
    %v1080 = vsub.f32 %v1078, %v1079
    %v1081 = vand.u32 %v1080, 4294901760
    %1082 = vmatpush.msra.mxu0 %v1081
    %v1083 = vand.u32 %v170, 4294901760
    %v1084 = vsub.f32 %v170, %v1083
    %v1085 = vand.u32 %v1084, 4294901760
    %v1086 = vsub.f32 %v1084, %v1085
    %v1087 = vand.u32 %v1086, 4294901760
    %1088 = vmatpush.msra.mxu0 %v1087
    %v1089 = vand.u32 %v167, 4294901760
    %v1090 = vsub.f32 %v167, %v1089
    %v1091 = vand.u32 %v1090, 4294901760
    %v1092 = vsub.f32 %v1090, %v1091
    %v1093 = vand.u32 %v1092, 4294901760
    %1094 = vmatpush.msra.mxu0 %v1093
    %v1095 = vand.u32 %v164, 4294901760
    %v1096 = vsub.f32 %v164, %v1095
    %v1097 = vand.u32 %v1096, 4294901760
    %v1098 = vsub.f32 %v1096, %v1097
    %v1099 = vand.u32 %v1098, 4294901760
    %1100 = vmatpush.msra.mxu0 %v1099
    %v1101 = vand.u32 %v64, 4294901760
    %1102 = vmatmul.f32.gmra.mxu0 %v1101
    %v1103 = vpop.f32.mrf.mxu0
    %v1104 = vadd.f32 %v995, %v1103
    %v1105 = vand.u32 %v67, 4294901760
    %1106 = vmatmul.f32.gmra.mxu0 %v1105
    %v1107 = vpop.f32.mrf.mxu0
    %v1108 = vadd.f32 %v1003, %v1107
    %1109 = vdwg.mxu0
    %v1110 = vand.u32 %v209, 4294901760
    %v1111 = vsub.f32 %v209, %v1110
    %1112 = vmatpush.msra.mxu0 %v1111
    %v1113 = vand.u32 %v206, 4294901760
    %v1114 = vsub.f32 %v206, %v1113
    %1115 = vmatpush.msra.mxu0 %v1114
    %v1116 = vand.u32 %v203, 4294901760
    %v1117 = vsub.f32 %v203, %v1116
    %1118 = vmatpush.msra.mxu0 %v1117
    %v1119 = vand.u32 %v200, 4294901760
    %v1120 = vsub.f32 %v200, %v1119
    %1121 = vmatpush.msra.mxu0 %v1120
    %v1122 = vand.u32 %v197, 4294901760
    %v1123 = vsub.f32 %v197, %v1122
    %1124 = vmatpush.msra.mxu0 %v1123
    %v1125 = vand.u32 %v194, 4294901760
    %v1126 = vsub.f32 %v194, %v1125
    %1127 = vmatpush.msra.mxu0 %v1126
    %v1128 = vand.u32 %v191, 4294901760
    %v1129 = vsub.f32 %v191, %v1128
    %1130 = vmatpush.msra.mxu0 %v1129
    %v1131 = vand.u32 %v188, 4294901760
    %v1132 = vsub.f32 %v188, %v1131
    %1133 = vmatpush.msra.mxu0 %v1132
    %v1134 = vand.u32 %v185, 4294901760
    %v1135 = vsub.f32 %v185, %v1134
    %1136 = vmatpush.msra.mxu0 %v1135
    %v1137 = vand.u32 %v182, 4294901760
    %v1138 = vsub.f32 %v182, %v1137
    %1139 = vmatpush.msra.mxu0 %v1138
    %v1140 = vand.u32 %v179, 4294901760
    %v1141 = vsub.f32 %v179, %v1140
    %1142 = vmatpush.msra.mxu0 %v1141
    %v1143 = vand.u32 %v176, 4294901760
    %v1144 = vsub.f32 %v176, %v1143
    %1145 = vmatpush.msra.mxu0 %v1144
    %v1146 = vand.u32 %v173, 4294901760
    %v1147 = vsub.f32 %v173, %v1146
    %1148 = vmatpush.msra.mxu0 %v1147
    %v1149 = vand.u32 %v170, 4294901760
    %v1150 = vsub.f32 %v170, %v1149
    %1151 = vmatpush.msra.mxu0 %v1150
    %v1152 = vand.u32 %v167, 4294901760
    %v1153 = vsub.f32 %v167, %v1152
    %1154 = vmatpush.msra.mxu0 %v1153
    %v1155 = vand.u32 %v164, 4294901760
    %v1156 = vsub.f32 %v164, %v1155
    %1157 = vmatpush.msra.mxu0 %v1156
    %v1158 = vand.u32 %v64, 4294901760
    %v1159 = vsub.f32 %v64, %v1158
    %1160 = vmatmul.f32.gmra.mxu0 %v1159
    %v1161 = vpop.f32.mrf.mxu0
    %v1162 = vadd.f32 %v1104, %v1161
    %v1163 = vand.u32 %v67, 4294901760
    %v1164 = vsub.f32 %v67, %v1163
    %1165 = vmatmul.f32.gmra.mxu0 %v1164
    %v1166 = vpop.f32.mrf.mxu0
    %v1167 = vadd.f32 %v1108, %v1166
    %1168 = vdwg.mxu0
    %v1169 = vand.u32 %v209, 4294901760
    %1170 = vmatpush.msra.mxu0 %v1169
    %v1171 = vand.u32 %v206, 4294901760
    %1172 = vmatpush.msra.mxu0 %v1171
    %v1173 = vand.u32 %v203, 4294901760
    %1174 = vmatpush.msra.mxu0 %v1173
    %v1175 = vand.u32 %v200, 4294901760
    %1176 = vmatpush.msra.mxu0 %v1175
    %v1177 = vand.u32 %v197, 4294901760
    %1178 = vmatpush.msra.mxu0 %v1177
    %v1179 = vand.u32 %v194, 4294901760
    %1180 = vmatpush.msra.mxu0 %v1179
    %v1181 = vand.u32 %v191, 4294901760
    %1182 = vmatpush.msra.mxu0 %v1181
    %v1183 = vand.u32 %v188, 4294901760
    %1184 = vmatpush.msra.mxu0 %v1183
    %v1185 = vand.u32 %v185, 4294901760
    %1186 = vmatpush.msra.mxu0 %v1185
    %v1187 = vand.u32 %v182, 4294901760
    %1188 = vmatpush.msra.mxu0 %v1187
    %v1189 = vand.u32 %v179, 4294901760
    %1190 = vmatpush.msra.mxu0 %v1189
    %v1191 = vand.u32 %v176, 4294901760
    %1192 = vmatpush.msra.mxu0 %v1191
    %v1193 = vand.u32 %v173, 4294901760
    %1194 = vmatpush.msra.mxu0 %v1193
    %v1195 = vand.u32 %v170, 4294901760
    %1196 = vmatpush.msra.mxu0 %v1195
    %v1197 = vand.u32 %v167, 4294901760
    %1198 = vmatpush.msra.mxu0 %v1197
    %v1199 = vand.u32 %v164, 4294901760
    %1200 = vmatpush.msra.mxu0 %v1199
    %v1201 = vand.u32 %v64, 4294901760
    %v1202 = vsub.f32 %v64, %v1201
    %v1203 = vand.u32 %v1202, 4294901760
    %1204 = vmatmul.f32.gmra.mxu0 %v1203
    %v1205 = vpop.f32.mrf.mxu0
    %v1206 = vadd.f32 %v1162, %v1205
    %v1207 = vand.u32 %v67, 4294901760
    %v1208 = vsub.f32 %v67, %v1207
    %v1209 = vand.u32 %v1208, 4294901760
    %1210 = vmatmul.f32.gmra.mxu0 %v1209
    %v1211 = vpop.f32.mrf.mxu0
    %v1212 = vadd.f32 %v1167, %v1211
    %1213 = vdwg.mxu0
    %v1214 = vand.u32 %v209, 4294901760
    %v1215 = vsub.f32 %v209, %v1214
    %v1216 = vand.u32 %v1215, 4294901760
    %1217 = vmatpush.msra.mxu0 %v1216
    %v1218 = vand.u32 %v206, 4294901760
    %v1219 = vsub.f32 %v206, %v1218
    %v1220 = vand.u32 %v1219, 4294901760
    %1221 = vmatpush.msra.mxu0 %v1220
    %v1222 = vand.u32 %v203, 4294901760
    %v1223 = vsub.f32 %v203, %v1222
    %v1224 = vand.u32 %v1223, 4294901760
    %1225 = vmatpush.msra.mxu0 %v1224
    %v1226 = vand.u32 %v200, 4294901760
    %v1227 = vsub.f32 %v200, %v1226
    %v1228 = vand.u32 %v1227, 4294901760
    %1229 = vmatpush.msra.mxu0 %v1228
    %v1230 = vand.u32 %v197, 4294901760
    %v1231 = vsub.f32 %v197, %v1230
    %v1232 = vand.u32 %v1231, 4294901760
    %1233 = vmatpush.msra.mxu0 %v1232
    %v1234 = vand.u32 %v194, 4294901760
    %v1235 = vsub.f32 %v194, %v1234
    %v1236 = vand.u32 %v1235, 4294901760
    %1237 = vmatpush.msra.mxu0 %v1236
    %v1238 = vand.u32 %v191, 4294901760
    %v1239 = vsub.f32 %v191, %v1238
    %v1240 = vand.u32 %v1239, 4294901760
    %1241 = vmatpush.msra.mxu0 %v1240
    %v1242 = vand.u32 %v188, 4294901760
    %v1243 = vsub.f32 %v188, %v1242
    %v1244 = vand.u32 %v1243, 4294901760
    %1245 = vmatpush.msra.mxu0 %v1244
    %v1246 = vand.u32 %v185, 4294901760
    %v1247 = vsub.f32 %v185, %v1246
    %v1248 = vand.u32 %v1247, 4294901760
    %1249 = vmatpush.msra.mxu0 %v1248
    %v1250 = vand.u32 %v182, 4294901760
    %v1251 = vsub.f32 %v182, %v1250
    %v1252 = vand.u32 %v1251, 4294901760
    %1253 = vmatpush.msra.mxu0 %v1252
    %v1254 = vand.u32 %v179, 4294901760
    %v1255 = vsub.f32 %v179, %v1254
    %v1256 = vand.u32 %v1255, 4294901760
    %1257 = vmatpush.msra.mxu0 %v1256
    %v1258 = vand.u32 %v176, 4294901760
    %v1259 = vsub.f32 %v176, %v1258
    %v1260 = vand.u32 %v1259, 4294901760
    %1261 = vmatpush.msra.mxu0 %v1260
    %v1262 = vand.u32 %v173, 4294901760
    %v1263 = vsub.f32 %v173, %v1262
    %v1264 = vand.u32 %v1263, 4294901760
    %1265 = vmatpush.msra.mxu0 %v1264
    %v1266 = vand.u32 %v170, 4294901760
    %v1267 = vsub.f32 %v170, %v1266
    %v1268 = vand.u32 %v1267, 4294901760
    %1269 = vmatpush.msra.mxu0 %v1268
    %v1270 = vand.u32 %v167, 4294901760
    %v1271 = vsub.f32 %v167, %v1270
    %v1272 = vand.u32 %v1271, 4294901760
    %1273 = vmatpush.msra.mxu0 %v1272
    %v1274 = vand.u32 %v164, 4294901760
    %v1275 = vsub.f32 %v164, %v1274
    %v1276 = vand.u32 %v1275, 4294901760
    %1277 = vmatpush.msra.mxu0 %v1276
    %v1278 = vand.u32 %v64, 4294901760
    %1279 = vmatmul.f32.gmra.mxu0 %v1278
    %v1280 = vpop.f32.mrf.mxu0
    %v1281 = vadd.f32 %v1206, %v1280
    %v1282 = vand.u32 %v67, 4294901760
    %1283 = vmatmul.f32.gmra.mxu0 %v1282
    %v1284 = vpop.f32.mrf.mxu0
    %v1285 = vadd.f32 %v1212, %v1284
    %1286 = vdwg.mxu0
    %v1287 = vand.u32 %v209, 4294901760
    %1288 = vmatpush.msra.mxu0 %v1287
    %v1289 = vand.u32 %v206, 4294901760
    %1290 = vmatpush.msra.mxu0 %v1289
    %v1291 = vand.u32 %v203, 4294901760
    %1292 = vmatpush.msra.mxu0 %v1291
    %v1293 = vand.u32 %v200, 4294901760
    %1294 = vmatpush.msra.mxu0 %v1293
    %v1295 = vand.u32 %v197, 4294901760
    %1296 = vmatpush.msra.mxu0 %v1295
    %v1297 = vand.u32 %v194, 4294901760
    %1298 = vmatpush.msra.mxu0 %v1297
    %v1299 = vand.u32 %v191, 4294901760
    %1300 = vmatpush.msra.mxu0 %v1299
    %v1301 = vand.u32 %v188, 4294901760
    %1302 = vmatpush.msra.mxu0 %v1301
    %v1303 = vand.u32 %v185, 4294901760
    %1304 = vmatpush.msra.mxu0 %v1303
    %v1305 = vand.u32 %v182, 4294901760
    %1306 = vmatpush.msra.mxu0 %v1305
    %v1307 = vand.u32 %v179, 4294901760
    %1308 = vmatpush.msra.mxu0 %v1307
    %v1309 = vand.u32 %v176, 4294901760
    %1310 = vmatpush.msra.mxu0 %v1309
    %v1311 = vand.u32 %v173, 4294901760
    %1312 = vmatpush.msra.mxu0 %v1311
    %v1313 = vand.u32 %v170, 4294901760
    %1314 = vmatpush.msra.mxu0 %v1313
    %v1315 = vand.u32 %v167, 4294901760
    %1316 = vmatpush.msra.mxu0 %v1315
    %v1317 = vand.u32 %v164, 4294901760
    %1318 = vmatpush.msra.mxu0 %v1317
    %v1319 = vand.u32 %v64, 4294901760
    %1320 = vmatmul.f32.gmra.mxu0 %v1319
    %v1321 = vpop.f32.mrf.mxu0
    %v1322 = vadd.f32 %v1281, %v1321
    %v1323 = vand.u32 %v67, 4294901760
    %1324 = vmatmul.f32.gmra.mxu0 %v1323
    %v1325 = vpop.f32.mrf.mxu0
    %v1326 = vadd.f32 %v1285, %v1325
    %1327 = vdwg.mxu0
    %v1328 = vand.u32 %v114, 4294901760
    %1329 = vmatpush.msra.mxu0 %v1328
    %v1330 = vand.u32 %v111, 4294901760
    %1331 = vmatpush.msra.mxu0 %v1330
    %v1332 = vand.u32 %v108, 4294901760
    %1333 = vmatpush.msra.mxu0 %v1332
    %v1334 = vand.u32 %v105, 4294901760
    %1335 = vmatpush.msra.mxu0 %v1334
    %v1336 = vand.u32 %v102, 4294901760
    %1337 = vmatpush.msra.mxu0 %v1336
    %v1338 = vand.u32 %v99, 4294901760
    %1339 = vmatpush.msra.mxu0 %v1338
    %v1340 = vand.u32 %v96, 4294901760
    %1341 = vmatpush.msra.mxu0 %v1340
    %v1342 = vand.u32 %v93, 4294901760
    %1343 = vmatpush.msra.mxu0 %v1342
    %v1344 = vand.u32 %v90, 4294901760
    %1345 = vmatpush.msra.mxu0 %v1344
    %v1346 = vand.u32 %v87, 4294901760
    %1347 = vmatpush.msra.mxu0 %v1346
    %v1348 = vand.u32 %v84, 4294901760
    %1349 = vmatpush.msra.mxu0 %v1348
    %v1350 = vand.u32 %v81, 4294901760
    %1351 = vmatpush.msra.mxu0 %v1350
    %v1352 = vand.u32 %v78, 4294901760
    %1353 = vmatpush.msra.mxu0 %v1352
    %v1354 = vand.u32 %v75, 4294901760
    %1355 = vmatpush.msra.mxu0 %v1354
    %v1356 = vand.u32 %v72, 4294901760
    %1357 = vmatpush.msra.mxu0 %v1356
    %v1358 = vand.u32 %v69, 4294901760
    %1359 = vmatpush.msra.mxu0 %v1358
    %v1360 = vand.u32 %v62, 4294901760
    %v1361 = vsub.f32 %v62, %v1360
    %v1362 = vand.u32 %v1361, 4294901760
    %v1363 = vsub.f32 %v1361, %v1362
    %v1364 = vand.u32 %v1363, 4294901760
    %1365 = vmatmul.f32.gmra.mxu0 %v1364
    %v1366 = vpop.f32.mrf.mxu0
    %v1367 = vadd.f32 0.0, %v1366
    %v1368 = vand.u32 %v65, 4294901760
    %v1369 = vsub.f32 %v65, %v1368
    %v1370 = vand.u32 %v1369, 4294901760
    %v1371 = vsub.f32 %v1369, %v1370
    %v1372 = vand.u32 %v1371, 4294901760
    %1373 = vmatmul.f32.gmra.mxu0 %v1372
    %v1374 = vpop.f32.mrf.mxu0
    %v1375 = vadd.f32 0.0, %v1374
    %1376 = vdwg.mxu0
    %v1377 = vand.u32 %v114, 4294901760
    %v1378 = vsub.f32 %v114, %v1377
    %v1379 = vand.u32 %v1378, 4294901760
    %v1380 = vsub.f32 %v1378, %v1379
    %v1381 = vand.u32 %v1380, 4294901760
    %1382 = vmatpush.msra.mxu0 %v1381
    %v1383 = vand.u32 %v111, 4294901760
    %v1384 = vsub.f32 %v111, %v1383
    %v1385 = vand.u32 %v1384, 4294901760
    %v1386 = vsub.f32 %v1384, %v1385
    %v1387 = vand.u32 %v1386, 4294901760
    %1388 = vmatpush.msra.mxu0 %v1387
    %v1389 = vand.u32 %v108, 4294901760
    %v1390 = vsub.f32 %v108, %v1389
    %v1391 = vand.u32 %v1390, 4294901760
    %v1392 = vsub.f32 %v1390, %v1391
    %v1393 = vand.u32 %v1392, 4294901760
    %1394 = vmatpush.msra.mxu0 %v1393
    %v1395 = vand.u32 %v105, 4294901760
    %v1396 = vsub.f32 %v105, %v1395
    %v1397 = vand.u32 %v1396, 4294901760
    %v1398 = vsub.f32 %v1396, %v1397
    %v1399 = vand.u32 %v1398, 4294901760
    %1400 = vmatpush.msra.mxu0 %v1399
    %v1401 = vand.u32 %v102, 4294901760
    %v1402 = vsub.f32 %v102, %v1401
    %v1403 = vand.u32 %v1402, 4294901760
    %v1404 = vsub.f32 %v1402, %v1403
    %v1405 = vand.u32 %v1404, 4294901760
    %1406 = vmatpush.msra.mxu0 %v1405
    %v1407 = vand.u32 %v99, 4294901760
    %v1408 = vsub.f32 %v99, %v1407
    %v1409 = vand.u32 %v1408, 4294901760
    %v1410 = vsub.f32 %v1408, %v1409
    %v1411 = vand.u32 %v1410, 4294901760
    %1412 = vmatpush.msra.mxu0 %v1411
    %v1413 = vand.u32 %v96, 4294901760
    %v1414 = vsub.f32 %v96, %v1413
    %v1415 = vand.u32 %v1414, 4294901760
    %v1416 = vsub.f32 %v1414, %v1415
    %v1417 = vand.u32 %v1416, 4294901760
    %1418 = vmatpush.msra.mxu0 %v1417
    %v1419 = vand.u32 %v93, 4294901760
    %v1420 = vsub.f32 %v93, %v1419
    %v1421 = vand.u32 %v1420, 4294901760
    %v1422 = vsub.f32 %v1420, %v1421
    %v1423 = vand.u32 %v1422, 4294901760
    %1424 = vmatpush.msra.mxu0 %v1423
    %v1425 = vand.u32 %v90, 4294901760
    %v1426 = vsub.f32 %v90, %v1425
    %v1427 = vand.u32 %v1426, 4294901760
    %v1428 = vsub.f32 %v1426, %v1427
    %v1429 = vand.u32 %v1428, 4294901760
    %1430 = vmatpush.msra.mxu0 %v1429
    %v1431 = vand.u32 %v87, 4294901760
    %v1432 = vsub.f32 %v87, %v1431
    %v1433 = vand.u32 %v1432, 4294901760
    %v1434 = vsub.f32 %v1432, %v1433
    %v1435 = vand.u32 %v1434, 4294901760
    %1436 = vmatpush.msra.mxu0 %v1435
    %v1437 = vand.u32 %v84, 4294901760
    %v1438 = vsub.f32 %v84, %v1437
    %v1439 = vand.u32 %v1438, 4294901760
    %v1440 = vsub.f32 %v1438, %v1439
    %v1441 = vand.u32 %v1440, 4294901760
    %1442 = vmatpush.msra.mxu0 %v1441
    %v1443 = vand.u32 %v81, 4294901760
    %v1444 = vsub.f32 %v81, %v1443
    %v1445 = vand.u32 %v1444, 4294901760
    %v1446 = vsub.f32 %v1444, %v1445
    %v1447 = vand.u32 %v1446, 4294901760
    %1448 = vmatpush.msra.mxu0 %v1447
    %v1449 = vand.u32 %v78, 4294901760
    %v1450 = vsub.f32 %v78, %v1449
    %v1451 = vand.u32 %v1450, 4294901760
    %v1452 = vsub.f32 %v1450, %v1451
    %v1453 = vand.u32 %v1452, 4294901760
    %1454 = vmatpush.msra.mxu0 %v1453
    %v1455 = vand.u32 %v75, 4294901760
    %v1456 = vsub.f32 %v75, %v1455
    %v1457 = vand.u32 %v1456, 4294901760
    %v1458 = vsub.f32 %v1456, %v1457
    %v1459 = vand.u32 %v1458, 4294901760
    %1460 = vmatpush.msra.mxu0 %v1459
    %v1461 = vand.u32 %v72, 4294901760
    %v1462 = vsub.f32 %v72, %v1461
    %v1463 = vand.u32 %v1462, 4294901760
    %v1464 = vsub.f32 %v1462, %v1463
    %v1465 = vand.u32 %v1464, 4294901760
    %1466 = vmatpush.msra.mxu0 %v1465
    %v1467 = vand.u32 %v69, 4294901760
    %v1468 = vsub.f32 %v69, %v1467
    %v1469 = vand.u32 %v1468, 4294901760
    %v1470 = vsub.f32 %v1468, %v1469
    %v1471 = vand.u32 %v1470, 4294901760
    %1472 = vmatpush.msra.mxu0 %v1471
    %v1473 = vand.u32 %v62, 4294901760
    %1474 = vmatmul.f32.gmra.mxu0 %v1473
    %v1475 = vpop.f32.mrf.mxu0
    %v1476 = vadd.f32 %v1367, %v1475
    %v1477 = vand.u32 %v65, 4294901760
    %1478 = vmatmul.f32.gmra.mxu0 %v1477
    %v1479 = vpop.f32.mrf.mxu0
    %v1480 = vadd.f32 %v1375, %v1479
    %1481 = vdwg.mxu0
    %v1482 = vand.u32 %v114, 4294901760
    %v1483 = vsub.f32 %v114, %v1482
    %1484 = vmatpush.msra.mxu0 %v1483
    %v1485 = vand.u32 %v111, 4294901760
    %v1486 = vsub.f32 %v111, %v1485
    %1487 = vmatpush.msra.mxu0 %v1486
    %v1488 = vand.u32 %v108, 4294901760
    %v1489 = vsub.f32 %v108, %v1488
    %1490 = vmatpush.msra.mxu0 %v1489
    %v1491 = vand.u32 %v105, 4294901760
    %v1492 = vsub.f32 %v105, %v1491
    %1493 = vmatpush.msra.mxu0 %v1492
    %v1494 = vand.u32 %v102, 4294901760
    %v1495 = vsub.f32 %v102, %v1494
    %1496 = vmatpush.msra.mxu0 %v1495
    %v1497 = vand.u32 %v99, 4294901760
    %v1498 = vsub.f32 %v99, %v1497
    %1499 = vmatpush.msra.mxu0 %v1498
    %v1500 = vand.u32 %v96, 4294901760
    %v1501 = vsub.f32 %v96, %v1500
    %1502 = vmatpush.msra.mxu0 %v1501
    %v1503 = vand.u32 %v93, 4294901760
    %v1504 = vsub.f32 %v93, %v1503
    %1505 = vmatpush.msra.mxu0 %v1504
    %v1506 = vand.u32 %v90, 4294901760
    %v1507 = vsub.f32 %v90, %v1506
    %1508 = vmatpush.msra.mxu0 %v1507
    %v1509 = vand.u32 %v87, 4294901760
    %v1510 = vsub.f32 %v87, %v1509
    %1511 = vmatpush.msra.mxu0 %v1510
    %v1512 = vand.u32 %v84, 4294901760
    %v1513 = vsub.f32 %v84, %v1512
    %1514 = vmatpush.msra.mxu0 %v1513
    %v1515 = vand.u32 %v81, 4294901760
    %v1516 = vsub.f32 %v81, %v1515
    %1517 = vmatpush.msra.mxu0 %v1516
    %v1518 = vand.u32 %v78, 4294901760
    %v1519 = vsub.f32 %v78, %v1518
    %1520 = vmatpush.msra.mxu0 %v1519
    %v1521 = vand.u32 %v75, 4294901760
    %v1522 = vsub.f32 %v75, %v1521
    %1523 = vmatpush.msra.mxu0 %v1522
    %v1524 = vand.u32 %v72, 4294901760
    %v1525 = vsub.f32 %v72, %v1524
    %1526 = vmatpush.msra.mxu0 %v1525
    %v1527 = vand.u32 %v69, 4294901760
    %v1528 = vsub.f32 %v69, %v1527
    %1529 = vmatpush.msra.mxu0 %v1528
    %v1530 = vand.u32 %v62, 4294901760
    %v1531 = vsub.f32 %v62, %v1530
    %1532 = vmatmul.f32.gmra.mxu0 %v1531
    %v1533 = vpop.f32.mrf.mxu0
    %v1534 = vadd.f32 %v1476, %v1533
    %v1535 = vand.u32 %v65, 4294901760
    %v1536 = vsub.f32 %v65, %v1535
    %1537 = vmatmul.f32.gmra.mxu0 %v1536
    %v1538 = vpop.f32.mrf.mxu0
    %v1539 = vadd.f32 %v1480, %v1538
    %1540 = vdwg.mxu0
    %v1541 = vand.u32 %v114, 4294901760
    %1542 = vmatpush.msra.mxu0 %v1541
    %v1543 = vand.u32 %v111, 4294901760
    %1544 = vmatpush.msra.mxu0 %v1543
    %v1545 = vand.u32 %v108, 4294901760
    %1546 = vmatpush.msra.mxu0 %v1545
    %v1547 = vand.u32 %v105, 4294901760
    %1548 = vmatpush.msra.mxu0 %v1547
    %v1549 = vand.u32 %v102, 4294901760
    %1550 = vmatpush.msra.mxu0 %v1549
    %v1551 = vand.u32 %v99, 4294901760
    %1552 = vmatpush.msra.mxu0 %v1551
    %v1553 = vand.u32 %v96, 4294901760
    %1554 = vmatpush.msra.mxu0 %v1553
    %v1555 = vand.u32 %v93, 4294901760
    %1556 = vmatpush.msra.mxu0 %v1555
    %v1557 = vand.u32 %v90, 4294901760
    %1558 = vmatpush.msra.mxu0 %v1557
    %v1559 = vand.u32 %v87, 4294901760
    %1560 = vmatpush.msra.mxu0 %v1559
    %v1561 = vand.u32 %v84, 4294901760
    %1562 = vmatpush.msra.mxu0 %v1561
    %v1563 = vand.u32 %v81, 4294901760
    %1564 = vmatpush.msra.mxu0 %v1563
    %v1565 = vand.u32 %v78, 4294901760
    %1566 = vmatpush.msra.mxu0 %v1565
    %v1567 = vand.u32 %v75, 4294901760
    %1568 = vmatpush.msra.mxu0 %v1567
    %v1569 = vand.u32 %v72, 4294901760
    %1570 = vmatpush.msra.mxu0 %v1569
    %v1571 = vand.u32 %v69, 4294901760
    %1572 = vmatpush.msra.mxu0 %v1571
    %v1573 = vand.u32 %v62, 4294901760
    %v1574 = vsub.f32 %v62, %v1573
    %v1575 = vand.u32 %v1574, 4294901760
    %1576 = vmatmul.f32.gmra.mxu0 %v1575
    %v1577 = vpop.f32.mrf.mxu0
    %v1578 = vadd.f32 %v1534, %v1577
    %v1579 = vand.u32 %v65, 4294901760
    %v1580 = vsub.f32 %v65, %v1579
    %v1581 = vand.u32 %v1580, 4294901760
    %1582 = vmatmul.f32.gmra.mxu0 %v1581
    %v1583 = vpop.f32.mrf.mxu0
    %v1584 = vadd.f32 %v1539, %v1583
    %1585 = vdwg.mxu0
    %v1586 = vand.u32 %v114, 4294901760
    %v1587 = vsub.f32 %v114, %v1586
    %v1588 = vand.u32 %v1587, 4294901760
    %1589 = vmatpush.msra.mxu0 %v1588
    %v1590 = vand.u32 %v111, 4294901760
    %v1591 = vsub.f32 %v111, %v1590
    %v1592 = vand.u32 %v1591, 4294901760
    %1593 = vmatpush.msra.mxu0 %v1592
    %v1594 = vand.u32 %v108, 4294901760
    %v1595 = vsub.f32 %v108, %v1594
    %v1596 = vand.u32 %v1595, 4294901760
    %1597 = vmatpush.msra.mxu0 %v1596
    %v1598 = vand.u32 %v105, 4294901760
    %v1599 = vsub.f32 %v105, %v1598
    %v1600 = vand.u32 %v1599, 4294901760
    %1601 = vmatpush.msra.mxu0 %v1600
    %v1602 = vand.u32 %v102, 4294901760
    %v1603 = vsub.f32 %v102, %v1602
    %v1604 = vand.u32 %v1603, 4294901760
    %1605 = vmatpush.msra.mxu0 %v1604
    %v1606 = vand.u32 %v99, 4294901760
    %v1607 = vsub.f32 %v99, %v1606
    %v1608 = vand.u32 %v1607, 4294901760
    %1609 = vmatpush.msra.mxu0 %v1608
    %v1610 = vand.u32 %v96, 4294901760
    %v1611 = vsub.f32 %v96, %v1610
    %v1612 = vand.u32 %v1611, 4294901760
    %1613 = vmatpush.msra.mxu0 %v1612
    %v1614 = vand.u32 %v93, 4294901760
    %v1615 = vsub.f32 %v93, %v1614
    %v1616 = vand.u32 %v1615, 4294901760
    %1617 = vmatpush.msra.mxu0 %v1616
    %v1618 = vand.u32 %v90, 4294901760
    %v1619 = vsub.f32 %v90, %v1618
    %v1620 = vand.u32 %v1619, 4294901760
    %1621 = vmatpush.msra.mxu0 %v1620
    %v1622 = vand.u32 %v87, 4294901760
    %v1623 = vsub.f32 %v87, %v1622
    %v1624 = vand.u32 %v1623, 4294901760
    %1625 = vmatpush.msra.mxu0 %v1624
    %v1626 = vand.u32 %v84, 4294901760
    %v1627 = vsub.f32 %v84, %v1626
    %v1628 = vand.u32 %v1627, 4294901760
    %1629 = vmatpush.msra.mxu0 %v1628
    %v1630 = vand.u32 %v81, 4294901760
    %v1631 = vsub.f32 %v81, %v1630
    %v1632 = vand.u32 %v1631, 4294901760
    %1633 = vmatpush.msra.mxu0 %v1632
    %v1634 = vand.u32 %v78, 4294901760
    %v1635 = vsub.f32 %v78, %v1634
    %v1636 = vand.u32 %v1635, 4294901760
    %1637 = vmatpush.msra.mxu0 %v1636
    %v1638 = vand.u32 %v75, 4294901760
    %v1639 = vsub.f32 %v75, %v1638
    %v1640 = vand.u32 %v1639, 4294901760
    %1641 = vmatpush.msra.mxu0 %v1640
    %v1642 = vand.u32 %v72, 4294901760
    %v1643 = vsub.f32 %v72, %v1642
    %v1644 = vand.u32 %v1643, 4294901760
    %1645 = vmatpush.msra.mxu0 %v1644
    %v1646 = vand.u32 %v69, 4294901760
    %v1647 = vsub.f32 %v69, %v1646
    %v1648 = vand.u32 %v1647, 4294901760
    %1649 = vmatpush.msra.mxu0 %v1648
    %v1650 = vand.u32 %v62, 4294901760
    %1651 = vmatmul.f32.gmra.mxu0 %v1650
    %v1652 = vpop.f32.mrf.mxu0
    %v1653 = vadd.f32 %v1578, %v1652
    %v1654 = vand.u32 %v65, 4294901760
    %1655 = vmatmul.f32.gmra.mxu0 %v1654
    %v1656 = vpop.f32.mrf.mxu0
    %v1657 = vadd.f32 %v1584, %v1656
    %1658 = vdwg.mxu0
    %v1659 = vand.u32 %v114, 4294901760
    %1660 = vmatpush.msra.mxu0 %v1659
    %v1661 = vand.u32 %v111, 4294901760
    %1662 = vmatpush.msra.mxu0 %v1661
    %v1663 = vand.u32 %v108, 4294901760
    %1664 = vmatpush.msra.mxu0 %v1663
    %v1665 = vand.u32 %v105, 4294901760
    %1666 = vmatpush.msra.mxu0 %v1665
    %v1667 = vand.u32 %v102, 4294901760
    %1668 = vmatpush.msra.mxu0 %v1667
    %v1669 = vand.u32 %v99, 4294901760
    %1670 = vmatpush.msra.mxu0 %v1669
    %v1671 = vand.u32 %v96, 4294901760
    %1672 = vmatpush.msra.mxu0 %v1671
    %v1673 = vand.u32 %v93, 4294901760
    %1674 = vmatpush.msra.mxu0 %v1673
    %v1675 = vand.u32 %v90, 4294901760
    %1676 = vmatpush.msra.mxu0 %v1675
    %v1677 = vand.u32 %v87, 4294901760
    %1678 = vmatpush.msra.mxu0 %v1677
    %v1679 = vand.u32 %v84, 4294901760
    %1680 = vmatpush.msra.mxu0 %v1679
    %v1681 = vand.u32 %v81, 4294901760
    %1682 = vmatpush.msra.mxu0 %v1681
    %v1683 = vand.u32 %v78, 4294901760
    %1684 = vmatpush.msra.mxu0 %v1683
    %v1685 = vand.u32 %v75, 4294901760
    %1686 = vmatpush.msra.mxu0 %v1685
    %v1687 = vand.u32 %v72, 4294901760
    %1688 = vmatpush.msra.mxu0 %v1687
    %v1689 = vand.u32 %v69, 4294901760
    %1690 = vmatpush.msra.mxu0 %v1689
    %v1691 = vand.u32 %v62, 4294901760
    %1692 = vmatmul.f32.gmra.mxu0 %v1691
    %v1693 = vpop.f32.mrf.mxu0
    %v1694 = vadd.f32 %v1653, %v1693
    %v1695 = vand.u32 %v65, 4294901760
    %1696 = vmatmul.f32.gmra.mxu0 %v1695
    %v1697 = vpop.f32.mrf.mxu0
    %v1698 = vadd.f32 %v1657, %v1697
    %1699 = vdwg.mxu0
    %v1700 = vand.u32 %v162, 4294901760
    %1701 = vmatpush.msra.mxu0 %v1700
    %v1702 = vand.u32 %v159, 4294901760
    %1703 = vmatpush.msra.mxu0 %v1702
    %v1704 = vand.u32 %v156, 4294901760
    %1705 = vmatpush.msra.mxu0 %v1704
    %v1706 = vand.u32 %v153, 4294901760
    %1707 = vmatpush.msra.mxu0 %v1706
    %v1708 = vand.u32 %v150, 4294901760
    %1709 = vmatpush.msra.mxu0 %v1708
    %v1710 = vand.u32 %v147, 4294901760
    %1711 = vmatpush.msra.mxu0 %v1710
    %v1712 = vand.u32 %v144, 4294901760
    %1713 = vmatpush.msra.mxu0 %v1712
    %v1714 = vand.u32 %v141, 4294901760
    %1715 = vmatpush.msra.mxu0 %v1714
    %v1716 = vand.u32 %v138, 4294901760
    %1717 = vmatpush.msra.mxu0 %v1716
    %v1718 = vand.u32 %v135, 4294901760
    %1719 = vmatpush.msra.mxu0 %v1718
    %v1720 = vand.u32 %v132, 4294901760
    %1721 = vmatpush.msra.mxu0 %v1720
    %v1722 = vand.u32 %v129, 4294901760
    %1723 = vmatpush.msra.mxu0 %v1722
    %v1724 = vand.u32 %v126, 4294901760
    %1725 = vmatpush.msra.mxu0 %v1724
    %v1726 = vand.u32 %v123, 4294901760
    %1727 = vmatpush.msra.mxu0 %v1726
    %v1728 = vand.u32 %v120, 4294901760
    %1729 = vmatpush.msra.mxu0 %v1728
    %v1730 = vand.u32 %v117, 4294901760
    %1731 = vmatpush.msra.mxu0 %v1730
    %v1732 = vand.u32 %v63, 4294901760
    %v1733 = vsub.f32 %v63, %v1732
    %v1734 = vand.u32 %v1733, 4294901760
    %v1735 = vsub.f32 %v1733, %v1734
    %v1736 = vand.u32 %v1735, 4294901760
    %1737 = vmatmul.f32.gmra.mxu0 %v1736
    %v1738 = vpop.f32.mrf.mxu0
    %v1739 = vadd.f32 %v1694, %v1738
    %v1740 = vand.u32 %v66, 4294901760
    %v1741 = vsub.f32 %v66, %v1740
    %v1742 = vand.u32 %v1741, 4294901760
    %v1743 = vsub.f32 %v1741, %v1742
    %v1744 = vand.u32 %v1743, 4294901760
    %1745 = vmatmul.f32.gmra.mxu0 %v1744
    %v1746 = vpop.f32.mrf.mxu0
    %v1747 = vadd.f32 %v1698, %v1746
    %1748 = vdwg.mxu0
    %v1749 = vand.u32 %v162, 4294901760
    %v1750 = vsub.f32 %v162, %v1749
    %v1751 = vand.u32 %v1750, 4294901760
    %v1752 = vsub.f32 %v1750, %v1751
    %v1753 = vand.u32 %v1752, 4294901760
    %1754 = vmatpush.msra.mxu0 %v1753
    %v1755 = vand.u32 %v159, 4294901760
    %v1756 = vsub.f32 %v159, %v1755
    %v1757 = vand.u32 %v1756, 4294901760
    %v1758 = vsub.f32 %v1756, %v1757
    %v1759 = vand.u32 %v1758, 4294901760
    %1760 = vmatpush.msra.mxu0 %v1759
    %v1761 = vand.u32 %v156, 4294901760
    %v1762 = vsub.f32 %v156, %v1761
    %v1763 = vand.u32 %v1762, 4294901760
    %v1764 = vsub.f32 %v1762, %v1763
    %v1765 = vand.u32 %v1764, 4294901760
    %1766 = vmatpush.msra.mxu0 %v1765
    %v1767 = vand.u32 %v153, 4294901760
    %v1768 = vsub.f32 %v153, %v1767
    %v1769 = vand.u32 %v1768, 4294901760
    %v1770 = vsub.f32 %v1768, %v1769
    %v1771 = vand.u32 %v1770, 4294901760
    %1772 = vmatpush.msra.mxu0 %v1771
    %v1773 = vand.u32 %v150, 4294901760
    %v1774 = vsub.f32 %v150, %v1773
    %v1775 = vand.u32 %v1774, 4294901760
    %v1776 = vsub.f32 %v1774, %v1775
    %v1777 = vand.u32 %v1776, 4294901760
    %1778 = vmatpush.msra.mxu0 %v1777
    %v1779 = vand.u32 %v147, 4294901760
    %v1780 = vsub.f32 %v147, %v1779
    %v1781 = vand.u32 %v1780, 4294901760
    %v1782 = vsub.f32 %v1780, %v1781
    %v1783 = vand.u32 %v1782, 4294901760
    %1784 = vmatpush.msra.mxu0 %v1783
    %v1785 = vand.u32 %v144, 4294901760
    %v1786 = vsub.f32 %v144, %v1785
    %v1787 = vand.u32 %v1786, 4294901760
    %v1788 = vsub.f32 %v1786, %v1787
    %v1789 = vand.u32 %v1788, 4294901760
    %1790 = vmatpush.msra.mxu0 %v1789
    %v1791 = vand.u32 %v141, 4294901760
    %v1792 = vsub.f32 %v141, %v1791
    %v1793 = vand.u32 %v1792, 4294901760
    %v1794 = vsub.f32 %v1792, %v1793
    %v1795 = vand.u32 %v1794, 4294901760
    %1796 = vmatpush.msra.mxu0 %v1795
    %v1797 = vand.u32 %v138, 4294901760
    %v1798 = vsub.f32 %v138, %v1797
    %v1799 = vand.u32 %v1798, 4294901760
    %v1800 = vsub.f32 %v1798, %v1799
    %v1801 = vand.u32 %v1800, 4294901760
    %1802 = vmatpush.msra.mxu0 %v1801
    %v1803 = vand.u32 %v135, 4294901760
    %v1804 = vsub.f32 %v135, %v1803
    %v1805 = vand.u32 %v1804, 4294901760
    %v1806 = vsub.f32 %v1804, %v1805
    %v1807 = vand.u32 %v1806, 4294901760
    %1808 = vmatpush.msra.mxu0 %v1807
    %v1809 = vand.u32 %v132, 4294901760
    %v1810 = vsub.f32 %v132, %v1809
    %v1811 = vand.u32 %v1810, 4294901760
    %v1812 = vsub.f32 %v1810, %v1811
    %v1813 = vand.u32 %v1812, 4294901760
    %1814 = vmatpush.msra.mxu0 %v1813
    %v1815 = vand.u32 %v129, 4294901760
    %v1816 = vsub.f32 %v129, %v1815
    %v1817 = vand.u32 %v1816, 4294901760
    %v1818 = vsub.f32 %v1816, %v1817
    %v1819 = vand.u32 %v1818, 4294901760
    %1820 = vmatpush.msra.mxu0 %v1819
    %v1821 = vand.u32 %v126, 4294901760
    %v1822 = vsub.f32 %v126, %v1821
    %v1823 = vand.u32 %v1822, 4294901760
    %v1824 = vsub.f32 %v1822, %v1823
    %v1825 = vand.u32 %v1824, 4294901760
    %1826 = vmatpush.msra.mxu0 %v1825
    %v1827 = vand.u32 %v123, 4294901760
    %v1828 = vsub.f32 %v123, %v1827
    %v1829 = vand.u32 %v1828, 4294901760
    %v1830 = vsub.f32 %v1828, %v1829
    %v1831 = vand.u32 %v1830, 4294901760
    %1832 = vmatpush.msra.mxu0 %v1831
    %v1833 = vand.u32 %v120, 4294901760
    %v1834 = vsub.f32 %v120, %v1833
    %v1835 = vand.u32 %v1834, 4294901760
    %v1836 = vsub.f32 %v1834, %v1835
    %v1837 = vand.u32 %v1836, 4294901760
    %1838 = vmatpush.msra.mxu0 %v1837
    %v1839 = vand.u32 %v117, 4294901760
    %v1840 = vsub.f32 %v117, %v1839
    %v1841 = vand.u32 %v1840, 4294901760
    %v1842 = vsub.f32 %v1840, %v1841
    %v1843 = vand.u32 %v1842, 4294901760
    %1844 = vmatpush.msra.mxu0 %v1843
    %v1845 = vand.u32 %v63, 4294901760
    %1846 = vmatmul.f32.gmra.mxu0 %v1845
    %v1847 = vpop.f32.mrf.mxu0
    %v1848 = vadd.f32 %v1739, %v1847
    %v1849 = vand.u32 %v66, 4294901760
    %1850 = vmatmul.f32.gmra.mxu0 %v1849
    %v1851 = vpop.f32.mrf.mxu0
    %v1852 = vadd.f32 %v1747, %v1851
    %1853 = vdwg.mxu0
    %v1854 = vand.u32 %v162, 4294901760
    %v1855 = vsub.f32 %v162, %v1854
    %1856 = vmatpush.msra.mxu0 %v1855
    %v1857 = vand.u32 %v159, 4294901760
    %v1858 = vsub.f32 %v159, %v1857
    %1859 = vmatpush.msra.mxu0 %v1858
    %v1860 = vand.u32 %v156, 4294901760
    %v1861 = vsub.f32 %v156, %v1860
    %1862 = vmatpush.msra.mxu0 %v1861
    %v1863 = vand.u32 %v153, 4294901760
    %v1864 = vsub.f32 %v153, %v1863
    %1865 = vmatpush.msra.mxu0 %v1864
    %v1866 = vand.u32 %v150, 4294901760
    %v1867 = vsub.f32 %v150, %v1866
    %1868 = vmatpush.msra.mxu0 %v1867
    %v1869 = vand.u32 %v147, 4294901760
    %v1870 = vsub.f32 %v147, %v1869
    %1871 = vmatpush.msra.mxu0 %v1870
    %v1872 = vand.u32 %v144, 4294901760
    %v1873 = vsub.f32 %v144, %v1872
    %1874 = vmatpush.msra.mxu0 %v1873
    %v1875 = vand.u32 %v141, 4294901760
    %v1876 = vsub.f32 %v141, %v1875
    %1877 = vmatpush.msra.mxu0 %v1876
    %v1878 = vand.u32 %v138, 4294901760
    %v1879 = vsub.f32 %v138, %v1878
    %1880 = vmatpush.msra.mxu0 %v1879
    %v1881 = vand.u32 %v135, 4294901760
    %v1882 = vsub.f32 %v135, %v1881
    %1883 = vmatpush.msra.mxu0 %v1882
    %v1884 = vand.u32 %v132, 4294901760
    %v1885 = vsub.f32 %v132, %v1884
    %1886 = vmatpush.msra.mxu0 %v1885
    %v1887 = vand.u32 %v129, 4294901760
    %v1888 = vsub.f32 %v129, %v1887
    %1889 = vmatpush.msra.mxu0 %v1888
    %v1890 = vand.u32 %v126, 4294901760
    %v1891 = vsub.f32 %v126, %v1890
    %1892 = vmatpush.msra.mxu0 %v1891
    %v1893 = vand.u32 %v123, 4294901760
    %v1894 = vsub.f32 %v123, %v1893
    %1895 = vmatpush.msra.mxu0 %v1894
    %v1896 = vand.u32 %v120, 4294901760
    %v1897 = vsub.f32 %v120, %v1896
    %1898 = vmatpush.msra.mxu0 %v1897
    %v1899 = vand.u32 %v117, 4294901760
    %v1900 = vsub.f32 %v117, %v1899
    %1901 = vmatpush.msra.mxu0 %v1900
    %v1902 = vand.u32 %v63, 4294901760
    %v1903 = vsub.f32 %v63, %v1902
    %1904 = vmatmul.f32.gmra.mxu0 %v1903
    %v1905 = vpop.f32.mrf.mxu0
    %v1906 = vadd.f32 %v1848, %v1905
    %v1907 = vand.u32 %v66, 4294901760
    %v1908 = vsub.f32 %v66, %v1907
    %1909 = vmatmul.f32.gmra.mxu0 %v1908
    %v1910 = vpop.f32.mrf.mxu0
    %v1911 = vadd.f32 %v1852, %v1910
    %1912 = vdwg.mxu0
    %v1913 = vand.u32 %v162, 4294901760
    %1914 = vmatpush.msra.mxu0 %v1913
    %v1915 = vand.u32 %v159, 4294901760
    %1916 = vmatpush.msra.mxu0 %v1915
    %v1917 = vand.u32 %v156, 4294901760
    %1918 = vmatpush.msra.mxu0 %v1917
    %v1919 = vand.u32 %v153, 4294901760
    %1920 = vmatpush.msra.mxu0 %v1919
    %v1921 = vand.u32 %v150, 4294901760
    %1922 = vmatpush.msra.mxu0 %v1921
    %v1923 = vand.u32 %v147, 4294901760
    %1924 = vmatpush.msra.mxu0 %v1923
    %v1925 = vand.u32 %v144, 4294901760
    %1926 = vmatpush.msra.mxu0 %v1925
    %v1927 = vand.u32 %v141, 4294901760
    %1928 = vmatpush.msra.mxu0 %v1927
    %v1929 = vand.u32 %v138, 4294901760
    %1930 = vmatpush.msra.mxu0 %v1929
    %v1931 = vand.u32 %v135, 4294901760
    %1932 = vmatpush.msra.mxu0 %v1931
    %v1933 = vand.u32 %v132, 4294901760
    %1934 = vmatpush.msra.mxu0 %v1933
    %v1935 = vand.u32 %v129, 4294901760
    %1936 = vmatpush.msra.mxu0 %v1935
    %v1937 = vand.u32 %v126, 4294901760
    %1938 = vmatpush.msra.mxu0 %v1937
    %v1939 = vand.u32 %v123, 4294901760
    %1940 = vmatpush.msra.mxu0 %v1939
    %v1941 = vand.u32 %v120, 4294901760
    %1942 = vmatpush.msra.mxu0 %v1941
    %v1943 = vand.u32 %v117, 4294901760
    %1944 = vmatpush.msra.mxu0 %v1943
    %v1945 = vand.u32 %v63, 4294901760
    %v1946 = vsub.f32 %v63, %v1945
    %v1947 = vand.u32 %v1946, 4294901760
    %1948 = vmatmul.f32.gmra.mxu0 %v1947
    %v1949 = vpop.f32.mrf.mxu0
    %v1950 = vadd.f32 %v1906, %v1949
    %v1951 = vand.u32 %v66, 4294901760
    %v1952 = vsub.f32 %v66, %v1951
    %v1953 = vand.u32 %v1952, 4294901760
    %1954 = vmatmul.f32.gmra.mxu0 %v1953
    %v1955 = vpop.f32.mrf.mxu0
    %v1956 = vadd.f32 %v1911, %v1955
    %1957 = vdwg.mxu0
    %v1958 = vand.u32 %v162, 4294901760
    %v1959 = vsub.f32 %v162, %v1958
    %v1960 = vand.u32 %v1959, 4294901760
    %1961 = vmatpush.msra.mxu0 %v1960
    %v1962 = vand.u32 %v159, 4294901760
    %v1963 = vsub.f32 %v159, %v1962
    %v1964 = vand.u32 %v1963, 4294901760
    %1965 = vmatpush.msra.mxu0 %v1964
    %v1966 = vand.u32 %v156, 4294901760
    %v1967 = vsub.f32 %v156, %v1966
    %v1968 = vand.u32 %v1967, 4294901760
    %1969 = vmatpush.msra.mxu0 %v1968
    %v1970 = vand.u32 %v153, 4294901760
    %v1971 = vsub.f32 %v153, %v1970
    %v1972 = vand.u32 %v1971, 4294901760
    %1973 = vmatpush.msra.mxu0 %v1972
    %v1974 = vand.u32 %v150, 4294901760
    %v1975 = vsub.f32 %v150, %v1974
    %v1976 = vand.u32 %v1975, 4294901760
    %1977 = vmatpush.msra.mxu0 %v1976
    %v1978 = vand.u32 %v147, 4294901760
    %v1979 = vsub.f32 %v147, %v1978
    %v1980 = vand.u32 %v1979, 4294901760
    %1981 = vmatpush.msra.mxu0 %v1980
    %v1982 = vand.u32 %v144, 4294901760
    %v1983 = vsub.f32 %v144, %v1982
    %v1984 = vand.u32 %v1983, 4294901760
    %1985 = vmatpush.msra.mxu0 %v1984
    %v1986 = vand.u32 %v141, 4294901760
    %v1987 = vsub.f32 %v141, %v1986
    %v1988 = vand.u32 %v1987, 4294901760
    %1989 = vmatpush.msra.mxu0 %v1988
    %v1990 = vand.u32 %v138, 4294901760
    %v1991 = vsub.f32 %v138, %v1990
    %v1992 = vand.u32 %v1991, 4294901760
    %1993 = vmatpush.msra.mxu0 %v1992
    %v1994 = vand.u32 %v135, 4294901760
    %v1995 = vsub.f32 %v135, %v1994
    %v1996 = vand.u32 %v1995, 4294901760
    %1997 = vmatpush.msra.mxu0 %v1996
    %v1998 = vand.u32 %v132, 4294901760
    %v1999 = vsub.f32 %v132, %v1998
    %v2000 = vand.u32 %v1999, 4294901760
    %2001 = vmatpush.msra.mxu0 %v2000
    %v2002 = vand.u32 %v129, 4294901760
    %v2003 = vsub.f32 %v129, %v2002
    %v2004 = vand.u32 %v2003, 4294901760
    %2005 = vmatpush.msra.mxu0 %v2004
    %v2006 = vand.u32 %v126, 4294901760
    %v2007 = vsub.f32 %v126, %v2006
    %v2008 = vand.u32 %v2007, 4294901760
    %2009 = vmatpush.msra.mxu0 %v2008
    %v2010 = vand.u32 %v123, 4294901760
    %v2011 = vsub.f32 %v123, %v2010
    %v2012 = vand.u32 %v2011, 4294901760
    %2013 = vmatpush.msra.mxu0 %v2012
    %v2014 = vand.u32 %v120, 4294901760
    %v2015 = vsub.f32 %v120, %v2014
    %v2016 = vand.u32 %v2015, 4294901760
    %2017 = vmatpush.msra.mxu0 %v2016
    %v2018 = vand.u32 %v117, 4294901760
    %v2019 = vsub.f32 %v117, %v2018
    %v2020 = vand.u32 %v2019, 4294901760
    %2021 = vmatpush.msra.mxu0 %v2020
    %v2022 = vand.u32 %v63, 4294901760
    %2023 = vmatmul.f32.gmra.mxu0 %v2022
    %v2024 = vpop.f32.mrf.mxu0
    %v2025 = vadd.f32 %v1950, %v2024
    %v2026 = vand.u32 %v66, 4294901760
    %2027 = vmatmul.f32.gmra.mxu0 %v2026
    %v2028 = vpop.f32.mrf.mxu0
    %v2029 = vadd.f32 %v1956, %v2028
    %2030 = vdwg.mxu0
    %v2031 = vand.u32 %v162, 4294901760
    %2032 = vmatpush.msra.mxu0 %v2031
    %v2033 = vand.u32 %v159, 4294901760
    %2034 = vmatpush.msra.mxu0 %v2033
    %v2035 = vand.u32 %v156, 4294901760
    %2036 = vmatpush.msra.mxu0 %v2035
    %v2037 = vand.u32 %v153, 4294901760
    %2038 = vmatpush.msra.mxu0 %v2037
    %v2039 = vand.u32 %v150, 4294901760
    %2040 = vmatpush.msra.mxu0 %v2039
    %v2041 = vand.u32 %v147, 4294901760
    %2042 = vmatpush.msra.mxu0 %v2041
    %v2043 = vand.u32 %v144, 4294901760
    %2044 = vmatpush.msra.mxu0 %v2043
    %v2045 = vand.u32 %v141, 4294901760
    %2046 = vmatpush.msra.mxu0 %v2045
    %v2047 = vand.u32 %v138, 4294901760
    %2048 = vmatpush.msra.mxu0 %v2047
    %v2049 = vand.u32 %v135, 4294901760
    %2050 = vmatpush.msra.mxu0 %v2049
    %v2051 = vand.u32 %v132, 4294901760
    %2052 = vmatpush.msra.mxu0 %v2051
    %v2053 = vand.u32 %v129, 4294901760
    %2054 = vmatpush.msra.mxu0 %v2053
    %v2055 = vand.u32 %v126, 4294901760
    %2056 = vmatpush.msra.mxu0 %v2055
    %v2057 = vand.u32 %v123, 4294901760
    %2058 = vmatpush.msra.mxu0 %v2057
    %v2059 = vand.u32 %v120, 4294901760
    %2060 = vmatpush.msra.mxu0 %v2059
    %v2061 = vand.u32 %v117, 4294901760
    %2062 = vmatpush.msra.mxu0 %v2061
    %v2063 = vand.u32 %v63, 4294901760
    %2064 = vmatmul.f32.gmra.mxu0 %v2063
    %v2065 = vpop.f32.mrf.mxu0
    %v2066 = vadd.f32 %v2025, %v2065
    %v2067 = vand.u32 %v66, 4294901760
    %2068 = vmatmul.f32.gmra.mxu0 %v2067
    %v2069 = vpop.f32.mrf.mxu0
    %v2070 = vadd.f32 %v2029, %v2069
    %2071 = vdwg.mxu0
    %v2072 = vand.u32 %v210, 4294901760
    %2073 = vmatpush.msra.mxu0 %v2072
    %v2074 = vand.u32 %v207, 4294901760
    %2075 = vmatpush.msra.mxu0 %v2074
    %v2076 = vand.u32 %v204, 4294901760
    %2077 = vmatpush.msra.mxu0 %v2076
    %v2078 = vand.u32 %v201, 4294901760
    %2079 = vmatpush.msra.mxu0 %v2078
    %v2080 = vand.u32 %v198, 4294901760
    %2081 = vmatpush.msra.mxu0 %v2080
    %v2082 = vand.u32 %v195, 4294901760
    %2083 = vmatpush.msra.mxu0 %v2082
    %v2084 = vand.u32 %v192, 4294901760
    %2085 = vmatpush.msra.mxu0 %v2084
    %v2086 = vand.u32 %v189, 4294901760
    %2087 = vmatpush.msra.mxu0 %v2086
    %v2088 = vand.u32 %v186, 4294901760
    %2089 = vmatpush.msra.mxu0 %v2088
    %v2090 = vand.u32 %v183, 4294901760
    %2091 = vmatpush.msra.mxu0 %v2090
    %v2092 = vand.u32 %v180, 4294901760
    %2093 = vmatpush.msra.mxu0 %v2092
    %v2094 = vand.u32 %v177, 4294901760
    %2095 = vmatpush.msra.mxu0 %v2094
    %v2096 = vand.u32 %v174, 4294901760
    %2097 = vmatpush.msra.mxu0 %v2096
    %v2098 = vand.u32 %v171, 4294901760
    %2099 = vmatpush.msra.mxu0 %v2098
    %v2100 = vand.u32 %v168, 4294901760
    %2101 = vmatpush.msra.mxu0 %v2100
    %v2102 = vand.u32 %v165, 4294901760
    %2103 = vmatpush.msra.mxu0 %v2102
    %v2104 = vand.u32 %v64, 4294901760
    %v2105 = vsub.f32 %v64, %v2104
    %v2106 = vand.u32 %v2105, 4294901760
    %v2107 = vsub.f32 %v2105, %v2106
    %v2108 = vand.u32 %v2107, 4294901760
    %2109 = vmatmul.f32.gmra.mxu0 %v2108
    %v2110 = vpop.f32.mrf.mxu0
    %v2111 = vadd.f32 %v2066, %v2110
    %v2112 = vand.u32 %v67, 4294901760
    %v2113 = vsub.f32 %v67, %v2112
    %v2114 = vand.u32 %v2113, 4294901760
    %v2115 = vsub.f32 %v2113, %v2114
    %v2116 = vand.u32 %v2115, 4294901760
    %2117 = vmatmul.f32.gmra.mxu0 %v2116
    %v2118 = vpop.f32.mrf.mxu0
    %v2119 = vadd.f32 %v2070, %v2118
    %2120 = vdwg.mxu0
    %v2121 = vand.u32 %v210, 4294901760
    %v2122 = vsub.f32 %v210, %v2121
    %v2123 = vand.u32 %v2122, 4294901760
    %v2124 = vsub.f32 %v2122, %v2123
    %v2125 = vand.u32 %v2124, 4294901760
    %2126 = vmatpush.msra.mxu0 %v2125
    %v2127 = vand.u32 %v207, 4294901760
    %v2128 = vsub.f32 %v207, %v2127
    %v2129 = vand.u32 %v2128, 4294901760
    %v2130 = vsub.f32 %v2128, %v2129
    %v2131 = vand.u32 %v2130, 4294901760
    %2132 = vmatpush.msra.mxu0 %v2131
    %v2133 = vand.u32 %v204, 4294901760
    %v2134 = vsub.f32 %v204, %v2133
    %v2135 = vand.u32 %v2134, 4294901760
    %v2136 = vsub.f32 %v2134, %v2135
    %v2137 = vand.u32 %v2136, 4294901760
    %2138 = vmatpush.msra.mxu0 %v2137
    %v2139 = vand.u32 %v201, 4294901760
    %v2140 = vsub.f32 %v201, %v2139
    %v2141 = vand.u32 %v2140, 4294901760
    %v2142 = vsub.f32 %v2140, %v2141
    %v2143 = vand.u32 %v2142, 4294901760
    %2144 = vmatpush.msra.mxu0 %v2143
    %v2145 = vand.u32 %v198, 4294901760
    %v2146 = vsub.f32 %v198, %v2145
    %v2147 = vand.u32 %v2146, 4294901760
    %v2148 = vsub.f32 %v2146, %v2147
    %v2149 = vand.u32 %v2148, 4294901760
    %2150 = vmatpush.msra.mxu0 %v2149
    %v2151 = vand.u32 %v195, 4294901760
    %v2152 = vsub.f32 %v195, %v2151
    %v2153 = vand.u32 %v2152, 4294901760
    %v2154 = vsub.f32 %v2152, %v2153
    %v2155 = vand.u32 %v2154, 4294901760
    %2156 = vmatpush.msra.mxu0 %v2155
    %v2157 = vand.u32 %v192, 4294901760
    %v2158 = vsub.f32 %v192, %v2157
    %v2159 = vand.u32 %v2158, 4294901760
    %v2160 = vsub.f32 %v2158, %v2159
    %v2161 = vand.u32 %v2160, 4294901760
    %2162 = vmatpush.msra.mxu0 %v2161
    %v2163 = vand.u32 %v189, 4294901760
    %v2164 = vsub.f32 %v189, %v2163
    %v2165 = vand.u32 %v2164, 4294901760
    %v2166 = vsub.f32 %v2164, %v2165
    %v2167 = vand.u32 %v2166, 4294901760
    %2168 = vmatpush.msra.mxu0 %v2167
    %v2169 = vand.u32 %v186, 4294901760
    %v2170 = vsub.f32 %v186, %v2169
    %v2171 = vand.u32 %v2170, 4294901760
    %v2172 = vsub.f32 %v2170, %v2171
    %v2173 = vand.u32 %v2172, 4294901760
    %2174 = vmatpush.msra.mxu0 %v2173
    %v2175 = vand.u32 %v183, 4294901760
    %v2176 = vsub.f32 %v183, %v2175
    %v2177 = vand.u32 %v2176, 4294901760
    %v2178 = vsub.f32 %v2176, %v2177
    %v2179 = vand.u32 %v2178, 4294901760
    %2180 = vmatpush.msra.mxu0 %v2179
    %v2181 = vand.u32 %v180, 4294901760
    %v2182 = vsub.f32 %v180, %v2181
    %v2183 = vand.u32 %v2182, 4294901760
    %v2184 = vsub.f32 %v2182, %v2183
    %v2185 = vand.u32 %v2184, 4294901760
    %2186 = vmatpush.msra.mxu0 %v2185
    %v2187 = vand.u32 %v177, 4294901760
    %v2188 = vsub.f32 %v177, %v2187
    %v2189 = vand.u32 %v2188, 4294901760
    %v2190 = vsub.f32 %v2188, %v2189
    %v2191 = vand.u32 %v2190, 4294901760
    %2192 = vmatpush.msra.mxu0 %v2191
    %v2193 = vand.u32 %v174, 4294901760
    %v2194 = vsub.f32 %v174, %v2193
    %v2195 = vand.u32 %v2194, 4294901760
    %v2196 = vsub.f32 %v2194, %v2195
    %v2197 = vand.u32 %v2196, 4294901760
    %2198 = vmatpush.msra.mxu0 %v2197
    %v2199 = vand.u32 %v171, 4294901760
    %v2200 = vsub.f32 %v171, %v2199
    %v2201 = vand.u32 %v2200, 4294901760
    %v2202 = vsub.f32 %v2200, %v2201
    %v2203 = vand.u32 %v2202, 4294901760
    %2204 = vmatpush.msra.mxu0 %v2203
    %v2205 = vand.u32 %v168, 4294901760
    %v2206 = vsub.f32 %v168, %v2205
    %v2207 = vand.u32 %v2206, 4294901760
    %v2208 = vsub.f32 %v2206, %v2207
    %v2209 = vand.u32 %v2208, 4294901760
    %2210 = vmatpush.msra.mxu0 %v2209
    %v2211 = vand.u32 %v165, 4294901760
    %v2212 = vsub.f32 %v165, %v2211
    %v2213 = vand.u32 %v2212, 4294901760
    %v2214 = vsub.f32 %v2212, %v2213
    %v2215 = vand.u32 %v2214, 4294901760
    %2216 = vmatpush.msra.mxu0 %v2215
    %v2217 = vand.u32 %v64, 4294901760
    %2218 = vmatmul.f32.gmra.mxu0 %v2217
    %v2219 = vpop.f32.mrf.mxu0
    %v2220 = vadd.f32 %v2111, %v2219
    %v2221 = vand.u32 %v67, 4294901760
    %2222 = vmatmul.f32.gmra.mxu0 %v2221
    %v2223 = vpop.f32.mrf.mxu0
    %v2224 = vadd.f32 %v2119, %v2223
    %2225 = vdwg.mxu0
    %v2226 = vand.u32 %v210, 4294901760
    %v2227 = vsub.f32 %v210, %v2226
    %2228 = vmatpush.msra.mxu0 %v2227
    %v2229 = vand.u32 %v207, 4294901760
    %v2230 = vsub.f32 %v207, %v2229
    %2231 = vmatpush.msra.mxu0 %v2230
    %v2232 = vand.u32 %v204, 4294901760
    %v2233 = vsub.f32 %v204, %v2232
    %2234 = vmatpush.msra.mxu0 %v2233
    %v2235 = vand.u32 %v201, 4294901760
    %v2236 = vsub.f32 %v201, %v2235
    %2237 = vmatpush.msra.mxu0 %v2236
    %v2238 = vand.u32 %v198, 4294901760
    %v2239 = vsub.f32 %v198, %v2238
    %2240 = vmatpush.msra.mxu0 %v2239
    %v2241 = vand.u32 %v195, 4294901760
    %v2242 = vsub.f32 %v195, %v2241
    %2243 = vmatpush.msra.mxu0 %v2242
    %v2244 = vand.u32 %v192, 4294901760
    %v2245 = vsub.f32 %v192, %v2244
    %2246 = vmatpush.msra.mxu0 %v2245
    %v2247 = vand.u32 %v189, 4294901760
    %v2248 = vsub.f32 %v189, %v2247
    %2249 = vmatpush.msra.mxu0 %v2248
    %v2250 = vand.u32 %v186, 4294901760
    %v2251 = vsub.f32 %v186, %v2250
    %2252 = vmatpush.msra.mxu0 %v2251
    %v2253 = vand.u32 %v183, 4294901760
    %v2254 = vsub.f32 %v183, %v2253
    %2255 = vmatpush.msra.mxu0 %v2254
    %v2256 = vand.u32 %v180, 4294901760
    %v2257 = vsub.f32 %v180, %v2256
    %2258 = vmatpush.msra.mxu0 %v2257
    %v2259 = vand.u32 %v177, 4294901760
    %v2260 = vsub.f32 %v177, %v2259
    %2261 = vmatpush.msra.mxu0 %v2260
    %v2262 = vand.u32 %v174, 4294901760
    %v2263 = vsub.f32 %v174, %v2262
    %2264 = vmatpush.msra.mxu0 %v2263
    %v2265 = vand.u32 %v171, 4294901760
    %v2266 = vsub.f32 %v171, %v2265
    %2267 = vmatpush.msra.mxu0 %v2266
    %v2268 = vand.u32 %v168, 4294901760
    %v2269 = vsub.f32 %v168, %v2268
    %2270 = vmatpush.msra.mxu0 %v2269
    %v2271 = vand.u32 %v165, 4294901760
    %v2272 = vsub.f32 %v165, %v2271
    %2273 = vmatpush.msra.mxu0 %v2272
    %v2274 = vand.u32 %v64, 4294901760
    %v2275 = vsub.f32 %v64, %v2274
    %2276 = vmatmul.f32.gmra.mxu0 %v2275
    %v2277 = vpop.f32.mrf.mxu0
    %v2278 = vadd.f32 %v2220, %v2277
    %v2279 = vand.u32 %v67, 4294901760
    %v2280 = vsub.f32 %v67, %v2279
    %2281 = vmatmul.f32.gmra.mxu0 %v2280
    %v2282 = vpop.f32.mrf.mxu0
    %v2283 = vadd.f32 %v2224, %v2282
    %2284 = vdwg.mxu0
    %v2285 = vand.u32 %v210, 4294901760
    %2286 = vmatpush.msra.mxu0 %v2285
    %v2287 = vand.u32 %v207, 4294901760
    %2288 = vmatpush.msra.mxu0 %v2287
    %v2289 = vand.u32 %v204, 4294901760
    %2290 = vmatpush.msra.mxu0 %v2289
    %v2291 = vand.u32 %v201, 4294901760
    %2292 = vmatpush.msra.mxu0 %v2291
    %v2293 = vand.u32 %v198, 4294901760
    %2294 = vmatpush.msra.mxu0 %v2293
    %v2295 = vand.u32 %v195, 4294901760
    %2296 = vmatpush.msra.mxu0 %v2295
    %v2297 = vand.u32 %v192, 4294901760
    %2298 = vmatpush.msra.mxu0 %v2297
    %v2299 = vand.u32 %v189, 4294901760
    %2300 = vmatpush.msra.mxu0 %v2299
    %v2301 = vand.u32 %v186, 4294901760
    %2302 = vmatpush.msra.mxu0 %v2301
    %v2303 = vand.u32 %v183, 4294901760
    %2304 = vmatpush.msra.mxu0 %v2303
    %v2305 = vand.u32 %v180, 4294901760
    %2306 = vmatpush.msra.mxu0 %v2305
    %v2307 = vand.u32 %v177, 4294901760
    %2308 = vmatpush.msra.mxu0 %v2307
    %v2309 = vand.u32 %v174, 4294901760
    %2310 = vmatpush.msra.mxu0 %v2309
    %v2311 = vand.u32 %v171, 4294901760
    %2312 = vmatpush.msra.mxu0 %v2311
    %v2313 = vand.u32 %v168, 4294901760
    %2314 = vmatpush.msra.mxu0 %v2313
    %v2315 = vand.u32 %v165, 4294901760
    %2316 = vmatpush.msra.mxu0 %v2315
    %v2317 = vand.u32 %v64, 4294901760
    %v2318 = vsub.f32 %v64, %v2317
    %v2319 = vand.u32 %v2318, 4294901760
    %2320 = vmatmul.f32.gmra.mxu0 %v2319
    %v2321 = vpop.f32.mrf.mxu0
    %v2322 = vadd.f32 %v2278, %v2321
    %v2323 = vand.u32 %v67, 4294901760
    %v2324 = vsub.f32 %v67, %v2323
    %v2325 = vand.u32 %v2324, 4294901760
    %2326 = vmatmul.f32.gmra.mxu0 %v2325
    %v2327 = vpop.f32.mrf.mxu0
    %v2328 = vadd.f32 %v2283, %v2327
    %2329 = vdwg.mxu0
    %v2330 = vand.u32 %v210, 4294901760
    %v2331 = vsub.f32 %v210, %v2330
    %v2332 = vand.u32 %v2331, 4294901760
    %2333 = vmatpush.msra.mxu0 %v2332
    %v2334 = vand.u32 %v207, 4294901760
    %v2335 = vsub.f32 %v207, %v2334
    %v2336 = vand.u32 %v2335, 4294901760
    %2337 = vmatpush.msra.mxu0 %v2336
    %v2338 = vand.u32 %v204, 4294901760
    %v2339 = vsub.f32 %v204, %v2338
    %v2340 = vand.u32 %v2339, 4294901760
    %2341 = vmatpush.msra.mxu0 %v2340
    %v2342 = vand.u32 %v201, 4294901760
    %v2343 = vsub.f32 %v201, %v2342
    %v2344 = vand.u32 %v2343, 4294901760
    %2345 = vmatpush.msra.mxu0 %v2344
    %v2346 = vand.u32 %v198, 4294901760
    %v2347 = vsub.f32 %v198, %v2346
    %v2348 = vand.u32 %v2347, 4294901760
    %2349 = vmatpush.msra.mxu0 %v2348
    %v2350 = vand.u32 %v195, 4294901760
    %v2351 = vsub.f32 %v195, %v2350
    %v2352 = vand.u32 %v2351, 4294901760
    %2353 = vmatpush.msra.mxu0 %v2352
    %v2354 = vand.u32 %v192, 4294901760
    %v2355 = vsub.f32 %v192, %v2354
    %v2356 = vand.u32 %v2355, 4294901760
    %2357 = vmatpush.msra.mxu0 %v2356
    %v2358 = vand.u32 %v189, 4294901760
    %v2359 = vsub.f32 %v189, %v2358
    %v2360 = vand.u32 %v2359, 4294901760
    %2361 = vmatpush.msra.mxu0 %v2360
    %v2362 = vand.u32 %v186, 4294901760
    %v2363 = vsub.f32 %v186, %v2362
    %v2364 = vand.u32 %v2363, 4294901760
    %2365 = vmatpush.msra.mxu0 %v2364
    %v2366 = vand.u32 %v183, 4294901760
    %v2367 = vsub.f32 %v183, %v2366
    %v2368 = vand.u32 %v2367, 4294901760
    %2369 = vmatpush.msra.mxu0 %v2368
    %v2370 = vand.u32 %v180, 4294901760
    %v2371 = vsub.f32 %v180, %v2370
    %v2372 = vand.u32 %v2371, 4294901760
    %2373 = vmatpush.msra.mxu0 %v2372
    %v2374 = vand.u32 %v177, 4294901760
    %v2375 = vsub.f32 %v177, %v2374
    %v2376 = vand.u32 %v2375, 4294901760
    %2377 = vmatpush.msra.mxu0 %v2376
    %v2378 = vand.u32 %v174, 4294901760
    %v2379 = vsub.f32 %v174, %v2378
    %v2380 = vand.u32 %v2379, 4294901760
    %2381 = vmatpush.msra.mxu0 %v2380
    %v2382 = vand.u32 %v171, 4294901760
    %v2383 = vsub.f32 %v171, %v2382
    %v2384 = vand.u32 %v2383, 4294901760
    %2385 = vmatpush.msra.mxu0 %v2384
    %v2386 = vand.u32 %v168, 4294901760
    %v2387 = vsub.f32 %v168, %v2386
    %v2388 = vand.u32 %v2387, 4294901760
    %2389 = vmatpush.msra.mxu0 %v2388
    %v2390 = vand.u32 %v165, 4294901760
    %v2391 = vsub.f32 %v165, %v2390
    %v2392 = vand.u32 %v2391, 4294901760
    %2393 = vmatpush.msra.mxu0 %v2392
    %v2394 = vand.u32 %v64, 4294901760
    %2395 = vmatmul.f32.gmra.mxu0 %v2394
    %v2396 = vpop.f32.mrf.mxu0
    %v2397 = vadd.f32 %v2322, %v2396
    %v2398 = vand.u32 %v67, 4294901760
    %2399 = vmatmul.f32.gmra.mxu0 %v2398
    %v2400 = vpop.f32.mrf.mxu0
    %v2401 = vadd.f32 %v2328, %v2400
    %2402 = vdwg.mxu0
    %v2403 = vand.u32 %v210, 4294901760
    %2404 = vmatpush.msra.mxu0 %v2403
    %v2405 = vand.u32 %v207, 4294901760
    %2406 = vmatpush.msra.mxu0 %v2405
    %v2407 = vand.u32 %v204, 4294901760
    %2408 = vmatpush.msra.mxu0 %v2407
    %v2409 = vand.u32 %v201, 4294901760
    %2410 = vmatpush.msra.mxu0 %v2409
    %v2411 = vand.u32 %v198, 4294901760
    %2412 = vmatpush.msra.mxu0 %v2411
    %v2413 = vand.u32 %v195, 4294901760
    %2414 = vmatpush.msra.mxu0 %v2413
    %v2415 = vand.u32 %v192, 4294901760
    %2416 = vmatpush.msra.mxu0 %v2415
    %v2417 = vand.u32 %v189, 4294901760
    %2418 = vmatpush.msra.mxu0 %v2417
    %v2419 = vand.u32 %v186, 4294901760
    %2420 = vmatpush.msra.mxu0 %v2419
    %v2421 = vand.u32 %v183, 4294901760
    %2422 = vmatpush.msra.mxu0 %v2421
    %v2423 = vand.u32 %v180, 4294901760
    %2424 = vmatpush.msra.mxu0 %v2423
    %v2425 = vand.u32 %v177, 4294901760
    %2426 = vmatpush.msra.mxu0 %v2425
    %v2427 = vand.u32 %v174, 4294901760
    %2428 = vmatpush.msra.mxu0 %v2427
    %v2429 = vand.u32 %v171, 4294901760
    %2430 = vmatpush.msra.mxu0 %v2429
    %v2431 = vand.u32 %v168, 4294901760
    %2432 = vmatpush.msra.mxu0 %v2431
    %v2433 = vand.u32 %v165, 4294901760
    %2434 = vmatpush.msra.mxu0 %v2433
    %v2435 = vand.u32 %v64, 4294901760
    %2436 = vmatmul.f32.gmra.mxu0 %v2435
    %v2437 = vpop.f32.mrf.mxu0
    %v2438 = vadd.f32 %v2397, %v2437
    %v2439 = vand.u32 %v67, 4294901760
    %2440 = vmatmul.f32.gmra.mxu0 %v2439
    %v2441 = vpop.f32.mrf.mxu0
    %v2442 = vadd.f32 %v2401, %v2441
    %2443 = vdwg.mxu0
    %v2444 = vand.u32 %v115, 4294901760
    %2445 = vmatpush.msra.mxu0 %v2444
    %v2446 = vand.u32 %v112, 4294901760
    %2447 = vmatpush.msra.mxu0 %v2446
    %v2448 = vand.u32 %v109, 4294901760
    %2449 = vmatpush.msra.mxu0 %v2448
    %v2450 = vand.u32 %v106, 4294901760
    %2451 = vmatpush.msra.mxu0 %v2450
    %v2452 = vand.u32 %v103, 4294901760
    %2453 = vmatpush.msra.mxu0 %v2452
    %v2454 = vand.u32 %v100, 4294901760
    %2455 = vmatpush.msra.mxu0 %v2454
    %v2456 = vand.u32 %v97, 4294901760
    %2457 = vmatpush.msra.mxu0 %v2456
    %v2458 = vand.u32 %v94, 4294901760
    %2459 = vmatpush.msra.mxu0 %v2458
    %v2460 = vand.u32 %v91, 4294901760
    %2461 = vmatpush.msra.mxu0 %v2460
    %v2462 = vand.u32 %v88, 4294901760
    %2463 = vmatpush.msra.mxu0 %v2462
    %v2464 = vand.u32 %v85, 4294901760
    %2465 = vmatpush.msra.mxu0 %v2464
    %v2466 = vand.u32 %v82, 4294901760
    %2467 = vmatpush.msra.mxu0 %v2466
    %v2468 = vand.u32 %v79, 4294901760
    %2469 = vmatpush.msra.mxu0 %v2468
    %v2470 = vand.u32 %v76, 4294901760
    %2471 = vmatpush.msra.mxu0 %v2470
    %v2472 = vand.u32 %v73, 4294901760
    %2473 = vmatpush.msra.mxu0 %v2472
    %v2474 = vand.u32 %v70, 4294901760
    %2475 = vmatpush.msra.mxu0 %v2474
    %v2476 = vand.u32 %v62, 4294901760
    %v2477 = vsub.f32 %v62, %v2476
    %v2478 = vand.u32 %v2477, 4294901760
    %v2479 = vsub.f32 %v2477, %v2478
    %v2480 = vand.u32 %v2479, 4294901760
    %2481 = vmatmul.f32.gmra.mxu0 %v2480
    %v2482 = vpop.f32.mrf.mxu0
    %v2483 = vadd.f32 0.0, %v2482
    %v2484 = vand.u32 %v65, 4294901760
    %v2485 = vsub.f32 %v65, %v2484
    %v2486 = vand.u32 %v2485, 4294901760
    %v2487 = vsub.f32 %v2485, %v2486
    %v2488 = vand.u32 %v2487, 4294901760
    %2489 = vmatmul.f32.gmra.mxu0 %v2488
    %v2490 = vpop.f32.mrf.mxu0
    %v2491 = vadd.f32 0.0, %v2490
    %2492 = vdwg.mxu0
    %v2493 = vand.u32 %v115, 4294901760
    %v2494 = vsub.f32 %v115, %v2493
    %v2495 = vand.u32 %v2494, 4294901760
    %v2496 = vsub.f32 %v2494, %v2495
    %v2497 = vand.u32 %v2496, 4294901760
    %2498 = vmatpush.msra.mxu0 %v2497
    %v2499 = vand.u32 %v112, 4294901760
    %v2500 = vsub.f32 %v112, %v2499
    %v2501 = vand.u32 %v2500, 4294901760
    %v2502 = vsub.f32 %v2500, %v2501
    %v2503 = vand.u32 %v2502, 4294901760
    %2504 = vmatpush.msra.mxu0 %v2503
    %v2505 = vand.u32 %v109, 4294901760
    %v2506 = vsub.f32 %v109, %v2505
    %v2507 = vand.u32 %v2506, 4294901760
    %v2508 = vsub.f32 %v2506, %v2507
    %v2509 = vand.u32 %v2508, 4294901760
    %2510 = vmatpush.msra.mxu0 %v2509
    %v2511 = vand.u32 %v106, 4294901760
    %v2512 = vsub.f32 %v106, %v2511
    %v2513 = vand.u32 %v2512, 4294901760
    %v2514 = vsub.f32 %v2512, %v2513
    %v2515 = vand.u32 %v2514, 4294901760
    %2516 = vmatpush.msra.mxu0 %v2515
    %v2517 = vand.u32 %v103, 4294901760
    %v2518 = vsub.f32 %v103, %v2517
    %v2519 = vand.u32 %v2518, 4294901760
    %v2520 = vsub.f32 %v2518, %v2519
    %v2521 = vand.u32 %v2520, 4294901760
    %2522 = vmatpush.msra.mxu0 %v2521
    %v2523 = vand.u32 %v100, 4294901760
    %v2524 = vsub.f32 %v100, %v2523
    %v2525 = vand.u32 %v2524, 4294901760
    %v2526 = vsub.f32 %v2524, %v2525
    %v2527 = vand.u32 %v2526, 4294901760
    %2528 = vmatpush.msra.mxu0 %v2527
    %v2529 = vand.u32 %v97, 4294901760
    %v2530 = vsub.f32 %v97, %v2529
    %v2531 = vand.u32 %v2530, 4294901760
    %v2532 = vsub.f32 %v2530, %v2531
    %v2533 = vand.u32 %v2532, 4294901760
    %2534 = vmatpush.msra.mxu0 %v2533
    %v2535 = vand.u32 %v94, 4294901760
    %v2536 = vsub.f32 %v94, %v2535
    %v2537 = vand.u32 %v2536, 4294901760
    %v2538 = vsub.f32 %v2536, %v2537
    %v2539 = vand.u32 %v2538, 4294901760
    %2540 = vmatpush.msra.mxu0 %v2539
    %v2541 = vand.u32 %v91, 4294901760
    %v2542 = vsub.f32 %v91, %v2541
    %v2543 = vand.u32 %v2542, 4294901760
    %v2544 = vsub.f32 %v2542, %v2543
    %v2545 = vand.u32 %v2544, 4294901760
    %2546 = vmatpush.msra.mxu0 %v2545
    %v2547 = vand.u32 %v88, 4294901760
    %v2548 = vsub.f32 %v88, %v2547
    %v2549 = vand.u32 %v2548, 4294901760
    %v2550 = vsub.f32 %v2548, %v2549
    %v2551 = vand.u32 %v2550, 4294901760
    %2552 = vmatpush.msra.mxu0 %v2551
    %v2553 = vand.u32 %v85, 4294901760
    %v2554 = vsub.f32 %v85, %v2553
    %v2555 = vand.u32 %v2554, 4294901760
    %v2556 = vsub.f32 %v2554, %v2555
    %v2557 = vand.u32 %v2556, 4294901760
    %2558 = vmatpush.msra.mxu0 %v2557
    %v2559 = vand.u32 %v82, 4294901760
    %v2560 = vsub.f32 %v82, %v2559
    %v2561 = vand.u32 %v2560, 4294901760
    %v2562 = vsub.f32 %v2560, %v2561
    %v2563 = vand.u32 %v2562, 4294901760
    %2564 = vmatpush.msra.mxu0 %v2563
    %v2565 = vand.u32 %v79, 4294901760
    %v2566 = vsub.f32 %v79, %v2565
    %v2567 = vand.u32 %v2566, 4294901760
    %v2568 = vsub.f32 %v2566, %v2567
    %v2569 = vand.u32 %v2568, 4294901760
    %2570 = vmatpush.msra.mxu0 %v2569
    %v2571 = vand.u32 %v76, 4294901760
    %v2572 = vsub.f32 %v76, %v2571
    %v2573 = vand.u32 %v2572, 4294901760
    %v2574 = vsub.f32 %v2572, %v2573
    %v2575 = vand.u32 %v2574, 4294901760
    %2576 = vmatpush.msra.mxu0 %v2575
    %v2577 = vand.u32 %v73, 4294901760
    %v2578 = vsub.f32 %v73, %v2577
    %v2579 = vand.u32 %v2578, 4294901760
    %v2580 = vsub.f32 %v2578, %v2579
    %v2581 = vand.u32 %v2580, 4294901760
    %2582 = vmatpush.msra.mxu0 %v2581
    %v2583 = vand.u32 %v70, 4294901760
    %v2584 = vsub.f32 %v70, %v2583
    %v2585 = vand.u32 %v2584, 4294901760
    %v2586 = vsub.f32 %v2584, %v2585
    %v2587 = vand.u32 %v2586, 4294901760
    %2588 = vmatpush.msra.mxu0 %v2587
    %v2589 = vand.u32 %v62, 4294901760
    %2590 = vmatmul.f32.gmra.mxu0 %v2589
    %v2591 = vpop.f32.mrf.mxu0
    %v2592 = vadd.f32 %v2483, %v2591
    %v2593 = vand.u32 %v65, 4294901760
    %2594 = vmatmul.f32.gmra.mxu0 %v2593
    %v2595 = vpop.f32.mrf.mxu0
    %v2596 = vadd.f32 %v2491, %v2595
    %2597 = vdwg.mxu0
    %v2598 = vand.u32 %v115, 4294901760
    %v2599 = vsub.f32 %v115, %v2598
    %2600 = vmatpush.msra.mxu0 %v2599
    %v2601 = vand.u32 %v112, 4294901760
    %v2602 = vsub.f32 %v112, %v2601
    %2603 = vmatpush.msra.mxu0 %v2602
    %v2604 = vand.u32 %v109, 4294901760
    %v2605 = vsub.f32 %v109, %v2604
    %2606 = vmatpush.msra.mxu0 %v2605
    %v2607 = vand.u32 %v106, 4294901760
    %v2608 = vsub.f32 %v106, %v2607
    %2609 = vmatpush.msra.mxu0 %v2608
    %v2610 = vand.u32 %v103, 4294901760
    %v2611 = vsub.f32 %v103, %v2610
    %2612 = vmatpush.msra.mxu0 %v2611
    %v2613 = vand.u32 %v100, 4294901760
    %v2614 = vsub.f32 %v100, %v2613
    %2615 = vmatpush.msra.mxu0 %v2614
    %v2616 = vand.u32 %v97, 4294901760
    %v2617 = vsub.f32 %v97, %v2616
    %2618 = vmatpush.msra.mxu0 %v2617
    %v2619 = vand.u32 %v94, 4294901760
    %v2620 = vsub.f32 %v94, %v2619
    %2621 = vmatpush.msra.mxu0 %v2620
    %v2622 = vand.u32 %v91, 4294901760
    %v2623 = vsub.f32 %v91, %v2622
    %2624 = vmatpush.msra.mxu0 %v2623
    %v2625 = vand.u32 %v88, 4294901760
    %v2626 = vsub.f32 %v88, %v2625
    %2627 = vmatpush.msra.mxu0 %v2626
    %v2628 = vand.u32 %v85, 4294901760
    %v2629 = vsub.f32 %v85, %v2628
    %2630 = vmatpush.msra.mxu0 %v2629
    %v2631 = vand.u32 %v82, 4294901760
    %v2632 = vsub.f32 %v82, %v2631
    %2633 = vmatpush.msra.mxu0 %v2632
    %v2634 = vand.u32 %v79, 4294901760
    %v2635 = vsub.f32 %v79, %v2634
    %2636 = vmatpush.msra.mxu0 %v2635
    %v2637 = vand.u32 %v76, 4294901760
    %v2638 = vsub.f32 %v76, %v2637
    %2639 = vmatpush.msra.mxu0 %v2638
    %v2640 = vand.u32 %v73, 4294901760
    %v2641 = vsub.f32 %v73, %v2640
    %2642 = vmatpush.msra.mxu0 %v2641
    %v2643 = vand.u32 %v70, 4294901760
    %v2644 = vsub.f32 %v70, %v2643
    %2645 = vmatpush.msra.mxu0 %v2644
    %v2646 = vand.u32 %v62, 4294901760
    %v2647 = vsub.f32 %v62, %v2646
    %2648 = vmatmul.f32.gmra.mxu0 %v2647
    %v2649 = vpop.f32.mrf.mxu0
    %v2650 = vadd.f32 %v2592, %v2649
    %v2651 = vand.u32 %v65, 4294901760
    %v2652 = vsub.f32 %v65, %v2651
    %2653 = vmatmul.f32.gmra.mxu0 %v2652
    %v2654 = vpop.f32.mrf.mxu0
    %v2655 = vadd.f32 %v2596, %v2654
    %2656 = vdwg.mxu0
    %v2657 = vand.u32 %v115, 4294901760
    %2658 = vmatpush.msra.mxu0 %v2657
    %v2659 = vand.u32 %v112, 4294901760
    %2660 = vmatpush.msra.mxu0 %v2659
    %v2661 = vand.u32 %v109, 4294901760
    %2662 = vmatpush.msra.mxu0 %v2661
    %v2663 = vand.u32 %v106, 4294901760
    %2664 = vmatpush.msra.mxu0 %v2663
    %v2665 = vand.u32 %v103, 4294901760
    %2666 = vmatpush.msra.mxu0 %v2665
    %v2667 = vand.u32 %v100, 4294901760
    %2668 = vmatpush.msra.mxu0 %v2667
    %v2669 = vand.u32 %v97, 4294901760
    %2670 = vmatpush.msra.mxu0 %v2669
    %v2671 = vand.u32 %v94, 4294901760
    %2672 = vmatpush.msra.mxu0 %v2671
    %v2673 = vand.u32 %v91, 4294901760
    %2674 = vmatpush.msra.mxu0 %v2673
    %v2675 = vand.u32 %v88, 4294901760
    %2676 = vmatpush.msra.mxu0 %v2675
    %v2677 = vand.u32 %v85, 4294901760
    %2678 = vmatpush.msra.mxu0 %v2677
    %v2679 = vand.u32 %v82, 4294901760
    %2680 = vmatpush.msra.mxu0 %v2679
    %v2681 = vand.u32 %v79, 4294901760
    %2682 = vmatpush.msra.mxu0 %v2681
    %v2683 = vand.u32 %v76, 4294901760
    %2684 = vmatpush.msra.mxu0 %v2683
    %v2685 = vand.u32 %v73, 4294901760
    %2686 = vmatpush.msra.mxu0 %v2685
    %v2687 = vand.u32 %v70, 4294901760
    %2688 = vmatpush.msra.mxu0 %v2687
    %v2689 = vand.u32 %v62, 4294901760
    %v2690 = vsub.f32 %v62, %v2689
    %v2691 = vand.u32 %v2690, 4294901760
    %2692 = vmatmul.f32.gmra.mxu0 %v2691
    %v2693 = vpop.f32.mrf.mxu0
    %v2694 = vadd.f32 %v2650, %v2693
    %v2695 = vand.u32 %v65, 4294901760
    %v2696 = vsub.f32 %v65, %v2695
    %v2697 = vand.u32 %v2696, 4294901760
    %2698 = vmatmul.f32.gmra.mxu0 %v2697
    %v2699 = vpop.f32.mrf.mxu0
    %v2700 = vadd.f32 %v2655, %v2699
    %2701 = vdwg.mxu0
    %v2702 = vand.u32 %v115, 4294901760
    %v2703 = vsub.f32 %v115, %v2702
    %v2704 = vand.u32 %v2703, 4294901760
    %2705 = vmatpush.msra.mxu0 %v2704
    %v2706 = vand.u32 %v112, 4294901760
    %v2707 = vsub.f32 %v112, %v2706
    %v2708 = vand.u32 %v2707, 4294901760
    %2709 = vmatpush.msra.mxu0 %v2708
    %v2710 = vand.u32 %v109, 4294901760
    %v2711 = vsub.f32 %v109, %v2710
    %v2712 = vand.u32 %v2711, 4294901760
    %2713 = vmatpush.msra.mxu0 %v2712
    %v2714 = vand.u32 %v106, 4294901760
    %v2715 = vsub.f32 %v106, %v2714
    %v2716 = vand.u32 %v2715, 4294901760
    %2717 = vmatpush.msra.mxu0 %v2716
    %v2718 = vand.u32 %v103, 4294901760
    %v2719 = vsub.f32 %v103, %v2718
    %v2720 = vand.u32 %v2719, 4294901760
    %2721 = vmatpush.msra.mxu0 %v2720
    %v2722 = vand.u32 %v100, 4294901760
    %v2723 = vsub.f32 %v100, %v2722
    %v2724 = vand.u32 %v2723, 4294901760
    %2725 = vmatpush.msra.mxu0 %v2724
    %v2726 = vand.u32 %v97, 4294901760
    %v2727 = vsub.f32 %v97, %v2726
    %v2728 = vand.u32 %v2727, 4294901760
    %2729 = vmatpush.msra.mxu0 %v2728
    %v2730 = vand.u32 %v94, 4294901760
    %v2731 = vsub.f32 %v94, %v2730
    %v2732 = vand.u32 %v2731, 4294901760
    %2733 = vmatpush.msra.mxu0 %v2732
    %v2734 = vand.u32 %v91, 4294901760
    %v2735 = vsub.f32 %v91, %v2734
    %v2736 = vand.u32 %v2735, 4294901760
    %2737 = vmatpush.msra.mxu0 %v2736
    %v2738 = vand.u32 %v88, 4294901760
    %v2739 = vsub.f32 %v88, %v2738
    %v2740 = vand.u32 %v2739, 4294901760
    %2741 = vmatpush.msra.mxu0 %v2740
    %v2742 = vand.u32 %v85, 4294901760
    %v2743 = vsub.f32 %v85, %v2742
    %v2744 = vand.u32 %v2743, 4294901760
    %2745 = vmatpush.msra.mxu0 %v2744
    %v2746 = vand.u32 %v82, 4294901760
    %v2747 = vsub.f32 %v82, %v2746
    %v2748 = vand.u32 %v2747, 4294901760
    %2749 = vmatpush.msra.mxu0 %v2748
    %v2750 = vand.u32 %v79, 4294901760
    %v2751 = vsub.f32 %v79, %v2750
    %v2752 = vand.u32 %v2751, 4294901760
    %2753 = vmatpush.msra.mxu0 %v2752
    %v2754 = vand.u32 %v76, 4294901760
    %v2755 = vsub.f32 %v76, %v2754
    %v2756 = vand.u32 %v2755, 4294901760
    %2757 = vmatpush.msra.mxu0 %v2756
    %v2758 = vand.u32 %v73, 4294901760
    %v2759 = vsub.f32 %v73, %v2758
    %v2760 = vand.u32 %v2759, 4294901760
    %2761 = vmatpush.msra.mxu0 %v2760
    %v2762 = vand.u32 %v70, 4294901760
    %v2763 = vsub.f32 %v70, %v2762
    %v2764 = vand.u32 %v2763, 4294901760
    %2765 = vmatpush.msra.mxu0 %v2764
    %v2766 = vand.u32 %v62, 4294901760
    %2767 = vmatmul.f32.gmra.mxu0 %v2766
    %v2768 = vpop.f32.mrf.mxu0
    %v2769 = vadd.f32 %v2694, %v2768
    %v2770 = vand.u32 %v65, 4294901760
    %2771 = vmatmul.f32.gmra.mxu0 %v2770
    %v2772 = vpop.f32.mrf.mxu0
    %v2773 = vadd.f32 %v2700, %v2772
    %2774 = vdwg.mxu0
    %v2775 = vand.u32 %v115, 4294901760
    %2776 = vmatpush.msra.mxu0 %v2775
    %v2777 = vand.u32 %v112, 4294901760
    %2778 = vmatpush.msra.mxu0 %v2777
    %v2779 = vand.u32 %v109, 4294901760
    %2780 = vmatpush.msra.mxu0 %v2779
    %v2781 = vand.u32 %v106, 4294901760
    %2782 = vmatpush.msra.mxu0 %v2781
    %v2783 = vand.u32 %v103, 4294901760
    %2784 = vmatpush.msra.mxu0 %v2783
    %v2785 = vand.u32 %v100, 4294901760
    %2786 = vmatpush.msra.mxu0 %v2785
    %v2787 = vand.u32 %v97, 4294901760
    %2788 = vmatpush.msra.mxu0 %v2787
    %v2789 = vand.u32 %v94, 4294901760
    %2790 = vmatpush.msra.mxu0 %v2789
    %v2791 = vand.u32 %v91, 4294901760
    %2792 = vmatpush.msra.mxu0 %v2791
    %v2793 = vand.u32 %v88, 4294901760
    %2794 = vmatpush.msra.mxu0 %v2793
    %v2795 = vand.u32 %v85, 4294901760
    %2796 = vmatpush.msra.mxu0 %v2795
    %v2797 = vand.u32 %v82, 4294901760
    %2798 = vmatpush.msra.mxu0 %v2797
    %v2799 = vand.u32 %v79, 4294901760
    %2800 = vmatpush.msra.mxu0 %v2799
    %v2801 = vand.u32 %v76, 4294901760
    %2802 = vmatpush.msra.mxu0 %v2801
    %v2803 = vand.u32 %v73, 4294901760
    %2804 = vmatpush.msra.mxu0 %v2803
    %v2805 = vand.u32 %v70, 4294901760
    %2806 = vmatpush.msra.mxu0 %v2805
    %v2807 = vand.u32 %v62, 4294901760
    %2808 = vmatmul.f32.gmra.mxu0 %v2807
    %v2809 = vpop.f32.mrf.mxu0
    %v2810 = vadd.f32 %v2769, %v2809
    %v2811 = vand.u32 %v65, 4294901760
    %2812 = vmatmul.f32.gmra.mxu0 %v2811
    %v2813 = vpop.f32.mrf.mxu0
    %v2814 = vadd.f32 %v2773, %v2813
    %2815 = vdwg.mxu0
    %v2816 = vand.u32 %v163, 4294901760
    %2817 = vmatpush.msra.mxu0 %v2816
    %v2818 = vand.u32 %v160, 4294901760
    %2819 = vmatpush.msra.mxu0 %v2818
    %v2820 = vand.u32 %v157, 4294901760
    %2821 = vmatpush.msra.mxu0 %v2820
    %v2822 = vand.u32 %v154, 4294901760
    %2823 = vmatpush.msra.mxu0 %v2822
    %v2824 = vand.u32 %v151, 4294901760
    %2825 = vmatpush.msra.mxu0 %v2824
    %v2826 = vand.u32 %v148, 4294901760
    %2827 = vmatpush.msra.mxu0 %v2826
    %v2828 = vand.u32 %v145, 4294901760
    %2829 = vmatpush.msra.mxu0 %v2828
    %v2830 = vand.u32 %v142, 4294901760
    %2831 = vmatpush.msra.mxu0 %v2830
    %v2832 = vand.u32 %v139, 4294901760
    %2833 = vmatpush.msra.mxu0 %v2832
    %v2834 = vand.u32 %v136, 4294901760
    %2835 = vmatpush.msra.mxu0 %v2834
    %v2836 = vand.u32 %v133, 4294901760
    %2837 = vmatpush.msra.mxu0 %v2836
    %v2838 = vand.u32 %v130, 4294901760
    %2839 = vmatpush.msra.mxu0 %v2838
    %v2840 = vand.u32 %v127, 4294901760
    %2841 = vmatpush.msra.mxu0 %v2840
    %v2842 = vand.u32 %v124, 4294901760
    %2843 = vmatpush.msra.mxu0 %v2842
    %v2844 = vand.u32 %v121, 4294901760
    %2845 = vmatpush.msra.mxu0 %v2844
    %v2846 = vand.u32 %v118, 4294901760
    %2847 = vmatpush.msra.mxu0 %v2846
    %v2848 = vand.u32 %v63, 4294901760
    %v2849 = vsub.f32 %v63, %v2848
    %v2850 = vand.u32 %v2849, 4294901760
    %v2851 = vsub.f32 %v2849, %v2850
    %v2852 = vand.u32 %v2851, 4294901760
    %2853 = vmatmul.f32.gmra.mxu0 %v2852
    %v2854 = vpop.f32.mrf.mxu0
    %v2855 = vadd.f32 %v2810, %v2854
    %v2856 = vand.u32 %v66, 4294901760
    %v2857 = vsub.f32 %v66, %v2856
    %v2858 = vand.u32 %v2857, 4294901760
    %v2859 = vsub.f32 %v2857, %v2858
    %v2860 = vand.u32 %v2859, 4294901760
    %2861 = vmatmul.f32.gmra.mxu0 %v2860
    %v2862 = vpop.f32.mrf.mxu0
    %v2863 = vadd.f32 %v2814, %v2862
    %2864 = vdwg.mxu0
    %v2865 = vand.u32 %v163, 4294901760
    %v2866 = vsub.f32 %v163, %v2865
    %v2867 = vand.u32 %v2866, 4294901760
    %v2868 = vsub.f32 %v2866, %v2867
    %v2869 = vand.u32 %v2868, 4294901760
    %2870 = vmatpush.msra.mxu0 %v2869
    %v2871 = vand.u32 %v160, 4294901760
    %v2872 = vsub.f32 %v160, %v2871
    %v2873 = vand.u32 %v2872, 4294901760
    %v2874 = vsub.f32 %v2872, %v2873
    %v2875 = vand.u32 %v2874, 4294901760
    %2876 = vmatpush.msra.mxu0 %v2875
    %v2877 = vand.u32 %v157, 4294901760
    %v2878 = vsub.f32 %v157, %v2877
    %v2879 = vand.u32 %v2878, 4294901760
    %v2880 = vsub.f32 %v2878, %v2879
    %v2881 = vand.u32 %v2880, 4294901760
    %2882 = vmatpush.msra.mxu0 %v2881
    %v2883 = vand.u32 %v154, 4294901760
    %v2884 = vsub.f32 %v154, %v2883
    %v2885 = vand.u32 %v2884, 4294901760
    %v2886 = vsub.f32 %v2884, %v2885
    %v2887 = vand.u32 %v2886, 4294901760
    %2888 = vmatpush.msra.mxu0 %v2887
    %v2889 = vand.u32 %v151, 4294901760
    %v2890 = vsub.f32 %v151, %v2889
    %v2891 = vand.u32 %v2890, 4294901760
    %v2892 = vsub.f32 %v2890, %v2891
    %v2893 = vand.u32 %v2892, 4294901760
    %2894 = vmatpush.msra.mxu0 %v2893
    %v2895 = vand.u32 %v148, 4294901760
    %v2896 = vsub.f32 %v148, %v2895
    %v2897 = vand.u32 %v2896, 4294901760
    %v2898 = vsub.f32 %v2896, %v2897
    %v2899 = vand.u32 %v2898, 4294901760
    %2900 = vmatpush.msra.mxu0 %v2899
    %v2901 = vand.u32 %v145, 4294901760
    %v2902 = vsub.f32 %v145, %v2901
    %v2903 = vand.u32 %v2902, 4294901760
    %v2904 = vsub.f32 %v2902, %v2903
    %v2905 = vand.u32 %v2904, 4294901760
    %2906 = vmatpush.msra.mxu0 %v2905
    %v2907 = vand.u32 %v142, 4294901760
    %v2908 = vsub.f32 %v142, %v2907
    %v2909 = vand.u32 %v2908, 4294901760
    %v2910 = vsub.f32 %v2908, %v2909
    %v2911 = vand.u32 %v2910, 4294901760
    %2912 = vmatpush.msra.mxu0 %v2911
    %v2913 = vand.u32 %v139, 4294901760
    %v2914 = vsub.f32 %v139, %v2913
    %v2915 = vand.u32 %v2914, 4294901760
    %v2916 = vsub.f32 %v2914, %v2915
    %v2917 = vand.u32 %v2916, 4294901760
    %2918 = vmatpush.msra.mxu0 %v2917
    %v2919 = vand.u32 %v136, 4294901760
    %v2920 = vsub.f32 %v136, %v2919
    %v2921 = vand.u32 %v2920, 4294901760
    %v2922 = vsub.f32 %v2920, %v2921
    %v2923 = vand.u32 %v2922, 4294901760
    %2924 = vmatpush.msra.mxu0 %v2923
    %v2925 = vand.u32 %v133, 4294901760
    %v2926 = vsub.f32 %v133, %v2925
    %v2927 = vand.u32 %v2926, 4294901760
    %v2928 = vsub.f32 %v2926, %v2927
    %v2929 = vand.u32 %v2928, 4294901760
    %2930 = vmatpush.msra.mxu0 %v2929
    %v2931 = vand.u32 %v130, 4294901760
    %v2932 = vsub.f32 %v130, %v2931
    %v2933 = vand.u32 %v2932, 4294901760
    %v2934 = vsub.f32 %v2932, %v2933
    %v2935 = vand.u32 %v2934, 4294901760
    %2936 = vmatpush.msra.mxu0 %v2935
    %v2937 = vand.u32 %v127, 4294901760
    %v2938 = vsub.f32 %v127, %v2937
    %v2939 = vand.u32 %v2938, 4294901760
    %v2940 = vsub.f32 %v2938, %v2939
    %v2941 = vand.u32 %v2940, 4294901760
    %2942 = vmatpush.msra.mxu0 %v2941
    %v2943 = vand.u32 %v124, 4294901760
    %v2944 = vsub.f32 %v124, %v2943
    %v2945 = vand.u32 %v2944, 4294901760
    %v2946 = vsub.f32 %v2944, %v2945
    %v2947 = vand.u32 %v2946, 4294901760
    %2948 = vmatpush.msra.mxu0 %v2947
    %v2949 = vand.u32 %v121, 4294901760
    %v2950 = vsub.f32 %v121, %v2949
    %v2951 = vand.u32 %v2950, 4294901760
    %v2952 = vsub.f32 %v2950, %v2951
    %v2953 = vand.u32 %v2952, 4294901760
    %2954 = vmatpush.msra.mxu0 %v2953
    %v2955 = vand.u32 %v118, 4294901760
    %v2956 = vsub.f32 %v118, %v2955
    %v2957 = vand.u32 %v2956, 4294901760
    %v2958 = vsub.f32 %v2956, %v2957
    %v2959 = vand.u32 %v2958, 4294901760
    %2960 = vmatpush.msra.mxu0 %v2959
    %v2961 = vand.u32 %v63, 4294901760
    %2962 = vmatmul.f32.gmra.mxu0 %v2961
    %v2963 = vpop.f32.mrf.mxu0
    %v2964 = vadd.f32 %v2855, %v2963
    %v2965 = vand.u32 %v66, 4294901760
    %2966 = vmatmul.f32.gmra.mxu0 %v2965
    %v2967 = vpop.f32.mrf.mxu0
    %v2968 = vadd.f32 %v2863, %v2967
    %2969 = vdwg.mxu0
    %v2970 = vand.u32 %v163, 4294901760
    %v2971 = vsub.f32 %v163, %v2970
    %2972 = vmatpush.msra.mxu0 %v2971
    %v2973 = vand.u32 %v160, 4294901760
    %v2974 = vsub.f32 %v160, %v2973
    %2975 = vmatpush.msra.mxu0 %v2974
    %v2976 = vand.u32 %v157, 4294901760
    %v2977 = vsub.f32 %v157, %v2976
    %2978 = vmatpush.msra.mxu0 %v2977
    %v2979 = vand.u32 %v154, 4294901760
    %v2980 = vsub.f32 %v154, %v2979
    %2981 = vmatpush.msra.mxu0 %v2980
    %v2982 = vand.u32 %v151, 4294901760
    %v2983 = vsub.f32 %v151, %v2982
    %2984 = vmatpush.msra.mxu0 %v2983
    %v2985 = vand.u32 %v148, 4294901760
    %v2986 = vsub.f32 %v148, %v2985
    %2987 = vmatpush.msra.mxu0 %v2986
    %v2988 = vand.u32 %v145, 4294901760
    %v2989 = vsub.f32 %v145, %v2988
    %2990 = vmatpush.msra.mxu0 %v2989
    %v2991 = vand.u32 %v142, 4294901760
    %v2992 = vsub.f32 %v142, %v2991
    %2993 = vmatpush.msra.mxu0 %v2992
    %v2994 = vand.u32 %v139, 4294901760
    %v2995 = vsub.f32 %v139, %v2994
    %2996 = vmatpush.msra.mxu0 %v2995
    %v2997 = vand.u32 %v136, 4294901760
    %v2998 = vsub.f32 %v136, %v2997
    %2999 = vmatpush.msra.mxu0 %v2998
    %v3000 = vand.u32 %v133, 4294901760
    %v3001 = vsub.f32 %v133, %v3000
    %3002 = vmatpush.msra.mxu0 %v3001
    %v3003 = vand.u32 %v130, 4294901760
    %v3004 = vsub.f32 %v130, %v3003
    %3005 = vmatpush.msra.mxu0 %v3004
    %v3006 = vand.u32 %v127, 4294901760
    %v3007 = vsub.f32 %v127, %v3006
    %3008 = vmatpush.msra.mxu0 %v3007
    %v3009 = vand.u32 %v124, 4294901760
    %v3010 = vsub.f32 %v124, %v3009
    %3011 = vmatpush.msra.mxu0 %v3010
    %v3012 = vand.u32 %v121, 4294901760
    %v3013 = vsub.f32 %v121, %v3012
    %3014 = vmatpush.msra.mxu0 %v3013
    %v3015 = vand.u32 %v118, 4294901760
    %v3016 = vsub.f32 %v118, %v3015
    %3017 = vmatpush.msra.mxu0 %v3016
    %v3018 = vand.u32 %v63, 4294901760
    %v3019 = vsub.f32 %v63, %v3018
    %3020 = vmatmul.f32.gmra.mxu0 %v3019
    %v3021 = vpop.f32.mrf.mxu0
    %v3022 = vadd.f32 %v2964, %v3021
    %v3023 = vand.u32 %v66, 4294901760
    %v3024 = vsub.f32 %v66, %v3023
    %3025 = vmatmul.f32.gmra.mxu0 %v3024
    %v3026 = vpop.f32.mrf.mxu0
    %v3027 = vadd.f32 %v2968, %v3026
    %3028 = vdwg.mxu0
    %v3029 = vand.u32 %v163, 4294901760
    %3030 = vmatpush.msra.mxu0 %v3029
    %v3031 = vand.u32 %v160, 4294901760
    %3032 = vmatpush.msra.mxu0 %v3031
    %v3033 = vand.u32 %v157, 4294901760
    %3034 = vmatpush.msra.mxu0 %v3033
    %v3035 = vand.u32 %v154, 4294901760
    %3036 = vmatpush.msra.mxu0 %v3035
    %v3037 = vand.u32 %v151, 4294901760
    %3038 = vmatpush.msra.mxu0 %v3037
    %v3039 = vand.u32 %v148, 4294901760
    %3040 = vmatpush.msra.mxu0 %v3039
    %v3041 = vand.u32 %v145, 4294901760
    %3042 = vmatpush.msra.mxu0 %v3041
    %v3043 = vand.u32 %v142, 4294901760
    %3044 = vmatpush.msra.mxu0 %v3043
    %v3045 = vand.u32 %v139, 4294901760
    %3046 = vmatpush.msra.mxu0 %v3045
    %v3047 = vand.u32 %v136, 4294901760
    %3048 = vmatpush.msra.mxu0 %v3047
    %v3049 = vand.u32 %v133, 4294901760
    %3050 = vmatpush.msra.mxu0 %v3049
    %v3051 = vand.u32 %v130, 4294901760
    %3052 = vmatpush.msra.mxu0 %v3051
    %v3053 = vand.u32 %v127, 4294901760
    %3054 = vmatpush.msra.mxu0 %v3053
    %v3055 = vand.u32 %v124, 4294901760
    %3056 = vmatpush.msra.mxu0 %v3055
    %v3057 = vand.u32 %v121, 4294901760
    %3058 = vmatpush.msra.mxu0 %v3057
    %v3059 = vand.u32 %v118, 4294901760
    %3060 = vmatpush.msra.mxu0 %v3059
    %v3061 = vand.u32 %v63, 4294901760
    %v3062 = vsub.f32 %v63, %v3061
    %v3063 = vand.u32 %v3062, 4294901760
    %3064 = vmatmul.f32.gmra.mxu0 %v3063
    %v3065 = vpop.f32.mrf.mxu0
    %v3066 = vadd.f32 %v3022, %v3065
    %v3067 = vand.u32 %v66, 4294901760
    %v3068 = vsub.f32 %v66, %v3067
    %v3069 = vand.u32 %v3068, 4294901760
    %3070 = vmatmul.f32.gmra.mxu0 %v3069
    %v3071 = vpop.f32.mrf.mxu0
    %v3072 = vadd.f32 %v3027, %v3071
    %3073 = vdwg.mxu0
    %v3074 = vand.u32 %v163, 4294901760
    %v3075 = vsub.f32 %v163, %v3074
    %v3076 = vand.u32 %v3075, 4294901760
    %3077 = vmatpush.msra.mxu0 %v3076
    %v3078 = vand.u32 %v160, 4294901760
    %v3079 = vsub.f32 %v160, %v3078
    %v3080 = vand.u32 %v3079, 4294901760
    %3081 = vmatpush.msra.mxu0 %v3080
    %v3082 = vand.u32 %v157, 4294901760
    %v3083 = vsub.f32 %v157, %v3082
    %v3084 = vand.u32 %v3083, 4294901760
    %3085 = vmatpush.msra.mxu0 %v3084
    %v3086 = vand.u32 %v154, 4294901760
    %v3087 = vsub.f32 %v154, %v3086
    %v3088 = vand.u32 %v3087, 4294901760
    %3089 = vmatpush.msra.mxu0 %v3088
    %v3090 = vand.u32 %v151, 4294901760
    %v3091 = vsub.f32 %v151, %v3090
    %v3092 = vand.u32 %v3091, 4294901760
    %3093 = vmatpush.msra.mxu0 %v3092
    %v3094 = vand.u32 %v148, 4294901760
    %v3095 = vsub.f32 %v148, %v3094
    %v3096 = vand.u32 %v3095, 4294901760
    %3097 = vmatpush.msra.mxu0 %v3096
    %v3098 = vand.u32 %v145, 4294901760
    %v3099 = vsub.f32 %v145, %v3098
    %v3100 = vand.u32 %v3099, 4294901760
    %3101 = vmatpush.msra.mxu0 %v3100
    %v3102 = vand.u32 %v142, 4294901760
    %v3103 = vsub.f32 %v142, %v3102
    %v3104 = vand.u32 %v3103, 4294901760
    %3105 = vmatpush.msra.mxu0 %v3104
    %v3106 = vand.u32 %v139, 4294901760
    %v3107 = vsub.f32 %v139, %v3106
    %v3108 = vand.u32 %v3107, 4294901760
    %3109 = vmatpush.msra.mxu0 %v3108
    %v3110 = vand.u32 %v136, 4294901760
    %v3111 = vsub.f32 %v136, %v3110
    %v3112 = vand.u32 %v3111, 4294901760
    %3113 = vmatpush.msra.mxu0 %v3112
    %v3114 = vand.u32 %v133, 4294901760
    %v3115 = vsub.f32 %v133, %v3114
    %v3116 = vand.u32 %v3115, 4294901760
    %3117 = vmatpush.msra.mxu0 %v3116
    %v3118 = vand.u32 %v130, 4294901760
    %v3119 = vsub.f32 %v130, %v3118
    %v3120 = vand.u32 %v3119, 4294901760
    %3121 = vmatpush.msra.mxu0 %v3120
    %v3122 = vand.u32 %v127, 4294901760
    %v3123 = vsub.f32 %v127, %v3122
    %v3124 = vand.u32 %v3123, 4294901760
    %3125 = vmatpush.msra.mxu0 %v3124
    %v3126 = vand.u32 %v124, 4294901760
    %v3127 = vsub.f32 %v124, %v3126
    %v3128 = vand.u32 %v3127, 4294901760
    %3129 = vmatpush.msra.mxu0 %v3128
    %v3130 = vand.u32 %v121, 4294901760
    %v3131 = vsub.f32 %v121, %v3130
    %v3132 = vand.u32 %v3131, 4294901760
    %3133 = vmatpush.msra.mxu0 %v3132
    %v3134 = vand.u32 %v118, 4294901760
    %v3135 = vsub.f32 %v118, %v3134
    %v3136 = vand.u32 %v3135, 4294901760
    %3137 = vmatpush.msra.mxu0 %v3136
    %v3138 = vand.u32 %v63, 4294901760
    %3139 = vmatmul.f32.gmra.mxu0 %v3138
    %v3140 = vpop.f32.mrf.mxu0
    %v3141 = vadd.f32 %v3066, %v3140
    %v3142 = vand.u32 %v66, 4294901760
    %3143 = vmatmul.f32.gmra.mxu0 %v3142
    %v3144 = vpop.f32.mrf.mxu0
    %v3145 = vadd.f32 %v3072, %v3144
    %3146 = vdwg.mxu0
    %v3147 = vand.u32 %v163, 4294901760
    %3148 = vmatpush.msra.mxu0 %v3147
    %v3149 = vand.u32 %v160, 4294901760
    %3150 = vmatpush.msra.mxu0 %v3149
    %v3151 = vand.u32 %v157, 4294901760
    %3152 = vmatpush.msra.mxu0 %v3151
    %v3153 = vand.u32 %v154, 4294901760
    %3154 = vmatpush.msra.mxu0 %v3153
    %v3155 = vand.u32 %v151, 4294901760
    %3156 = vmatpush.msra.mxu0 %v3155
    %v3157 = vand.u32 %v148, 4294901760
    %3158 = vmatpush.msra.mxu0 %v3157
    %v3159 = vand.u32 %v145, 4294901760
    %3160 = vmatpush.msra.mxu0 %v3159
    %v3161 = vand.u32 %v142, 4294901760
    %3162 = vmatpush.msra.mxu0 %v3161
    %v3163 = vand.u32 %v139, 4294901760
    %3164 = vmatpush.msra.mxu0 %v3163
    %v3165 = vand.u32 %v136, 4294901760
    %3166 = vmatpush.msra.mxu0 %v3165
    %v3167 = vand.u32 %v133, 4294901760
    %3168 = vmatpush.msra.mxu0 %v3167
    %v3169 = vand.u32 %v130, 4294901760
    %3170 = vmatpush.msra.mxu0 %v3169
    %v3171 = vand.u32 %v127, 4294901760
    %3172 = vmatpush.msra.mxu0 %v3171
    %v3173 = vand.u32 %v124, 4294901760
    %3174 = vmatpush.msra.mxu0 %v3173
    %v3175 = vand.u32 %v121, 4294901760
    %3176 = vmatpush.msra.mxu0 %v3175
    %v3177 = vand.u32 %v118, 4294901760
    %3178 = vmatpush.msra.mxu0 %v3177
    %v3179 = vand.u32 %v63, 4294901760
    %3180 = vmatmul.f32.gmra.mxu0 %v3179
    %v3181 = vpop.f32.mrf.mxu0
    %v3182 = vadd.f32 %v3141, %v3181
    %v3183 = vand.u32 %v66, 4294901760
    %3184 = vmatmul.f32.gmra.mxu0 %v3183
    %v3185 = vpop.f32.mrf.mxu0
    %v3186 = vadd.f32 %v3145, %v3185
    %3187 = vdwg.mxu0
    %v3188 = vand.u32 %v211, 4294901760
    %3189 = vmatpush.msra.mxu0 %v3188
    %v3190 = vand.u32 %v208, 4294901760
    %3191 = vmatpush.msra.mxu0 %v3190
    %v3192 = vand.u32 %v205, 4294901760
    %3193 = vmatpush.msra.mxu0 %v3192
    %v3194 = vand.u32 %v202, 4294901760
    %3195 = vmatpush.msra.mxu0 %v3194
    %v3196 = vand.u32 %v199, 4294901760
    %3197 = vmatpush.msra.mxu0 %v3196
    %v3198 = vand.u32 %v196, 4294901760
    %3199 = vmatpush.msra.mxu0 %v3198
    %v3200 = vand.u32 %v193, 4294901760
    %3201 = vmatpush.msra.mxu0 %v3200
    %v3202 = vand.u32 %v190, 4294901760
    %3203 = vmatpush.msra.mxu0 %v3202
    %v3204 = vand.u32 %v187, 4294901760
    %3205 = vmatpush.msra.mxu0 %v3204
    %v3206 = vand.u32 %v184, 4294901760
    %3207 = vmatpush.msra.mxu0 %v3206
    %v3208 = vand.u32 %v181, 4294901760
    %3209 = vmatpush.msra.mxu0 %v3208
    %v3210 = vand.u32 %v178, 4294901760
    %3211 = vmatpush.msra.mxu0 %v3210
    %v3212 = vand.u32 %v175, 4294901760
    %3213 = vmatpush.msra.mxu0 %v3212
    %v3214 = vand.u32 %v172, 4294901760
    %3215 = vmatpush.msra.mxu0 %v3214
    %v3216 = vand.u32 %v169, 4294901760
    %3217 = vmatpush.msra.mxu0 %v3216
    %v3218 = vand.u32 %v166, 4294901760
    %3219 = vmatpush.msra.mxu0 %v3218
    %v3220 = vand.u32 %v64, 4294901760
    %v3221 = vsub.f32 %v64, %v3220
    %v3222 = vand.u32 %v3221, 4294901760
    %v3223 = vsub.f32 %v3221, %v3222
    %v3224 = vand.u32 %v3223, 4294901760
    %3225 = vmatmul.f32.gmra.mxu0 %v3224
    %v3226 = vpop.f32.mrf.mxu0
    %v3227 = vadd.f32 %v3182, %v3226
    %v3228 = vand.u32 %v67, 4294901760
    %v3229 = vsub.f32 %v67, %v3228
    %v3230 = vand.u32 %v3229, 4294901760
    %v3231 = vsub.f32 %v3229, %v3230
    %v3232 = vand.u32 %v3231, 4294901760
    %3233 = vmatmul.f32.gmra.mxu0 %v3232
    %v3234 = vpop.f32.mrf.mxu0
    %v3235 = vadd.f32 %v3186, %v3234
    %3236 = vdwg.mxu0
    %v3237 = vand.u32 %v211, 4294901760
    %v3238 = vsub.f32 %v211, %v3237
    %v3239 = vand.u32 %v3238, 4294901760
    %v3240 = vsub.f32 %v3238, %v3239
    %v3241 = vand.u32 %v3240, 4294901760
    %3242 = vmatpush.msra.mxu0 %v3241
    %v3243 = vand.u32 %v208, 4294901760
    %v3244 = vsub.f32 %v208, %v3243
    %v3245 = vand.u32 %v3244, 4294901760
    %v3246 = vsub.f32 %v3244, %v3245
    %v3247 = vand.u32 %v3246, 4294901760
    %3248 = vmatpush.msra.mxu0 %v3247
    %v3249 = vand.u32 %v205, 4294901760
    %v3250 = vsub.f32 %v205, %v3249
    %v3251 = vand.u32 %v3250, 4294901760
    %v3252 = vsub.f32 %v3250, %v3251
    %v3253 = vand.u32 %v3252, 4294901760
    %3254 = vmatpush.msra.mxu0 %v3253
    %v3255 = vand.u32 %v202, 4294901760
    %v3256 = vsub.f32 %v202, %v3255
    %v3257 = vand.u32 %v3256, 4294901760
    %v3258 = vsub.f32 %v3256, %v3257
    %v3259 = vand.u32 %v3258, 4294901760
    %3260 = vmatpush.msra.mxu0 %v3259
    %v3261 = vand.u32 %v199, 4294901760
    %v3262 = vsub.f32 %v199, %v3261
    %v3263 = vand.u32 %v3262, 4294901760
    %v3264 = vsub.f32 %v3262, %v3263
    %v3265 = vand.u32 %v3264, 4294901760
    %3266 = vmatpush.msra.mxu0 %v3265
    %v3267 = vand.u32 %v196, 4294901760
    %v3268 = vsub.f32 %v196, %v3267
    %v3269 = vand.u32 %v3268, 4294901760
    %v3270 = vsub.f32 %v3268, %v3269
    %v3271 = vand.u32 %v3270, 4294901760
    %3272 = vmatpush.msra.mxu0 %v3271
    %v3273 = vand.u32 %v193, 4294901760
    %v3274 = vsub.f32 %v193, %v3273
    %v3275 = vand.u32 %v3274, 4294901760
    %v3276 = vsub.f32 %v3274, %v3275
    %v3277 = vand.u32 %v3276, 4294901760
    %3278 = vmatpush.msra.mxu0 %v3277
    %v3279 = vand.u32 %v190, 4294901760
    %v3280 = vsub.f32 %v190, %v3279
    %v3281 = vand.u32 %v3280, 4294901760
    %v3282 = vsub.f32 %v3280, %v3281
    %v3283 = vand.u32 %v3282, 4294901760
    %3284 = vmatpush.msra.mxu0 %v3283
    %v3285 = vand.u32 %v187, 4294901760
    %v3286 = vsub.f32 %v187, %v3285
    %v3287 = vand.u32 %v3286, 4294901760
    %v3288 = vsub.f32 %v3286, %v3287
    %v3289 = vand.u32 %v3288, 4294901760
    %3290 = vmatpush.msra.mxu0 %v3289
    %v3291 = vand.u32 %v184, 4294901760
    %v3292 = vsub.f32 %v184, %v3291
    %v3293 = vand.u32 %v3292, 4294901760
    %v3294 = vsub.f32 %v3292, %v3293
    %v3295 = vand.u32 %v3294, 4294901760
    %3296 = vmatpush.msra.mxu0 %v3295
    %v3297 = vand.u32 %v181, 4294901760
    %v3298 = vsub.f32 %v181, %v3297
    %v3299 = vand.u32 %v3298, 4294901760
    %v3300 = vsub.f32 %v3298, %v3299
    %v3301 = vand.u32 %v3300, 4294901760
    %3302 = vmatpush.msra.mxu0 %v3301
    %v3303 = vand.u32 %v178, 4294901760
    %v3304 = vsub.f32 %v178, %v3303
    %v3305 = vand.u32 %v3304, 4294901760
    %v3306 = vsub.f32 %v3304, %v3305
    %v3307 = vand.u32 %v3306, 4294901760
    %3308 = vmatpush.msra.mxu0 %v3307
    %v3309 = vand.u32 %v175, 4294901760
    %v3310 = vsub.f32 %v175, %v3309
    %v3311 = vand.u32 %v3310, 4294901760
    %v3312 = vsub.f32 %v3310, %v3311
    %v3313 = vand.u32 %v3312, 4294901760
    %3314 = vmatpush.msra.mxu0 %v3313
    %v3315 = vand.u32 %v172, 4294901760
    %v3316 = vsub.f32 %v172, %v3315
    %v3317 = vand.u32 %v3316, 4294901760
    %v3318 = vsub.f32 %v3316, %v3317
    %v3319 = vand.u32 %v3318, 4294901760
    %3320 = vmatpush.msra.mxu0 %v3319
    %v3321 = vand.u32 %v169, 4294901760
    %v3322 = vsub.f32 %v169, %v3321
    %v3323 = vand.u32 %v3322, 4294901760
    %v3324 = vsub.f32 %v3322, %v3323
    %v3325 = vand.u32 %v3324, 4294901760
    %3326 = vmatpush.msra.mxu0 %v3325
    %v3327 = vand.u32 %v166, 4294901760
    %v3328 = vsub.f32 %v166, %v3327
    %v3329 = vand.u32 %v3328, 4294901760
    %v3330 = vsub.f32 %v3328, %v3329
    %v3331 = vand.u32 %v3330, 4294901760
    %3332 = vmatpush.msra.mxu0 %v3331
    %v3333 = vand.u32 %v64, 4294901760
    %3334 = vmatmul.f32.gmra.mxu0 %v3333
    %v3335 = vpop.f32.mrf.mxu0
    %v3336 = vadd.f32 %v3227, %v3335
    %v3337 = vand.u32 %v67, 4294901760
    %3338 = vmatmul.f32.gmra.mxu0 %v3337
    %v3339 = vpop.f32.mrf.mxu0
    %v3340 = vadd.f32 %v3235, %v3339
    %3341 = vdwg.mxu0
    %v3342 = vand.u32 %v211, 4294901760
    %v3343 = vsub.f32 %v211, %v3342
    %3344 = vmatpush.msra.mxu0 %v3343
    %v3345 = vand.u32 %v208, 4294901760
    %v3346 = vsub.f32 %v208, %v3345
    %3347 = vmatpush.msra.mxu0 %v3346
    %v3348 = vand.u32 %v205, 4294901760
    %v3349 = vsub.f32 %v205, %v3348
    %3350 = vmatpush.msra.mxu0 %v3349
    %v3351 = vand.u32 %v202, 4294901760
    %v3352 = vsub.f32 %v202, %v3351
    %3353 = vmatpush.msra.mxu0 %v3352
    %v3354 = vand.u32 %v199, 4294901760
    %v3355 = vsub.f32 %v199, %v3354
    %3356 = vmatpush.msra.mxu0 %v3355
    %v3357 = vand.u32 %v196, 4294901760
    %v3358 = vsub.f32 %v196, %v3357
    %3359 = vmatpush.msra.mxu0 %v3358
    %v3360 = vand.u32 %v193, 4294901760
    %v3361 = vsub.f32 %v193, %v3360
    %3362 = vmatpush.msra.mxu0 %v3361
    %v3363 = vand.u32 %v190, 4294901760
    %v3364 = vsub.f32 %v190, %v3363
    %3365 = vmatpush.msra.mxu0 %v3364
    %v3366 = vand.u32 %v187, 4294901760
    %v3367 = vsub.f32 %v187, %v3366
    %3368 = vmatpush.msra.mxu0 %v3367
    %v3369 = vand.u32 %v184, 4294901760
    %v3370 = vsub.f32 %v184, %v3369
    %3371 = vmatpush.msra.mxu0 %v3370
    %v3372 = vand.u32 %v181, 4294901760
    %v3373 = vsub.f32 %v181, %v3372
    %3374 = vmatpush.msra.mxu0 %v3373
    %v3375 = vand.u32 %v178, 4294901760
    %v3376 = vsub.f32 %v178, %v3375
    %3377 = vmatpush.msra.mxu0 %v3376
    %v3378 = vand.u32 %v175, 4294901760
    %v3379 = vsub.f32 %v175, %v3378
    %3380 = vmatpush.msra.mxu0 %v3379
    %v3381 = vand.u32 %v172, 4294901760
    %v3382 = vsub.f32 %v172, %v3381
    %3383 = vmatpush.msra.mxu0 %v3382
    %v3384 = vand.u32 %v169, 4294901760
    %v3385 = vsub.f32 %v169, %v3384
    %3386 = vmatpush.msra.mxu0 %v3385
    %v3387 = vand.u32 %v166, 4294901760
    %v3388 = vsub.f32 %v166, %v3387
    %3389 = vmatpush.msra.mxu0 %v3388
    %v3390 = vand.u32 %v64, 4294901760
    %v3391 = vsub.f32 %v64, %v3390
    %3392 = vmatmul.f32.gmra.mxu0 %v3391
    %v3393 = vpop.f32.mrf.mxu0
    %v3394 = vadd.f32 %v3336, %v3393
    %v3395 = vand.u32 %v67, 4294901760
    %v3396 = vsub.f32 %v67, %v3395
    %3397 = vmatmul.f32.gmra.mxu0 %v3396
    %v3398 = vpop.f32.mrf.mxu0
    %v3399 = vadd.f32 %v3340, %v3398
    %3400 = vdwg.mxu0
    %v3401 = vand.u32 %v211, 4294901760
    %3402 = vmatpush.msra.mxu0 %v3401
    %v3403 = vand.u32 %v208, 4294901760
    %3404 = vmatpush.msra.mxu0 %v3403
    %v3405 = vand.u32 %v205, 4294901760
    %3406 = vmatpush.msra.mxu0 %v3405
    %v3407 = vand.u32 %v202, 4294901760
    %3408 = vmatpush.msra.mxu0 %v3407
    %v3409 = vand.u32 %v199, 4294901760
    %3410 = vmatpush.msra.mxu0 %v3409
    %v3411 = vand.u32 %v196, 4294901760
    %3412 = vmatpush.msra.mxu0 %v3411
    %v3413 = vand.u32 %v193, 4294901760
    %3414 = vmatpush.msra.mxu0 %v3413
    %v3415 = vand.u32 %v190, 4294901760
    %3416 = vmatpush.msra.mxu0 %v3415
    %v3417 = vand.u32 %v187, 4294901760
    %3418 = vmatpush.msra.mxu0 %v3417
    %v3419 = vand.u32 %v184, 4294901760
    %3420 = vmatpush.msra.mxu0 %v3419
    %v3421 = vand.u32 %v181, 4294901760
    %3422 = vmatpush.msra.mxu0 %v3421
    %v3423 = vand.u32 %v178, 4294901760
    %3424 = vmatpush.msra.mxu0 %v3423
    %v3425 = vand.u32 %v175, 4294901760
    %3426 = vmatpush.msra.mxu0 %v3425
    %v3427 = vand.u32 %v172, 4294901760
    %3428 = vmatpush.msra.mxu0 %v3427
    %v3429 = vand.u32 %v169, 4294901760
    %3430 = vmatpush.msra.mxu0 %v3429
    %v3431 = vand.u32 %v166, 4294901760
    %3432 = vmatpush.msra.mxu0 %v3431
    %v3433 = vand.u32 %v64, 4294901760
    %v3434 = vsub.f32 %v64, %v3433
    %v3435 = vand.u32 %v3434, 4294901760
    %3436 = vmatmul.f32.gmra.mxu0 %v3435
    %v3437 = vpop.f32.mrf.mxu0
    %v3438 = vadd.f32 %v3394, %v3437
    %v3439 = vand.u32 %v67, 4294901760
    %v3440 = vsub.f32 %v67, %v3439
    %v3441 = vand.u32 %v3440, 4294901760
    %3442 = vmatmul.f32.gmra.mxu0 %v3441
    %v3443 = vpop.f32.mrf.mxu0
    %v3444 = vadd.f32 %v3399, %v3443
    %3445 = vdwg.mxu0
    %v3446 = vand.u32 %v211, 4294901760
    %v3447 = vsub.f32 %v211, %v3446
    %v3448 = vand.u32 %v3447, 4294901760
    %3449 = vmatpush.msra.mxu0 %v3448
    %v3450 = vand.u32 %v208, 4294901760
    %v3451 = vsub.f32 %v208, %v3450
    %v3452 = vand.u32 %v3451, 4294901760
    %3453 = vmatpush.msra.mxu0 %v3452
    %v3454 = vand.u32 %v205, 4294901760
    %v3455 = vsub.f32 %v205, %v3454
    %v3456 = vand.u32 %v3455, 4294901760
    %3457 = vmatpush.msra.mxu0 %v3456
    %v3458 = vand.u32 %v202, 4294901760
    %v3459 = vsub.f32 %v202, %v3458
    %v3460 = vand.u32 %v3459, 4294901760
    %3461 = vmatpush.msra.mxu0 %v3460
    %v3462 = vand.u32 %v199, 4294901760
    %v3463 = vsub.f32 %v199, %v3462
    %v3464 = vand.u32 %v3463, 4294901760
    %3465 = vmatpush.msra.mxu0 %v3464
    %v3466 = vand.u32 %v196, 4294901760
    %v3467 = vsub.f32 %v196, %v3466
    %v3468 = vand.u32 %v3467, 4294901760
    %3469 = vmatpush.msra.mxu0 %v3468
    %v3470 = vand.u32 %v193, 4294901760
    %v3471 = vsub.f32 %v193, %v3470
    %v3472 = vand.u32 %v3471, 4294901760
    %3473 = vmatpush.msra.mxu0 %v3472
    %v3474 = vand.u32 %v190, 4294901760
    %v3475 = vsub.f32 %v190, %v3474
    %v3476 = vand.u32 %v3475, 4294901760
    %3477 = vmatpush.msra.mxu0 %v3476
    %v3478 = vand.u32 %v187, 4294901760
    %v3479 = vsub.f32 %v187, %v3478
    %v3480 = vand.u32 %v3479, 4294901760
    %3481 = vmatpush.msra.mxu0 %v3480
    %v3482 = vand.u32 %v184, 4294901760
    %v3483 = vsub.f32 %v184, %v3482
    %v3484 = vand.u32 %v3483, 4294901760
    %3485 = vmatpush.msra.mxu0 %v3484
    %v3486 = vand.u32 %v181, 4294901760
    %v3487 = vsub.f32 %v181, %v3486
    %v3488 = vand.u32 %v3487, 4294901760
    %3489 = vmatpush.msra.mxu0 %v3488
    %v3490 = vand.u32 %v178, 4294901760
    %v3491 = vsub.f32 %v178, %v3490
    %v3492 = vand.u32 %v3491, 4294901760
    %3493 = vmatpush.msra.mxu0 %v3492
    %v3494 = vand.u32 %v175, 4294901760
    %v3495 = vsub.f32 %v175, %v3494
    %v3496 = vand.u32 %v3495, 4294901760
    %3497 = vmatpush.msra.mxu0 %v3496
    %v3498 = vand.u32 %v172, 4294901760
    %v3499 = vsub.f32 %v172, %v3498
    %v3500 = vand.u32 %v3499, 4294901760
    %3501 = vmatpush.msra.mxu0 %v3500
    %v3502 = vand.u32 %v169, 4294901760
    %v3503 = vsub.f32 %v169, %v3502
    %v3504 = vand.u32 %v3503, 4294901760
    %3505 = vmatpush.msra.mxu0 %v3504
    %v3506 = vand.u32 %v166, 4294901760
    %v3507 = vsub.f32 %v166, %v3506
    %v3508 = vand.u32 %v3507, 4294901760
    %3509 = vmatpush.msra.mxu0 %v3508
    %v3510 = vand.u32 %v64, 4294901760
    %3511 = vmatmul.f32.gmra.mxu0 %v3510
    %v3512 = vpop.f32.mrf.mxu0
    %v3513 = vadd.f32 %v3438, %v3512
    %v3514 = vand.u32 %v67, 4294901760
    %3515 = vmatmul.f32.gmra.mxu0 %v3514
    %v3516 = vpop.f32.mrf.mxu0
    %v3517 = vadd.f32 %v3444, %v3516
    %3518 = vdwg.mxu0
    %v3519 = vand.u32 %v211, 4294901760
    %3520 = vmatpush.msra.mxu0 %v3519
    %v3521 = vand.u32 %v208, 4294901760
    %3522 = vmatpush.msra.mxu0 %v3521
    %v3523 = vand.u32 %v205, 4294901760
    %3524 = vmatpush.msra.mxu0 %v3523
    %v3525 = vand.u32 %v202, 4294901760
    %3526 = vmatpush.msra.mxu0 %v3525
    %v3527 = vand.u32 %v199, 4294901760
    %3528 = vmatpush.msra.mxu0 %v3527
    %v3529 = vand.u32 %v196, 4294901760
    %3530 = vmatpush.msra.mxu0 %v3529
    %v3531 = vand.u32 %v193, 4294901760
    %3532 = vmatpush.msra.mxu0 %v3531
    %v3533 = vand.u32 %v190, 4294901760
    %3534 = vmatpush.msra.mxu0 %v3533
    %v3535 = vand.u32 %v187, 4294901760
    %3536 = vmatpush.msra.mxu0 %v3535
    %v3537 = vand.u32 %v184, 4294901760
    %3538 = vmatpush.msra.mxu0 %v3537
    %v3539 = vand.u32 %v181, 4294901760
    %3540 = vmatpush.msra.mxu0 %v3539
    %v3541 = vand.u32 %v178, 4294901760
    %3542 = vmatpush.msra.mxu0 %v3541
    %v3543 = vand.u32 %v175, 4294901760
    %3544 = vmatpush.msra.mxu0 %v3543
    %v3545 = vand.u32 %v172, 4294901760
    %3546 = vmatpush.msra.mxu0 %v3545
    %v3547 = vand.u32 %v169, 4294901760
    %3548 = vmatpush.msra.mxu0 %v3547
    %v3549 = vand.u32 %v166, 4294901760
    %3550 = vmatpush.msra.mxu0 %v3549
    %v3551 = vand.u32 %v64, 4294901760
    %3552 = vmatmul.f32.gmra.mxu0 %v3551
    %v3553 = vpop.f32.mrf.mxu0
    %v3554 = vadd.f32 %v3513, %v3553
    %v3555 = vand.u32 %v67, 4294901760
    %3556 = vmatmul.f32.gmra.mxu0 %v3555
    %v3557 = vpop.f32.mrf.mxu0
    %v3558 = vadd.f32 %v3517, %v3557
    %3559 = vdwg.mxu0
    %v3560 = vld [vmem:[#allocation5] sm:$0xff]
    %v3561 = vld [vmem:[#allocation5 + $0x8] sm:$0xff]
    %vm3562 = vcmp.eq.s32.totalorder %v3560, 4294967295
    %vm3563 = vcmp.eq.s32.totalorder %v3561, 4294967295
    %vm3564 = vcmp.gt.s32.totalorder %v3560, 0
    %v3565 = vsel %vm3564, %v3560, 0
    %vm3566 = vcmp.gt.s32.totalorder %v3561, 0
    %v3567 = vsel %vm3566, %v3561, 0
    %v3568 = vmax.f32 %v1322, %v2438
    %v3569 = vmax.f32 %v1326, %v2442
    %v3570 = vmax.f32 %v3568, %v3554
    %v3571 = vmax.f32 %v3569, %v3558
    %v3572 = vsub.f32 %v1322, %v3570
    %v3573 = vsub.f32 %v1326, %v3571
    %v3574 = vsub.f32 %v2438, %v3570
    %v3575 = vsub.f32 %v2442, %v3571
    %v3576 = vsub.f32 %v3554, %v3570
    %v3577 = vsub.f32 %v3558, %v3571
    %v3578 = vmul.f32 %v3572, 1.442695
    %v3579 = vpow.pop %v3578
    %v3580 = vmul.f32 %v3573, 1.442695
    %v3581 = vpow.pop %v3580
    %v3582 = vmul.f32 %v3574, 1.442695
    %v3583 = vpow.pop %v3582
    %v3584 = vmul.f32 %v3575, 1.442695
    %v3585 = vpow.pop %v3584
    %v3586 = vadd.f32 %v3579, %v3583
    %v3587 = vadd.f32 %v3581, %v3585
    %v3588 = vmul.f32 %v3576, 1.442695
    %v3589 = vpow.pop %v3588
    %v3590 = vmul.f32 %v3577, 1.442695
    %v3591 = vpow.pop %v3590
    %v3592 = vadd.f32 %v3586, %v3589
    %v3593 = vadd.f32 %v3587, %v3591
    %v3594 = vlog2.pop %v3592
    %v3595 = vmul.f32 %v3594, 0.6931472
    %v3596 = vlog2.pop %v3593
    %v3597 = vmul.f32 %v3596, 0.6931472
    %vm3598 = vcmp.eq.s32.totalorder %v3565, 0
    %vm3599 = vcmp.eq.s32.totalorder %v3567, 0
    %vm3600 = vcmp.eq.s32.totalorder %v3565, 1
    %vm3601 = vcmp.eq.s32.totalorder %v3567, 1
    %v3602 = vsel %vm3600, %v3574, %v3576
    %v3603 = vsel %vm3601, %v3575, %v3577
    %v3604 = vsel %vm3598, %v3572, %v3602
    %v3605 = vsel %vm3599, %v3573, %v3603
    %v3606 = vmul.f32 %v3604, 0.9
    %v3607 = vmul.f32 %v3605, 0.9
    %v3608 = vadd.f32 %v3572, %v3574
    %v3609 = vadd.f32 %v3573, %v3575
    %v3610 = vadd.f32 %v3608, %v3576
    %v3611 = vadd.f32 %v3609, %v3577
    %v3612 = vsub.f32 %v3610, %v3604
    %v3613 = vsub.f32 %v3611, %v3605
    %v3614 = vmul.f32 %v3612, 0.05
    %v3615 = vmul.f32 %v3613, 0.05
    %v3616 = vadd.f32 %v3606, %v3614
    %v3617 = vadd.f32 %v3607, %v3615
    %v3618 = vsub.f32 %v3595, %v3616
    %v3619 = vsub.f32 %v3597, %v3617
    %v3620 = vsel %vm3562, 0.0, %v3618
    %v3621 = vsel %vm3563, 0.0, %v3619
    %3622 = vst [vmem:[#allocation8] sm:$0xff] %v3620
    %3623 = vst [vmem:[#allocation8 + $0x8] sm:$0xff] %v3621
    // Predicated region
    $region26: #{tpu_custom_call.1} parent=1 // pred_check
      _
    $region27: #{tpu_custom_call.1} parent=1 // pred_check_branch
      %3625 = sbr.rel (0) target = $region29
    $region28: #{tpu_custom_call.1} parent=1 // pred_region
      %3627 = vsyncadd [#allocation4], 0
      %s3628 = sshll.u32 [#allocation8], 4
      %s3629 = int_to_ptr.vmem [resolvable:$true] %s3628
      %s3630 = sshll.u32 %s3, 4
      %s3631 = int_to_ptr.hbm [resolvable:$true] %s3630
      %3636 = dma.vmem_to_hbm [thread:$0]  %s3629, 256, %s3631, [#allocation4], 128, 128, 8
    $region29: #{tpu_custom_call.1} parent=1 // pred_fallthru
      _
    // Predicated region
    $region30: #{tpu_custom_call.1} parent=1 // pred_check
      _
    $region31: #{tpu_custom_call.1} parent=1 // pred_check_branch
      %3638 = sbr.rel (0) target = $region33
    $region32: #{tpu_custom_call.1} parent=1 // pred_region
      %3640 = dma.done [#allocation4], 256
    $region33: #{tpu_custom_call.1} parent=1 // pred_fallthru
      _
    %3641 = vsyncpa [#allocation3], 1
    %3642 = vsyncpa [#allocation6], 1
    %3643 = vsyncpa [#allocation4], 1

</llo_original>
